<compile_context>
chip_gen: v7x
topology: tpu7x:2x2x1
jax: 0.10.0
libtpu: 0.0.40
codegen_flags: <defaults>
</compile_context>

<pallas_src>
import numpy as np
import jax
import jax.numpy as jnp
from jax import lax
from jax.experimental import pallas as pl
from jax.experimental.pallas import tpu as pltpu

# ----- small, module-consistent shapes (originals: N=116, SEQ=220, FCHEV=45) -----
BS, N, SEQ = 2, 16, 32          # batch, num_of_vertices, seq / num_of_features
K = 3                           # chebyshev order
FCHEV = 12                      # num_of_chev_filters
TK = 3                          # time_conv_kernel
H_OUT, W_OUT = N - TK + 1, FCHEV - TK + 1
FLAT = H_OUT * W_OUT            # flatten size fed to the linear head
H1, H2, NCLS = 64, 32, 2
BN_EPS = 1e-5
BN_SCALE = 1.0 / np.sqrt(1.0 + BN_EPS)   # eval-mode BN: mean=0, var=1, gamma=1, beta=0
OUT_W = 128                     # lane-dense packed output width
SQUARINGS = 6                   # Ls^(2^6) — replaces the old 32-step power iteration


# ---------------------------- fused Pallas kernel (per batch element) ----------------------------

def _fused_kernel(x_ref, theta_ref, wg_ref, bh_ref, w3_ref, b3_ref, out_ref):
    xb = x_ref[0]                                          # (N, SEQ)

    # ---- my_corrcoef + (corr + 1) / 2 ----
    xc = xb - jnp.mean(xb, axis=1, keepdims=True)
    nrm = jnp.sqrt(jnp.sum(xc * xc, axis=1, keepdims=True))
    y = xc / (nrm + 1e-6)
    corr = lax.dot_general(y, y, (((1,), (1,)), ((), ())),
                           preferred_element_type=jnp.float32)        # y @ y.T, (N, N)
    W = (corr + 1.0) * 0.5

    # ---- graph Laplacian (identity built once, reused) ----
    row = lax.broadcasted_iota(jnp.int32, (N, N), 0)
    col = lax.broadcasted_iota(jnp.int32, (N, N), 1)
    eye = (row == col).astype(jnp.float32)                 # (N, N)
    d = jnp.sum(W, axis=1, keepdims=True)                  # (N, 1)
    L = eye * d - W                                        # D - W, symmetric PSD

    # ---- lambda_max via log-depth repeated squaring on the MXU ----
    # Gershgorin: eig(L) <= 2*max(d); Ls has spectrum in [0, 1].
    bound = 2.0 * jnp.max(d, axis=0, keepdims=True)        # (1, 1)
    Ls = L / bound
    M = Ls
    for _ in range(SQUARINGS):                             # M -> Ls^(2^k), renormalized
        M = jnp.dot(M, M, preferred_element_type=jnp.float32)
        m1 = jnp.max(jnp.abs(M), axis=1, keepdims=True)
        M = M / (jnp.max(m1, axis=0, keepdims=True) + 1e-30)
    # Generic probe (NOT the all-ones vector, which is the Laplacian null vector).
    v = (lax.broadcasted_iota(jnp.int32, (1, N), 1) + 1).astype(jnp.float32)
    u = jnp.dot(v, M, preferred_element_type=jnp.float32)              # ~dominant eigvec (M sym.)
    lu = jnp.dot(u, Ls, preferred_element_type=jnp.float32)
    su = jnp.sum(u * u, axis=1, keepdims=True)
    slu = jnp.sum(lu * lu, axis=1, keepdims=True)
    lam = bound * jnp.sqrt(slu / (su + 1e-30))             # (1, 1)
    lam = jnp.maximum(lam, 1e-6)

    Lt = L * (2.0 / lam) - eye                             # scaled Laplacian  (= T1)
    # cheb_polynomial in the torch reference uses tensor `*` => ELEMENTWISE T2.
    T2 = 2.0 * Lt * Lt - eye

    # ---- Chebyshev graph conv: relu(X Th0 + (Lt X) Th1 + (T2 X) Th2) ----
    z1 = jnp.dot(Lt, xb, preferred_element_type=jnp.float32)           # (N, SEQ)
    z2 = jnp.dot(T2, xb, preferred_element_type=jnp.float32)
    pre = (jnp.dot(xb, theta_ref[0], preferred_element_type=jnp.float32)
           + jnp.dot(z1, theta_ref[1], preferred_element_type=jnp.float32)
           + jnp.dot(z2, theta_ref[2], preferred_element_type=jnp.float32))
    g = jnp.maximum(pre, 0.0)                              # (N, FCHEV)

    # ---- head: conv3x3 + flatten + l1 + bn1 + l2 + bn2 all folded (host-side) into wg / bh ----
    # h2[h] = bh[h] + sum_{n,f} g[n,f] * wg[n,f,h]   -> N tiny MXU matmuls, lane-dense result.
    h2 = bh_ref[...]                                       # (1, H2)
    for n in range(N):
        h2 = h2 + jnp.dot(g[n:n + 1, :], wg_ref[n],
                          preferred_element_type=jnp.float32)

    # ---- l3 + softmax ----
    logits = jnp.dot(h2, w3_ref[...], preferred_element_type=jnp.float32) + b3_ref[...]
    m = jnp.max(logits, axis=-1, keepdims=True)
    e = jnp.exp(logits - m)
    probs = e / jnp.sum(e, axis=-1, keepdims=True)

    pad = jnp.zeros((1, OUT_W - NCLS - H2), jnp.float32)
    out_ref[0] = jnp.concatenate([probs, h2, pad], axis=-1)            # (1, OUT_W)


_fused_call = pl.pallas_call(
    _fused_kernel,
    out_shape=jax.ShapeDtypeStruct((BS, 1, OUT_W), jnp.float32),
    grid=(BS,),
    in_specs=[
        pl.BlockSpec((1, N, SEQ), lambda b: (b, 0, 0)),          # fdata, one batch element
        pl.BlockSpec((K, SEQ, FCHEV), lambda b: (0, 0, 0)),      # theta
        pl.BlockSpec((N, FCHEV, H2), lambda b: (0, 0, 0)),       # folded head weight wg
        pl.BlockSpec((1, H2), lambda b: (0, 0)),                 # folded head bias bh
        pl.BlockSpec((H2, NCLS), lambda b: (0, 0)),              # l3 weight
        pl.BlockSpec((1, NCLS), lambda b: (0, 0)),               # l3 bias
    ],
    out_specs=pl.BlockSpec((1, 1, OUT_W), lambda b: (b, 0, 0)),
    compiler_params=pltpu.CompilerParams(dimension_semantics=("parallel",)),
)


# ------------------------------ host-side params & folding ------------------------------

def init_params(key):
    ks = jax.random.split(key, 7)
    return {
        "theta": 0.1 * jax.random.normal(ks[0], (K, SEQ, FCHEV), jnp.float32),
        "conv_w": 0.1 * jax.random.normal(ks[1], (TK, TK), jnp.float32),
        "conv_b": 0.1 * jax.random.normal(ks[2], (), jnp.float32),
        "w1": 0.05 * jax.random.normal(ks[3], (FLAT, H1), jnp.float32),
        "b1": 0.01 * jax.random.normal(ks[4], (H1,), jnp.float32),
        "w2": 0.05 * jax.random.normal(ks[5], (H1, H2), jnp.float32),
        "b2": jnp.zeros((H2,), jnp.float32),
        "w3": 0.05 * jax.random.normal(ks[6], (H2, NCLS), jnp.float32),
        "b3": jnp.zeros((NCLS,), jnp.float32),
    }


def fold_params(raw):
    """One-time host-side fold: bn1/bn2 into l1/l2, then conv+flatten+l1+l2 into wg/bh."""
    s = jnp.float32(BN_SCALE)
    w1e = raw["w1"] * s                       # (FLAT, H1)
    b1e = raw["b1"] * s                       # (H1,)
    w2e = raw["w2"] * s                       # (H1, H2)
    b2e = raw["b2"] * s                       # (H2,)
    wf = w1e @ w2e                            # (FLAT, H2)   flat -> h2 (affine, no activations)
    bf = b1e @ w2e + b2e                      # (H2,)
    # Fold the single-channel 3x3 valid conv + flatten into wf:
    wf3 = wf.reshape(H_OUT, W_OUT, H2)
    wg = jnp.zeros((N, FCHEV, H2), jnp.float32)
    for di in range(TK):
        for dj in range(TK):
            wg = wg.at[di:di + H_OUT, dj:dj + W_OUT, :].add(raw["conv_w"][di, dj] * wf3)
    bh = bf + raw["conv_b"] * jnp.sum(wf, axis=0)           # conv bias contribution
    return {
        "theta": raw["theta"],
        "wg": wg,                               # (N, FCHEV, H2)
        "bh": bh[None, :],                      # (1, H2)
        "w3": raw["w3"],                        # (H2, NCLS)
        "b3": raw["b3"][None, :],               # (1, NCLS)
    }


@jax.jit
def forward(fdata, params):
    slab = _fused_call(fdata, params["theta"], params["wg"], params["bh"],
                       params["w3"], params["b3"])
    slab = slab[:, 0, :]
    probs = slab[:, :NCLS]                    # softmax probabilities
    feat = slab[:, NCLS:NCLS + H2]            # block_outs (features after l2/bn2)
    return probs, feat


# ------------------------------ independent NumPy reference ------------------------------

def reference_forward_np(fdata, raw):
    x = np.asarray(fdata, np.float64)
    theta = np.asarray(raw["theta"], np.float64)
    cw = np.asarray(raw["conv_w"], np.float64)
    cb = float(raw["conv_b"])
    w1 = np.asarray(raw["w1"], np.float64); b1 = np.asarray(raw["b1"], np.float64)
    w2 = np.asarray(raw["w2"], np.float64); b2 = np.asarray(raw["b2"], np.float64)
    w3 = np.asarray(raw["w3"], np.float64); b3 = np.asarray(raw["b3"], np.float64)
    probs_all, feat_all = [], []
    for b in range(BS):
        xb = x[b]
        xc = xb - xb.mean(axis=1, keepdims=True)
        y = xc / (np.linalg.norm(xc, axis=1, keepdims=True) + 1e-6)
        corr = y @ y.T
        Wm = (corr + 1.0) / 2.0
        d = Wm.sum(axis=1)
        L = np.diag(d) - Wm
        lam = np.abs(np.linalg.eigvalsh(L)).max()           # exact lambda_max
        Lt = 2.0 * L / lam - np.eye(N)
        T2 = 2.0 * Lt * Lt - np.eye(N)                        # elementwise, as in torch ref
        g = np.maximum(xb @ theta[0] + (Lt @ xb) @ theta[1] + (T2 @ xb) @ theta[2], 0.0)
        conv = np.full((H_OUT, W_OUT), cb)
        for di in range(TK):
            for dj in range(TK):
                conv = conv + cw[di, dj] * g[di:di + H_OUT, dj:dj + W_OUT]
        flat = conv.reshape(-1)
        h1 = (flat @ w1 + b1) * BN_SCALE
        h2 = (h1 @ w2 + b2) * BN_SCALE
        logits = h2 @ w3 + b3
        e = np.exp(logits - logits.max())
        probs_all.append(e / e.sum())
        feat_all.append(h2)
    return np.stack(probs_all), np.stack(feat_all)


if __name__ == "__main__":
    key = jax.random.PRNGKey(0)
    kx, kp = jax.random.split(key)
    fdata = jax.random.normal(kx, (BS, N, SEQ), jnp.float32)
    raw = init_params(kp)
    params = fold_params(raw)

    probs, feat = forward(fdata, params)
    jax.block_until_ready((probs, feat))

    assert probs.shape == (BS, NCLS) and feat.shape == (BS, H2)
    assert bool(jnp.all(jnp.isfinite(probs))) and bool(jnp.all(jnp.isfinite(feat)))
    assert bool(jnp.allclose(jnp.sum(probs, axis=1), 1.0, atol=1e-5))

    ref_p, ref_f = reference_forward_np(fdata, raw)
    assert np.allclose(np.asarray(probs), ref_p, rtol=2e-2, atol=2e-2), "probs mismatch vs reference"
    assert np.allclose(np.asarray(feat), ref_f, rtol=2e-2, atol=2e-2), "features mismatch vs reference"

    print("KERNEL_OK")
</pallas_src>

<mosaic_0001>
module attributes {stable_mosaic.version = 11 : i64} {
  func.func @_fused_kernel(%arg0: i32, %arg1: memref<1x16x32xf32, #tpu.memory_space<vmem>>, %arg2: memref<3x32x12xf32, #tpu.memory_space<vmem>>, %arg3: memref<16x12x32xf32, #tpu.memory_space<vmem>>, %arg4: memref<1x32xf32, #tpu.memory_space<vmem>>, %arg5: memref<32x2xf32, #tpu.memory_space<vmem>>, %arg6: memref<1x2xf32, #tpu.memory_space<vmem>>, %arg7: memref<1x1x128xf32, #tpu.memory_space<vmem>>) attributes {dimension_semantics = [#tpu.dimension_semantics<parallel>], iteration_bounds = array<i64: 2>, scalar_prefetch = 0 : i64, scratch_operands = 0 : i64, tpu.core_type = #tpu.core_type<tc>, window_params = [{transform_indices = @transform_0, window_bounds = array<i64: 1, 16, 32>}, {pipeline_mode = #tpu.pipeline_mode<synchronous>, transform_indices = @transform_1, window_bounds = array<i64: 3, 32, 12>}, {pipeline_mode = #tpu.pipeline_mode<synchronous>, transform_indices = @transform_2, window_bounds = array<i64: 16, 12, 32>}, {pipeline_mode = #tpu.pipeline_mode<synchronous>, transform_indices = @transform_3, window_bounds = array<i64: 1, 32>}, {pipeline_mode = #tpu.pipeline_mode<synchronous>, transform_indices = @transform_4, window_bounds = array<i64: 32, 2>}, {pipeline_mode = #tpu.pipeline_mode<synchronous>, transform_indices = @transform_5, window_bounds = array<i64: 1, 2>}, {transform_indices = @transform_6, window_bounds = array<i64: 1, 1, 128>}]} {
    %c0 = arith.constant 0 : index
    %c0_0 = arith.constant 0 : index
    %c0_1 = arith.constant 0 : index
    %0 = vector.load %arg1[%c0, %c0_0, %c0_1] : memref<1x16x32xf32, #tpu.memory_space<vmem>>, vector<1x16x32xf32>
    %1 = vector.shape_cast %0 : vector<1x16x32xf32> to vector<16x32xf32>
    %cst = arith.constant dense<0.000000e+00> : vector<16xf32>
    %2 = vector.multi_reduction <add>, %1, %cst [1] : vector<16x32xf32> to vector<16xf32>
    %3 = vector.shape_cast %2 : vector<16xf32> to vector<16x1xf32>
    %cst_2 = arith.constant 3.200000e+01 : f32
    %4 = vector.broadcast %cst_2 : f32 to vector<16x1xf32>
    %5 = arith.divf %3, %4 : vector<16x1xf32>
    %6 = vector.broadcast %5 : vector<16x1xf32> to vector<16x32xf32>
    %7 = arith.subf %1, %6 : vector<16x32xf32>
    %8 = arith.mulf %7, %7 : vector<16x32xf32>
    %cst_3 = arith.constant dense<0.000000e+00> : vector<16xf32>
    %9 = vector.multi_reduction <add>, %8, %cst_3 [1] : vector<16x32xf32> to vector<16xf32>
    %10 = vector.shape_cast %9 : vector<16xf32> to vector<16x1xf32>
    %11 = math.sqrt %10 : vector<16x1xf32>
    %cst_4 = arith.constant 9.99999997E-7 : f32
    %12 = vector.broadcast %cst_4 : f32 to vector<16x1xf32>
    %13 = arith.addf %11, %12 : vector<16x1xf32>
    %14 = vector.broadcast %13 : vector<16x1xf32> to vector<16x32xf32>
    %15 = arith.divf %7, %14 : vector<16x32xf32>
    %cst_5 = arith.constant dense<0.000000e+00> : vector<16x16xf32>
    %16 = tpu.matmul %15, %15, %cst_5 {dimension_numbers = #tpu.dot_dimension_numbers<[1], [1], [0], [0], [0, 0, 1, 0], [], []>} : vector<16x32xf32>, vector<16x32xf32>, vector<16x16xf32> -> vector<16x16xf32>
    %cst_6 = arith.constant 1.000000e+00 : f32
    %17 = vector.broadcast %cst_6 : f32 to vector<16x16xf32>
    %18 = arith.addf %16, %17 : vector<16x16xf32>
    %cst_7 = arith.constant 5.000000e-01 : f32
    %19 = vector.broadcast %cst_7 : f32 to vector<16x16xf32>
    %20 = arith.mulf %18, %19 : vector<16x16xf32>
    %21 = tpu.iota {dimensions = array<i32: 0>} : vector<16x16xi32>
    %22 = tpu.iota {dimensions = array<i32: 1>} : vector<16x16xi32>
    %23 = arith.cmpi eq, %21, %22 : vector<16x16xi32>
    %24 = arith.extui %23 : vector<16x16xi1> to vector<16x16xi32>
    %25 = arith.sitofp %24 : vector<16x16xi32> to vector<16x16xf32>
    %cst_8 = arith.constant dense<0.000000e+00> : vector<16xf32>
    %26 = vector.multi_reduction <add>, %20, %cst_8 [1] : vector<16x16xf32> to vector<16xf32>
    %27 = vector.shape_cast %26 : vector<16xf32> to vector<16x1xf32>
    %28 = vector.broadcast %27 : vector<16x1xf32> to vector<16x16xf32>
    %29 = arith.mulf %25, %28 : vector<16x16xf32>
    %30 = arith.subf %29, %20 : vector<16x16xf32>
    %cst_9 = arith.constant dense<0xFF800000> : vector<1xf32>
    %31 = vector.multi_reduction <maximumf>, %27, %cst_9 [0] : vector<16x1xf32> to vector<1xf32>
    %32 = vector.shape_cast %31 : vector<1xf32> to vector<1x1xf32>
    %cst_10 = arith.constant 2.000000e+00 : f32
    %33 = vector.broadcast %cst_10 : f32 to vector<1x1xf32>
    %34 = arith.mulf %33, %32 : vector<1x1xf32>
    %35 = vector.broadcast %34 : vector<1x1xf32> to vector<16x16xf32>
    %36 = arith.divf %30, %35 : vector<16x16xf32>
    %cst_11 = arith.constant dense<0.000000e+00> : vector<16x16xf32>
    %37 = tpu.matmul %36, %36, %cst_11 {dimension_numbers = #tpu.dot_dimension_numbers<[1], [0], [0], [1], [0, 0, 1, 1], [], []>} : vector<16x16xf32>, vector<16x16xf32>, vector<16x16xf32> -> vector<16x16xf32>
    %38 = math.absf %37 : vector<16x16xf32>
    %cst_12 = arith.constant dense<0xFF800000> : vector<16xf32>
    %39 = vector.multi_reduction <maximumf>, %38, %cst_12 [1] : vector<16x16xf32> to vector<16xf32>
    %40 = vector.shape_cast %39 : vector<16xf32> to vector<16x1xf32>
    %cst_13 = arith.constant dense<0xFF800000> : vector<1xf32>
    %41 = vector.multi_reduction <maximumf>, %40, %cst_13 [0] : vector<16x1xf32> to vector<1xf32>
    %42 = vector.shape_cast %41 : vector<1xf32> to vector<1x1xf32>
    %cst_14 = arith.constant 1.000000e-30 : f32
    %43 = vector.broadcast %cst_14 : f32 to vector<1x1xf32>
    %44 = arith.addf %42, %43 : vector<1x1xf32>
    %45 = vector.broadcast %44 : vector<1x1xf32> to vector<16x16xf32>
    %46 = arith.divf %37, %45 : vector<16x16xf32>
    %cst_15 = arith.constant dense<0.000000e+00> : vector<16x16xf32>
    %47 = tpu.matmul %46, %46, %cst_15 {dimension_numbers = #tpu.dot_dimension_numbers<[1], [0], [0], [1], [0, 0, 1, 1], [], []>} : vector<16x16xf32>, vector<16x16xf32>, vector<16x16xf32> -> vector<16x16xf32>
    %48 = math.absf %47 : vector<16x16xf32>
    %cst_16 = arith.constant dense<0xFF800000> : vector<16xf32>
    %49 = vector.multi_reduction <maximumf>, %48, %cst_16 [1] : vector<16x16xf32> to vector<16xf32>
    %50 = vector.shape_cast %49 : vector<16xf32> to vector<16x1xf32>
    %cst_17 = arith.constant dense<0xFF800000> : vector<1xf32>
    %51 = vector.multi_reduction <maximumf>, %50, %cst_17 [0] : vector<16x1xf32> to vector<1xf32>
    %52 = vector.shape_cast %51 : vector<1xf32> to vector<1x1xf32>
    %cst_18 = arith.constant 1.000000e-30 : f32
    %53 = vector.broadcast %cst_18 : f32 to vector<1x1xf32>
    %54 = arith.addf %52, %53 : vector<1x1xf32>
    %55 = vector.broadcast %54 : vector<1x1xf32> to vector<16x16xf32>
    %56 = arith.divf %47, %55 : vector<16x16xf32>
    %cst_19 = arith.constant dense<0.000000e+00> : vector<16x16xf32>
    %57 = tpu.matmul %56, %56, %cst_19 {dimension_numbers = #tpu.dot_dimension_numbers<[1], [0], [0], [1], [0, 0, 1, 1], [], []>} : vector<16x16xf32>, vector<16x16xf32>, vector<16x16xf32> -> vector<16x16xf32>
    %58 = math.absf %57 : vector<16x16xf32>
    %cst_20 = arith.constant dense<0xFF800000> : vector<16xf32>
    %59 = vector.multi_reduction <maximumf>, %58, %cst_20 [1] : vector<16x16xf32> to vector<16xf32>
    %60 = vector.shape_cast %59 : vector<16xf32> to vector<16x1xf32>
    %cst_21 = arith.constant dense<0xFF800000> : vector<1xf32>
    %61 = vector.multi_reduction <maximumf>, %60, %cst_21 [0] : vector<16x1xf32> to vector<1xf32>
    %62 = vector.shape_cast %61 : vector<1xf32> to vector<1x1xf32>
    %cst_22 = arith.constant 1.000000e-30 : f32
    %63 = vector.broadcast %cst_22 : f32 to vector<1x1xf32>
    %64 = arith.addf %62, %63 : vector<1x1xf32>
    %65 = vector.broadcast %64 : vector<1x1xf32> to vector<16x16xf32>
    %66 = arith.divf %57, %65 : vector<16x16xf32>
    %cst_23 = arith.constant dense<0.000000e+00> : vector<16x16xf32>
    %67 = tpu.matmul %66, %66, %cst_23 {dimension_numbers = #tpu.dot_dimension_numbers<[1], [0], [0], [1], [0, 0, 1, 1], [], []>} : vector<16x16xf32>, vector<16x16xf32>, vector<16x16xf32> -> vector<16x16xf32>
    %68 = math.absf %67 : vector<16x16xf32>
    %cst_24 = arith.constant dense<0xFF800000> : vector<16xf32>
    %69 = vector.multi_reduction <maximumf>, %68, %cst_24 [1] : vector<16x16xf32> to vector<16xf32>
    %70 = vector.shape_cast %69 : vector<16xf32> to vector<16x1xf32>
    %cst_25 = arith.constant dense<0xFF800000> : vector<1xf32>
    %71 = vector.multi_reduction <maximumf>, %70, %cst_25 [0] : vector<16x1xf32> to vector<1xf32>
    %72 = vector.shape_cast %71 : vector<1xf32> to vector<1x1xf32>
    %cst_26 = arith.constant 1.000000e-30 : f32
    %73 = vector.broadcast %cst_26 : f32 to vector<1x1xf32>
    %74 = arith.addf %72, %73 : vector<1x1xf32>
    %75 = vector.broadcast %74 : vector<1x1xf32> to vector<16x16xf32>
    %76 = arith.divf %67, %75 : vector<16x16xf32>
    %cst_27 = arith.constant dense<0.000000e+00> : vector<16x16xf32>
    %77 = tpu.matmul %76, %76, %cst_27 {dimension_numbers = #tpu.dot_dimension_numbers<[1], [0], [0], [1], [0, 0, 1, 1], [], []>} : vector<16x16xf32>, vector<16x16xf32>, vector<16x16xf32> -> vector<16x16xf32>
    %78 = math.absf %77 : vector<16x16xf32>
    %cst_28 = arith.constant dense<0xFF800000> : vector<16xf32>
    %79 = vector.multi_reduction <maximumf>, %78, %cst_28 [1] : vector<16x16xf32> to vector<16xf32>
    %80 = vector.shape_cast %79 : vector<16xf32> to vector<16x1xf32>
    %cst_29 = arith.constant dense<0xFF800000> : vector<1xf32>
    %81 = vector.multi_reduction <maximumf>, %80, %cst_29 [0] : vector<16x1xf32> to vector<1xf32>
    %82 = vector.shape_cast %81 : vector<1xf32> to vector<1x1xf32>
    %cst_30 = arith.constant 1.000000e-30 : f32
    %83 = vector.broadcast %cst_30 : f32 to vector<1x1xf32>
    %84 = arith.addf %82, %83 : vector<1x1xf32>
    %85 = vector.broadcast %84 : vector<1x1xf32> to vector<16x16xf32>
    %86 = arith.divf %77, %85 : vector<16x16xf32>
    %cst_31 = arith.constant dense<0.000000e+00> : vector<16x16xf32>
    %87 = tpu.matmul %86, %86, %cst_31 {dimension_numbers = #tpu.dot_dimension_numbers<[1], [0], [0], [1], [0, 0, 1, 1], [], []>} : vector<16x16xf32>, vector<16x16xf32>, vector<16x16xf32> -> vector<16x16xf32>
    %88 = math.absf %87 : vector<16x16xf32>
    %cst_32 = arith.constant dense<0xFF800000> : vector<16xf32>
    %89 = vector.multi_reduction <maximumf>, %88, %cst_32 [1] : vector<16x16xf32> to vector<16xf32>
    %90 = vector.shape_cast %89 : vector<16xf32> to vector<16x1xf32>
    %cst_33 = arith.constant dense<0xFF800000> : vector<1xf32>
    %91 = vector.multi_reduction <maximumf>, %90, %cst_33 [0] : vector<16x1xf32> to vector<1xf32>
    %92 = vector.shape_cast %91 : vector<1xf32> to vector<1x1xf32>
    %cst_34 = arith.constant 1.000000e-30 : f32
    %93 = vector.broadcast %cst_34 : f32 to vector<1x1xf32>
    %94 = arith.addf %92, %93 : vector<1x1xf32>
    %95 = vector.broadcast %94 : vector<1x1xf32> to vector<16x16xf32>
    %96 = arith.divf %87, %95 : vector<16x16xf32>
    %97 = tpu.iota {dimensions = array<i32: 1>} : vector<1x16xi32>
    %c1_i32 = arith.constant 1 : i32
    %98 = vector.broadcast %c1_i32 : i32 to vector<1x16xi32>
    %99 = arith.addi %97, %98 : vector<1x16xi32>
    %100 = arith.sitofp %99 : vector<1x16xi32> to vector<1x16xf32>
    %cst_35 = arith.constant dense<0.000000e+00> : vector<1x16xf32>
    %101 = tpu.matmul %100, %96, %cst_35 {dimension_numbers = #tpu.dot_dimension_numbers<[1], [0], [0], [1], [0, 0, 1, 1], [], []>} : vector<1x16xf32>, vector<16x16xf32>, vector<1x16xf32> -> vector<1x16xf32>
    %cst_36 = arith.constant dense<0.000000e+00> : vector<1x16xf32>
    %102 = tpu.matmul %101, %36, %cst_36 {dimension_numbers = #tpu.dot_dimension_numbers<[1], [0], [0], [1], [0, 0, 1, 1], [], []>} : vector<1x16xf32>, vector<16x16xf32>, vector<1x16xf32> -> vector<1x16xf32>
    %103 = arith.mulf %101, %101 : vector<1x16xf32>
    %cst_37 = arith.constant dense<0.000000e+00> : vector<1xf32>
    %104 = vector.multi_reduction <add>, %103, %cst_37 [1] : vector<1x16xf32> to vector<1xf32>
    %105 = vector.shape_cast %104 : vector<1xf32> to vector<1x1xf32>
    %106 = arith.mulf %102, %102 : vector<1x16xf32>
    %cst_38 = arith.constant dense<0.000000e+00> : vector<1xf32>
    %107 = vector.multi_reduction <add>, %106, %cst_38 [1] : vector<1x16xf32> to vector<1xf32>
    %108 = vector.shape_cast %107 : vector<1xf32> to vector<1x1xf32>
    %cst_39 = arith.constant 1.000000e-30 : f32
    %109 = vector.broadcast %cst_39 : f32 to vector<1x1xf32>
    %110 = arith.addf %105, %109 : vector<1x1xf32>
    %111 = arith.divf %108, %110 : vector<1x1xf32>
    %112 = math.sqrt %111 : vector<1x1xf32>
    %113 = arith.mulf %34, %112 : vector<1x1xf32>
    %cst_40 = arith.constant 9.99999997E-7 : f32
    %114 = vector.broadcast %cst_40 : f32 to vector<1x1xf32>
    %115 = arith.maximumf %113, %114 : vector<1x1xf32>
    %cst_41 = arith.constant 2.000000e+00 : f32
    %116 = vector.broadcast %cst_41 : f32 to vector<1x1xf32>
    %117 = arith.divf %116, %115 : vector<1x1xf32>
    %118 = vector.broadcast %117 : vector<1x1xf32> to vector<16x16xf32>
    %119 = arith.mulf %30, %118 : vector<16x16xf32>
    %120 = arith.subf %119, %25 : vector<16x16xf32>
    %cst_42 = arith.constant 2.000000e+00 : f32
    %121 = vector.broadcast %cst_42 : f32 to vector<16x16xf32>
    %122 = arith.mulf %121, %120 : vector<16x16xf32>
    %123 = arith.mulf %122, %120 : vector<16x16xf32>
    %124 = arith.subf %123, %25 : vector<16x16xf32>
    %cst_43 = arith.constant dense<0.000000e+00> : vector<16x32xf32>
    %125 = tpu.matmul %120, %1, %cst_43 {dimension_numbers = #tpu.dot_dimension_numbers<[1], [0], [0], [1], [0, 0, 1, 1], [], []>} : vector<16x16xf32>, vector<16x32xf32>, vector<16x32xf32> -> vector<16x32xf32>
    %cst_44 = arith.constant dense<0.000000e+00> : vector<16x32xf32>
    %126 = tpu.matmul %124, %1, %cst_44 {dimension_numbers = #tpu.dot_dimension_numbers<[1], [0], [0], [1], [0, 0, 1, 1], [], []>} : vector<16x16xf32>, vector<16x32xf32>, vector<16x32xf32> -> vector<16x32xf32>
    %c0_45 = arith.constant 0 : index
    %c0_46 = arith.constant 0 : index
    %c0_47 = arith.constant 0 : index
    %127 = vector.load %arg2[%c0_45, %c0_46, %c0_47] : memref<3x32x12xf32, #tpu.memory_space<vmem>>, vector<1x32x12xf32>
    %128 = vector.shape_cast %127 : vector<1x32x12xf32> to vector<32x12xf32>
    %cst_48 = arith.constant dense<0.000000e+00> : vector<16x12xf32>
    %129 = tpu.matmul %1, %128, %cst_48 {dimension_numbers = #tpu.dot_dimension_numbers<[1], [0], [0], [1], [0, 0, 1, 1], [], []>} : vector<16x32xf32>, vector<32x12xf32>, vector<16x12xf32> -> vector<16x12xf32>
    %c1 = arith.constant 1 : index
    %c0_49 = arith.constant 0 : index
    %c0_50 = arith.constant 0 : index
    %130 = vector.load %arg2[%c1, %c0_49, %c0_50] : memref<3x32x12xf32, #tpu.memory_space<vmem>>, vector<1x32x12xf32>
    %131 = vector.shape_cast %130 : vector<1x32x12xf32> to vector<32x12xf32>
    %cst_51 = arith.constant dense<0.000000e+00> : vector<16x12xf32>
    %132 = tpu.matmul %125, %131, %cst_51 {dimension_numbers = #tpu.dot_dimension_numbers<[1], [0], [0], [1], [0, 0, 1, 1], [], []>} : vector<16x32xf32>, vector<32x12xf32>, vector<16x12xf32> -> vector<16x12xf32>
    %133 = arith.addf %129, %132 : vector<16x12xf32>
    %c2 = arith.constant 2 : index
    %c0_52 = arith.constant 0 : index
    %c0_53 = arith.constant 0 : index
    %134 = vector.load %arg2[%c2, %c0_52, %c0_53] : memref<3x32x12xf32, #tpu.memory_space<vmem>>, vector<1x32x12xf32>
    %135 = vector.shape_cast %134 : vector<1x32x12xf32> to vector<32x12xf32>
    %cst_54 = arith.constant dense<0.000000e+00> : vector<16x12xf32>
    %136 = tpu.matmul %126, %135, %cst_54 {dimension_numbers = #tpu.dot_dimension_numbers<[1], [0], [0], [1], [0, 0, 1, 1], [], []>} : vector<16x32xf32>, vector<32x12xf32>, vector<16x12xf32> -> vector<16x12xf32>
    %137 = arith.addf %133, %136 : vector<16x12xf32>
    %cst_55 = arith.constant 0.000000e+00 : f32
    %138 = vector.broadcast %cst_55 : f32 to vector<16x12xf32>
    %139 = arith.maximumf %137, %138 : vector<16x12xf32>
    %c0_56 = arith.constant 0 : index
    %c0_57 = arith.constant 0 : index
    %140 = vector.load %arg4[%c0_56, %c0_57] : memref<1x32xf32, #tpu.memory_space<vmem>>, vector<1x32xf32>
    %141 = vector.extract_strided_slice %139 {offsets = [0, 0], sizes = [1, 12], strides = [1, 1]} : vector<16x12xf32> to vector<1x12xf32>
    %c0_58 = arith.constant 0 : index
    %c0_59 = arith.constant 0 : index
    %c0_60 = arith.constant 0 : index
    %142 = vector.load %arg3[%c0_58, %c0_59, %c0_60] : memref<16x12x32xf32, #tpu.memory_space<vmem>>, vector<1x12x32xf32>
    %143 = vector.shape_cast %142 : vector<1x12x32xf32> to vector<12x32xf32>
    %cst_61 = arith.constant dense<0.000000e+00> : vector<1x32xf32>
    %144 = tpu.matmul %141, %143, %cst_61 {dimension_numbers = #tpu.dot_dimension_numbers<[1], [0], [0], [1], [0, 0, 1, 1], [], []>} : vector<1x12xf32>, vector<12x32xf32>, vector<1x32xf32> -> vector<1x32xf32>
    %145 = arith.addf %140, %144 : vector<1x32xf32>
    %146 = vector.extract_strided_slice %139 {offsets = [1, 0], sizes = [1, 12], strides = [1, 1]} : vector<16x12xf32> to vector<1x12xf32>
    %c1_62 = arith.constant 1 : index
    %c0_63 = arith.constant 0 : index
    %c0_64 = arith.constant 0 : index
    %147 = vector.load %arg3[%c1_62, %c0_63, %c0_64] : memref<16x12x32xf32, #tpu.memory_space<vmem>>, vector<1x12x32xf32>
    %148 = vector.shape_cast %147 : vector<1x12x32xf32> to vector<12x32xf32>
    %cst_65 = arith.constant dense<0.000000e+00> : vector<1x32xf32>
    %149 = tpu.matmul %146, %148, %cst_65 {dimension_numbers = #tpu.dot_dimension_numbers<[1], [0], [0], [1], [0, 0, 1, 1], [], []>} : vector<1x12xf32>, vector<12x32xf32>, vector<1x32xf32> -> vector<1x32xf32>
    %150 = arith.addf %145, %149 : vector<1x32xf32>
    %151 = vector.extract_strided_slice %139 {offsets = [2, 0], sizes = [1, 12], strides = [1, 1]} : vector<16x12xf32> to vector<1x12xf32>
    %c2_66 = arith.constant 2 : index
    %c0_67 = arith.constant 0 : index
    %c0_68 = arith.constant 0 : index
    %152 = vector.load %arg3[%c2_66, %c0_67, %c0_68] : memref<16x12x32xf32, #tpu.memory_space<vmem>>, vector<1x12x32xf32>
    %153 = vector.shape_cast %152 : vector<1x12x32xf32> to vector<12x32xf32>
    %cst_69 = arith.constant dense<0.000000e+00> : vector<1x32xf32>
    %154 = tpu.matmul %151, %153, %cst_69 {dimension_numbers = #tpu.dot_dimension_numbers<[1], [0], [0], [1], [0, 0, 1, 1], [], []>} : vector<1x12xf32>, vector<12x32xf32>, vector<1x32xf32> -> vector<1x32xf32>
    %155 = arith.addf %150, %154 : vector<1x32xf32>
    %156 = vector.extract_strided_slice %139 {offsets = [3, 0], sizes = [1, 12], strides = [1, 1]} : vector<16x12xf32> to vector<1x12xf32>
    %c3 = arith.constant 3 : index
    %c0_70 = arith.constant 0 : index
    %c0_71 = arith.constant 0 : index
    %157 = vector.load %arg3[%c3, %c0_70, %c0_71] : memref<16x12x32xf32, #tpu.memory_space<vmem>>, vector<1x12x32xf32>
    %158 = vector.shape_cast %157 : vector<1x12x32xf32> to vector<12x32xf32>
    %cst_72 = arith.constant dense<0.000000e+00> : vector<1x32xf32>
    %159 = tpu.matmul %156, %158, %cst_72 {dimension_numbers = #tpu.dot_dimension_numbers<[1], [0], [0], [1], [0, 0, 1, 1], [], []>} : vector<1x12xf32>, vector<12x32xf32>, vector<1x32xf32> -> vector<1x32xf32>
    %160 = arith.addf %155, %159 : vector<1x32xf32>
    %161 = vector.extract_strided_slice %139 {offsets = [4, 0], sizes = [1, 12], strides = [1, 1]} : vector<16x12xf32> to vector<1x12xf32>
    %c4 = arith.constant 4 : index
    %c0_73 = arith.constant 0 : index
    %c0_74 = arith.constant 0 : index
    %162 = vector.load %arg3[%c4, %c0_73, %c0_74] : memref<16x12x32xf32, #tpu.memory_space<vmem>>, vector<1x12x32xf32>
    %163 = vector.shape_cast %162 : vector<1x12x32xf32> to vector<12x32xf32>
    %cst_75 = arith.constant dense<0.000000e+00> : vector<1x32xf32>
    %164 = tpu.matmul %161, %163, %cst_75 {dimension_numbers = #tpu.dot_dimension_numbers<[1], [0], [0], [1], [0, 0, 1, 1], [], []>} : vector<1x12xf32>, vector<12x32xf32>, vector<1x32xf32> -> vector<1x32xf32>
    %165 = arith.addf %160, %164 : vector<1x32xf32>
    %166 = vector.extract_strided_slice %139 {offsets = [5, 0], sizes = [1, 12], strides = [1, 1]} : vector<16x12xf32> to vector<1x12xf32>
    %c5 = arith.constant 5 : index
    %c0_76 = arith.constant 0 : index
    %c0_77 = arith.constant 0 : index
    %167 = vector.load %arg3[%c5, %c0_76, %c0_77] : memref<16x12x32xf32, #tpu.memory_space<vmem>>, vector<1x12x32xf32>
    %168 = vector.shape_cast %167 : vector<1x12x32xf32> to vector<12x32xf32>
    %cst_78 = arith.constant dense<0.000000e+00> : vector<1x32xf32>
    %169 = tpu.matmul %166, %168, %cst_78 {dimension_numbers = #tpu.dot_dimension_numbers<[1], [0], [0], [1], [0, 0, 1, 1], [], []>} : vector<1x12xf32>, vector<12x32xf32>, vector<1x32xf32> -> vector<1x32xf32>
    %170 = arith.addf %165, %169 : vector<1x32xf32>
    %171 = vector.extract_strided_slice %139 {offsets = [6, 0], sizes = [1, 12], strides = [1, 1]} : vector<16x12xf32> to vector<1x12xf32>
    %c6 = arith.constant 6 : index
    %c0_79 = arith.constant 0 : index
    %c0_80 = arith.constant 0 : index
    %172 = vector.load %arg3[%c6, %c0_79, %c0_80] : memref<16x12x32xf32, #tpu.memory_space<vmem>>, vector<1x12x32xf32>
    %173 = vector.shape_cast %172 : vector<1x12x32xf32> to vector<12x32xf32>
    %cst_81 = arith.constant dense<0.000000e+00> : vector<1x32xf32>
    %174 = tpu.matmul %171, %173, %cst_81 {dimension_numbers = #tpu.dot_dimension_numbers<[1], [0], [0], [1], [0, 0, 1, 1], [], []>} : vector<1x12xf32>, vector<12x32xf32>, vector<1x32xf32> -> vector<1x32xf32>
    %175 = arith.addf %170, %174 : vector<1x32xf32>
    %176 = vector.extract_strided_slice %139 {offsets = [7, 0], sizes = [1, 12], strides = [1, 1]} : vector<16x12xf32> to vector<1x12xf32>
    %c7 = arith.constant 7 : index
    %c0_82 = arith.constant 0 : index
    %c0_83 = arith.constant 0 : index
    %177 = vector.load %arg3[%c7, %c0_82, %c0_83] : memref<16x12x32xf32, #tpu.memory_space<vmem>>, vector<1x12x32xf32>
    %178 = vector.shape_cast %177 : vector<1x12x32xf32> to vector<12x32xf32>
    %cst_84 = arith.constant dense<0.000000e+00> : vector<1x32xf32>
    %179 = tpu.matmul %176, %178, %cst_84 {dimension_numbers = #tpu.dot_dimension_numbers<[1], [0], [0], [1], [0, 0, 1, 1], [], []>} : vector<1x12xf32>, vector<12x32xf32>, vector<1x32xf32> -> vector<1x32xf32>
    %180 = arith.addf %175, %179 : vector<1x32xf32>
    %181 = vector.extract_strided_slice %139 {offsets = [8, 0], sizes = [1, 12], strides = [1, 1]} : vector<16x12xf32> to vector<1x12xf32>
    %c8 = arith.constant 8 : index
    %c0_85 = arith.constant 0 : index
    %c0_86 = arith.constant 0 : index
    %182 = vector.load %arg3[%c8, %c0_85, %c0_86] : memref<16x12x32xf32, #tpu.memory_space<vmem>>, vector<1x12x32xf32>
    %183 = vector.shape_cast %182 : vector<1x12x32xf32> to vector<12x32xf32>
    %cst_87 = arith.constant dense<0.000000e+00> : vector<1x32xf32>
    %184 = tpu.matmul %181, %183, %cst_87 {dimension_numbers = #tpu.dot_dimension_numbers<[1], [0], [0], [1], [0, 0, 1, 1], [], []>} : vector<1x12xf32>, vector<12x32xf32>, vector<1x32xf32> -> vector<1x32xf32>
    %185 = arith.addf %180, %184 : vector<1x32xf32>
    %186 = vector.extract_strided_slice %139 {offsets = [9, 0], sizes = [1, 12], strides = [1, 1]} : vector<16x12xf32> to vector<1x12xf32>
    %c9 = arith.constant 9 : index
    %c0_88 = arith.constant 0 : index
    %c0_89 = arith.constant 0 : index
    %187 = vector.load %arg3[%c9, %c0_88, %c0_89] : memref<16x12x32xf32, #tpu.memory_space<vmem>>, vector<1x12x32xf32>
    %188 = vector.shape_cast %187 : vector<1x12x32xf32> to vector<12x32xf32>
    %cst_90 = arith.constant dense<0.000000e+00> : vector<1x32xf32>
    %189 = tpu.matmul %186, %188, %cst_90 {dimension_numbers = #tpu.dot_dimension_numbers<[1], [0], [0], [1], [0, 0, 1, 1], [], []>} : vector<1x12xf32>, vector<12x32xf32>, vector<1x32xf32> -> vector<1x32xf32>
    %190 = arith.addf %185, %189 : vector<1x32xf32>
    %191 = vector.extract_strided_slice %139 {offsets = [10, 0], sizes = [1, 12], strides = [1, 1]} : vector<16x12xf32> to vector<1x12xf32>
    %c10 = arith.constant 10 : index
    %c0_91 = arith.constant 0 : index
    %c0_92 = arith.constant 0 : index
    %192 = vector.load %arg3[%c10, %c0_91, %c0_92] : memref<16x12x32xf32, #tpu.memory_space<vmem>>, vector<1x12x32xf32>
    %193 = vector.shape_cast %192 : vector<1x12x32xf32> to vector<12x32xf32>
    %cst_93 = arith.constant dense<0.000000e+00> : vector<1x32xf32>
    %194 = tpu.matmul %191, %193, %cst_93 {dimension_numbers = #tpu.dot_dimension_numbers<[1], [0], [0], [1], [0, 0, 1, 1], [], []>} : vector<1x12xf32>, vector<12x32xf32>, vector<1x32xf32> -> vector<1x32xf32>
    %195 = arith.addf %190, %194 : vector<1x32xf32>
    %196 = vector.extract_strided_slice %139 {offsets = [11, 0], sizes = [1, 12], strides = [1, 1]} : vector<16x12xf32> to vector<1x12xf32>
    %c11 = arith.constant 11 : index
    %c0_94 = arith.constant 0 : index
    %c0_95 = arith.constant 0 : index
    %197 = vector.load %arg3[%c11, %c0_94, %c0_95] : memref<16x12x32xf32, #tpu.memory_space<vmem>>, vector<1x12x32xf32>
    %198 = vector.shape_cast %197 : vector<1x12x32xf32> to vector<12x32xf32>
    %cst_96 = arith.constant dense<0.000000e+00> : vector<1x32xf32>
    %199 = tpu.matmul %196, %198, %cst_96 {dimension_numbers = #tpu.dot_dimension_numbers<[1], [0], [0], [1], [0, 0, 1, 1], [], []>} : vector<1x12xf32>, vector<12x32xf32>, vector<1x32xf32> -> vector<1x32xf32>
    %200 = arith.addf %195, %199 : vector<1x32xf32>
    %201 = vector.extract_strided_slice %139 {offsets = [12, 0], sizes = [1, 12], strides = [1, 1]} : vector<16x12xf32> to vector<1x12xf32>
    %c12 = arith.constant 12 : index
    %c0_97 = arith.constant 0 : index
    %c0_98 = arith.constant 0 : index
    %202 = vector.load %arg3[%c12, %c0_97, %c0_98] : memref<16x12x32xf32, #tpu.memory_space<vmem>>, vector<1x12x32xf32>
    %203 = vector.shape_cast %202 : vector<1x12x32xf32> to vector<12x32xf32>
    %cst_99 = arith.constant dense<0.000000e+00> : vector<1x32xf32>
    %204 = tpu.matmul %201, %203, %cst_99 {dimension_numbers = #tpu.dot_dimension_numbers<[1], [0], [0], [1], [0, 0, 1, 1], [], []>} : vector<1x12xf32>, vector<12x32xf32>, vector<1x32xf32> -> vector<1x32xf32>
    %205 = arith.addf %200, %204 : vector<1x32xf32>
    %206 = vector.extract_strided_slice %139 {offsets = [13, 0], sizes = [1, 12], strides = [1, 1]} : vector<16x12xf32> to vector<1x12xf32>
    %c13 = arith.constant 13 : index
    %c0_100 = arith.constant 0 : index
    %c0_101 = arith.constant 0 : index
    %207 = vector.load %arg3[%c13, %c0_100, %c0_101] : memref<16x12x32xf32, #tpu.memory_space<vmem>>, vector<1x12x32xf32>
    %208 = vector.shape_cast %207 : vector<1x12x32xf32> to vector<12x32xf32>
    %cst_102 = arith.constant dense<0.000000e+00> : vector<1x32xf32>
    %209 = tpu.matmul %206, %208, %cst_102 {dimension_numbers = #tpu.dot_dimension_numbers<[1], [0], [0], [1], [0, 0, 1, 1], [], []>} : vector<1x12xf32>, vector<12x32xf32>, vector<1x32xf32> -> vector<1x32xf32>
    %210 = arith.addf %205, %209 : vector<1x32xf32>
    %211 = vector.extract_strided_slice %139 {offsets = [14, 0], sizes = [1, 12], strides = [1, 1]} : vector<16x12xf32> to vector<1x12xf32>
    %c14 = arith.constant 14 : index
    %c0_103 = arith.constant 0 : index
    %c0_104 = arith.constant 0 : index
    %212 = vector.load %arg3[%c14, %c0_103, %c0_104] : memref<16x12x32xf32, #tpu.memory_space<vmem>>, vector<1x12x32xf32>
    %213 = vector.shape_cast %212 : vector<1x12x32xf32> to vector<12x32xf32>
    %cst_105 = arith.constant dense<0.000000e+00> : vector<1x32xf32>
    %214 = tpu.matmul %211, %213, %cst_105 {dimension_numbers = #tpu.dot_dimension_numbers<[1], [0], [0], [1], [0, 0, 1, 1], [], []>} : vector<1x12xf32>, vector<12x32xf32>, vector<1x32xf32> -> vector<1x32xf32>
    %215 = arith.addf %210, %214 : vector<1x32xf32>
    %216 = vector.extract_strided_slice %139 {offsets = [15, 0], sizes = [1, 12], strides = [1, 1]} : vector<16x12xf32> to vector<1x12xf32>
    %c15 = arith.constant 15 : index
    %c0_106 = arith.constant 0 : index
    %c0_107 = arith.constant 0 : index
    %217 = vector.load %arg3[%c15, %c0_106, %c0_107] : memref<16x12x32xf32, #tpu.memory_space<vmem>>, vector<1x12x32xf32>
    %218 = vector.shape_cast %217 : vector<1x12x32xf32> to vector<12x32xf32>
    %cst_108 = arith.constant dense<0.000000e+00> : vector<1x32xf32>
    %219 = tpu.matmul %216, %218, %cst_108 {dimension_numbers = #tpu.dot_dimension_numbers<[1], [0], [0], [1], [0, 0, 1, 1], [], []>} : vector<1x12xf32>, vector<12x32xf32>, vector<1x32xf32> -> vector<1x32xf32>
    %220 = arith.addf %215, %219 : vector<1x32xf32>
    %c0_109 = arith.constant 0 : index
    %c0_110 = arith.constant 0 : index
    %221 = vector.load %arg5[%c0_109, %c0_110] : memref<32x2xf32, #tpu.memory_space<vmem>>, vector<32x2xf32>
    %cst_111 = arith.constant dense<0.000000e+00> : vector<1x2xf32>
    %222 = tpu.matmul %220, %221, %cst_111 {dimension_numbers = #tpu.dot_dimension_numbers<[1], [0], [0], [1], [0, 0, 1, 1], [], []>} : vector<1x32xf32>, vector<32x2xf32>, vector<1x2xf32> -> vector<1x2xf32>
    %c0_112 = arith.constant 0 : index
    %c0_113 = arith.constant 0 : index
    %223 = vector.load %arg6[%c0_112, %c0_113] : memref<1x2xf32, #tpu.memory_space<vmem>>, vector<1x2xf32>
    %224 = arith.addf %222, %223 : vector<1x2xf32>
    %cst_114 = arith.constant dense<0xFF800000> : vector<1xf32>
    %225 = vector.multi_reduction <maximumf>, %224, %cst_114 [1] : vector<1x2xf32> to vector<1xf32>
    %226 = vector.shape_cast %225 : vector<1xf32> to vector<1x1xf32>
    %227 = vector.broadcast %226 : vector<1x1xf32> to vector<1x2xf32>
    %228 = arith.subf %224, %227 : vector<1x2xf32>
    %229 = math.exp %228 : vector<1x2xf32>
    %cst_115 = arith.constant dense<0.000000e+00> : vector<1xf32>
    %230 = vector.multi_reduction <add>, %229, %cst_115 [1] : vector<1x2xf32> to vector<1xf32>
    %231 = vector.shape_cast %230 : vector<1xf32> to vector<1x1xf32>
    %232 = vector.broadcast %231 : vector<1x1xf32> to vector<1x2xf32>
    %233 = arith.divf %229, %232 : vector<1x2xf32>
    %cst_116 = arith.constant 0.000000e+00 : f32
    %234 = vector.broadcast %cst_116 : f32 to vector<1x94xf32>
    %235 = tpu.concatenate %233, %220, %234 in 1 : vector<1x2xf32>, vector<1x32xf32>, vector<1x94xf32> -> vector<1x128xf32>
    %c0_117 = arith.constant 0 : index
    %c0_118 = arith.constant 0 : index
    %c0_119 = arith.constant 0 : index
    %236 = vector.load %arg7[%c0_117, %c0_118, %c0_119] : memref<1x1x128xf32, #tpu.memory_space<vmem>>, vector<1x1x128xf32>
    %237 = vector.shape_cast %236 : vector<1x1x128xf32> to vector<1x128xf32>
    %238 = vector.shape_cast %235 : vector<1x128xf32> to vector<1x1x128xf32>
    tpu.vector_store %arg7[%c0_117, %c0_118, %c0_119], %238 {strides = array<i32>} : memref<1x1x128xf32, #tpu.memory_space<vmem>>, vector<1x1x128xf32>,
    return
  }
  func.func @transform_0(%arg0: i32) -> (i32, i32, i32) {
    %c0_i32 = arith.constant 0 : i32
    %c0_i32_0 = arith.constant 0 : i32
    %c0_i32_1 = arith.constant 0 : i32
    return %arg0, %c0_i32, %c0_i32_0 : i32, i32, i32
  }
  func.func @transform_1(%arg0: i32) -> (i32, i32, i32) {
    %c0_i32 = arith.constant 0 : i32
    %c0_i32_0 = arith.constant 0 : i32
    %c0_i32_1 = arith.constant 0 : i32
    %c0_i32_2 = arith.constant 0 : i32
    return %c0_i32, %c0_i32_0, %c0_i32_1 : i32, i32, i32
  }
  func.func @transform_2(%arg0: i32) -> (i32, i32, i32) {
    %c0_i32 = arith.constant 0 : i32
    %c0_i32_0 = arith.constant 0 : i32
    %c0_i32_1 = arith.constant 0 : i32
    %c0_i32_2 = arith.constant 0 : i32
    return %c0_i32, %c0_i32_0, %c0_i32_1 : i32, i32, i32
  }
  func.func @transform_3(%arg0: i32) -> (i32, i32) {
    %c0_i32 = arith.constant 0 : i32
    %c0_i32_0 = arith.constant 0 : i32
    %c0_i32_1 = arith.constant 0 : i32
    return %c0_i32, %c0_i32_0 : i32, i32
  }
  func.func @transform_4(%arg0: i32) -> (i32, i32) {
    %c0_i32 = arith.constant 0 : i32
    %c0_i32_0 = arith.constant 0 : i32
    %c0_i32_1 = arith.constant 0 : i32
    return %c0_i32, %c0_i32_0 : i32, i32
  }
  func.func @transform_5(%arg0: i32) -> (i32, i32) {
    %c0_i32 = arith.constant 0 : i32
    %c0_i32_0 = arith.constant 0 : i32
    %c0_i32_1 = arith.constant 0 : i32
    return %c0_i32, %c0_i32_0 : i32, i32
  }
  func.func @transform_6(%arg0: i32) -> (i32, i32, i32) {
    %c0_i32 = arith.constant 0 : i32
    %c0_i32_0 = arith.constant 0 : i32
    %c0_i32_1 = arith.constant 0 : i32
    return %arg0, %c0_i32, %c0_i32_0 : i32, i32, i32
  }
}

</mosaic_0001>

<llo_original>
// kernel: forward.1
$region0: #{forward.1}
  #allocation0 [shape = 'u32[]', space=smem, size = 0x4, offset = 0x4, fixed_abs, tag = 'smem constant byte address 0x4 - core index']
  #allocation1 [shape = 'u32[144,128]{1,0:T(1,128)}', space=vmem, size = 0x12000, scoped, tag = 'internal scratch']
  %s0 = inlined_call_operand.vmem [shape: f32[2,16,32], index: 0, kind: input, shape index: {}]
  %s1 = inlined_call_operand.vmem [shape: f32[3,32,12], index: 1, kind: input, shape index: {}]
  %s2 = inlined_call_operand.vmem [shape: f32[16,12,32], index: 2, kind: input, shape index: {}]
  %s3 = inlined_call_operand.vmem [shape: f32[1,32], index: 3, kind: input, shape index: {}]
  %s4 = inlined_call_operand.vmem [shape: f32[32,2], index: 4, kind: input, shape index: {}]
  %s5 = inlined_call_operand.vmem [shape: f32[1,2], index: 5, kind: input, shape index: {}]
  %s6 = inlined_call_operand.vmem [shape: f32[2,1,128], index: 6, kind: output, shape index: {}]
  %s7 = sld [smem:[#allocation0]]
  $region57: #{forward.1} parent=0
    _
  %s9 = ssub.s32 1, %s7
  %s10 = scalar_select 0, %s9, %s7
  loop: start=0, step=1, limit=4
  $region2: #{forward.1} parent=0 // loop_pre_header
    _
  $region3: #{forward.1} parent=0 // loop_header
    %s12 = sphi 0, %s16
    %p13 = scmp.ge.s32.totalorder %s12, 4
    %s22 = sphi 0, %s24
    %s25 = sphi 0, %s22
    %s26 = sphi 0, %s25
    %s42 = sphi 0, %s26
    %s46 = sphi 0, %s46
    %s48 = sphi 0, %s46
    %s49 = sphi 0, %s48
    %s63 = sphi 0, %s49
    %s67 = sphi 0, %s67
    %s69 = sphi 0, %s67
    %s70 = sphi 0, %s69
    %s84 = sphi 0, %s70
    %s88 = sphi 0, %s88
    %s90 = sphi 0, %s88
    %s91 = sphi 0, %s90
    %s105 = sphi 0, %s91
    %s109 = sphi 0, %s109
    %s111 = sphi 0, %s109
    %s112 = sphi 0, %s111
    %s126 = sphi 0, %s112
    %s130 = sphi 0, %s130
    %s132 = sphi 0, %s130
    %s133 = sphi 0, %s132
    %s147 = sphi 0, %s133
    %s153 = sphi 0, %s155
    %s156 = sphi 0, %s153
    %s157 = sphi 0, %s156
    %s173 = sphi 0, %s157
  $region4: #{forward.1} parent=0 // loop_header_branch
    %15 = sbr.rel (%p13) target = $region8
  $region5: #{forward.1} parent=0 // loop_body
    %s17 = ssub.s32 %s12, 1
    %s18 = ssub.s32 %s12, 2
    %s19 = sadd.s32 %s12, 1
    %s20 = ssub.s32 %s12, %s19
    %p21 = scmp.eq.s32.totalorder %s20, 0
    %s23 = sadd.s32 %s22, 1
    %s24 = scalar_select %p21, %s22, %s23
    %p27 = pneg %p21
    %p28 = scmp.eq.s32.totalorder %s12, 1
    %p29 = por %p27, %p28
    %p30 = scmp.ne.s32.totalorder %s22, %s25
    %p31 = scmp.eq.s32.totalorder %s12, 0
    %p32 = por %p30, %p31
    %p33 = scmp.ne.s32.totalorder %s22, %s25
    %p34 = scmp.eq.s32.totalorder %s17, 1
    %p35 = por %p33, %p34
    %p36 = scmp.ne.s32.totalorder %s25, %s26
    %p37 = scmp.eq.s32.totalorder %s17, 0
    %p38 = por %p36, %p37
    %p39 = scmp.ne.s32.totalorder %s25, %s26
    %p40 = scmp.eq.s32.totalorder %s18, 1
    %p41 = por %p39, %p40
    %p43 = scmp.ne.s32.totalorder %s26, %s42
    %p44 = scmp.eq.s32.totalorder %s18, 0
    %p45 = por %p43, %p44
    %s47 = sadd.s32 %s46, 1
    %p50 = scmp.eq.s32.totalorder %s12, 1
    %p51 = scmp.ne.s32.totalorder %s46, %s48
    %p52 = scmp.eq.s32.totalorder %s12, 0
    %p53 = por %p51, %p52
    %p54 = scmp.ne.s32.totalorder %s46, %s48
    %p55 = scmp.eq.s32.totalorder %s17, 1
    %p56 = por %p54, %p55
    %p57 = scmp.ne.s32.totalorder %s48, %s49
    %p58 = scmp.eq.s32.totalorder %s17, 0
    %p59 = por %p57, %p58
    %p60 = scmp.ne.s32.totalorder %s48, %s49
    %p61 = scmp.eq.s32.totalorder %s18, 1
    %p62 = por %p60, %p61
    %p64 = scmp.ne.s32.totalorder %s49, %s63
    %p65 = scmp.eq.s32.totalorder %s18, 0
    %p66 = por %p64, %p65
    %s68 = sadd.s32 %s67, 1
    %p71 = scmp.eq.s32.totalorder %s12, 1
    %p72 = scmp.ne.s32.totalorder %s67, %s69
    %p73 = scmp.eq.s32.totalorder %s12, 0
    %p74 = por %p72, %p73
    %p75 = scmp.ne.s32.totalorder %s67, %s69
    %p76 = scmp.eq.s32.totalorder %s17, 1
    %p77 = por %p75, %p76
    %p78 = scmp.ne.s32.totalorder %s69, %s70
    %p79 = scmp.eq.s32.totalorder %s17, 0
    %p80 = por %p78, %p79
    %p81 = scmp.ne.s32.totalorder %s69, %s70
    %p82 = scmp.eq.s32.totalorder %s18, 1
    %p83 = por %p81, %p82
    %p85 = scmp.ne.s32.totalorder %s70, %s84
    %p86 = scmp.eq.s32.totalorder %s18, 0
    %p87 = por %p85, %p86
    %s89 = sadd.s32 %s88, 1
    %p92 = scmp.eq.s32.totalorder %s12, 1
    %p93 = scmp.ne.s32.totalorder %s88, %s90
    %p94 = scmp.eq.s32.totalorder %s12, 0
    %p95 = por %p93, %p94
    %p96 = scmp.ne.s32.totalorder %s88, %s90
    %p97 = scmp.eq.s32.totalorder %s17, 1
    %p98 = por %p96, %p97
    %p99 = scmp.ne.s32.totalorder %s90, %s91
    %p100 = scmp.eq.s32.totalorder %s17, 0
    %p101 = por %p99, %p100
    %p102 = scmp.ne.s32.totalorder %s90, %s91
    %p103 = scmp.eq.s32.totalorder %s18, 1
    %p104 = por %p102, %p103
    %p106 = scmp.ne.s32.totalorder %s91, %s105
    %p107 = scmp.eq.s32.totalorder %s18, 0
    %p108 = por %p106, %p107
    %s110 = sadd.s32 %s109, 1
    %p113 = scmp.eq.s32.totalorder %s12, 1
    %p114 = scmp.ne.s32.totalorder %s109, %s111
    %p115 = scmp.eq.s32.totalorder %s12, 0
    %p116 = por %p114, %p115
    %p117 = scmp.ne.s32.totalorder %s109, %s111
    %p118 = scmp.eq.s32.totalorder %s17, 1
    %p119 = por %p117, %p118
    %p120 = scmp.ne.s32.totalorder %s111, %s112
    %p121 = scmp.eq.s32.totalorder %s17, 0
    %p122 = por %p120, %p121
    %p123 = scmp.ne.s32.totalorder %s111, %s112
    %p124 = scmp.eq.s32.totalorder %s18, 1
    %p125 = por %p123, %p124
    %p127 = scmp.ne.s32.totalorder %s112, %s126
    %p128 = scmp.eq.s32.totalorder %s18, 0
    %p129 = por %p127, %p128
    %s131 = sadd.s32 %s130, 1
    %p134 = scmp.eq.s32.totalorder %s12, 1
    %p135 = scmp.ne.s32.totalorder %s130, %s132
    %p136 = scmp.eq.s32.totalorder %s12, 0
    %p137 = por %p135, %p136
    %p138 = scmp.ne.s32.totalorder %s130, %s132
    %p139 = scmp.eq.s32.totalorder %s17, 1
    %p140 = por %p138, %p139
    %p141 = scmp.ne.s32.totalorder %s132, %s133
    %p142 = scmp.eq.s32.totalorder %s17, 0
    %p143 = por %p141, %p142
    %p144 = scmp.ne.s32.totalorder %s132, %s133
    %p145 = scmp.eq.s32.totalorder %s18, 1
    %p146 = por %p144, %p145
    %p148 = scmp.ne.s32.totalorder %s133, %s147
    %p149 = scmp.eq.s32.totalorder %s18, 0
    %p150 = por %p148, %p149
    %s151 = ssub.s32 %s12, %s19
    %p152 = scmp.eq.s32.totalorder %s151, 0
    %s154 = sadd.s32 %s153, 1
    %s155 = scalar_select %p152, %s153, %s154
    %p158 = pneg %p152
    %p159 = scmp.eq.s32.totalorder %s12, 1
    %p160 = por %p158, %p159
    %p161 = scmp.ne.s32.totalorder %s153, %s156
    %p162 = scmp.eq.s32.totalorder %s12, 0
    %p163 = por %p161, %p162
    %p164 = scmp.ne.s32.totalorder %s153, %s156
    %p165 = scmp.eq.s32.totalorder %s17, 1
    %p166 = por %p164, %p165
    %p167 = scmp.ne.s32.totalorder %s156, %s157
    %p168 = scmp.eq.s32.totalorder %s17, 0
    %p169 = por %p167, %p168
    %p170 = scmp.ne.s32.totalorder %s156, %s157
    %p171 = scmp.eq.s32.totalorder %s18, 1
    %p172 = por %p170, %p171
    %p174 = scmp.ne.s32.totalorder %s157, %s173
    %p175 = scmp.eq.s32.totalorder %s18, 0
    %p176 = por %p174, %p175
    %p177 = scmp.le.s32.totalorder 1, %s12
    %p178 = scmp.lt.s32.totalorder %s12, 3
    %p179 = pnand %p177, %p178
    %p180 = pneg %p179
    // Predicated region
    $region9: #{forward.1} parent=5 // pred_check
      _
    $region10: #{forward.1} parent=5 // pred_check_branch
      %182 = sbr.rel (%p179) target = $region12
    $region11: #{forward.1} parent=5 // pred_region
      %s183 = ssub.s32 %s12, 1
      // Predicated region
      $region13: #{forward.1} parent=11 // pred_check
        %p184 = pneg %p59
      $region14: #{forward.1} parent=11 // pred_check_branch
        %186 = sbr.rel (%p184) target = $region16
      $region15: #{forward.1} parent=11 // pred_region
        _
      $region16: #{forward.1} parent=11 // pred_fallthru
        _
      // Predicated region
      $region17: #{forward.1} parent=11 // pred_check
        %p187 = pneg %p80
      $region18: #{forward.1} parent=11 // pred_check_branch
        %189 = sbr.rel (%p187) target = $region20
      $region19: #{forward.1} parent=11 // pred_region
        _
      $region20: #{forward.1} parent=11 // pred_fallthru
        _
      // Predicated region
      $region21: #{forward.1} parent=11 // pred_check
        %p190 = pneg %p101
      $region22: #{forward.1} parent=11 // pred_check_branch
        %192 = sbr.rel (%p190) target = $region24
      $region23: #{forward.1} parent=11 // pred_region
        _
      $region24: #{forward.1} parent=11 // pred_fallthru
        _
      // Predicated region
      $region25: #{forward.1} parent=11 // pred_check
        %p193 = pneg %p122
      $region26: #{forward.1} parent=11 // pred_check_branch
        %195 = sbr.rel (%p193) target = $region28
      $region27: #{forward.1} parent=11 // pred_region
        _
      $region28: #{forward.1} parent=11 // pred_fallthru
        _
      // Predicated region
      $region29: #{forward.1} parent=11 // pred_check
        %p196 = pneg %p143
      $region30: #{forward.1} parent=11 // pred_check_branch
        %198 = sbr.rel (%p196) target = $region32
      $region31: #{forward.1} parent=11 // pred_region
        _
      $region32: #{forward.1} parent=11 // pred_fallthru
        _
    $region12: #{forward.1} parent=5 // pred_fallthru
      _
    %p199 = scmp.lt.s32.totalorder %s12, 2
    // Predicated region
    $region33: #{forward.1} parent=5 // pred_check
      %p200 = pneg %p199
    $region34: #{forward.1} parent=5 // pred_check_branch
      %202 = sbr.rel (%p200) target = $region36
    $region35: #{forward.1} parent=5 // pred_region
      // Predicated region
      $region37: #{forward.1} parent=35 // pred_check
        %p203 = pneg %p32
      $region38: #{forward.1} parent=35 // pred_check_branch
        %205 = sbr.rel (%p203) target = $region40
      $region39: #{forward.1} parent=35 // pred_region
        %p206 = scmp.lt.s32.totalorder %s12, 1
        %s207 = scalar_select %p206, %s12, 1
        %s208 = smul.addr %s207, 2
        %s209 = smul.addr %s208, 8
        %s210 = scalar_lea.vmem %s0, %s209
      $region40: #{forward.1} parent=35 // pred_fallthru
        _
    $region36: #{forward.1} parent=5 // pred_fallthru
      _
    %p211 = scmp.le.s32.totalorder 1, %s12
    %p212 = scmp.lt.s32.totalorder %s12, 3
    %p213 = pnand %p211, %p212
    %p214 = pneg %p213
    // Predicated region
    $region41: #{forward.1} parent=5 // pred_check
      _
    $region42: #{forward.1} parent=5 // pred_check_branch
      %216 = sbr.rel (%p213) target = $region44
    $region43: #{forward.1} parent=5 // pred_region
      %s217 = ssub.s32 %s12, 1
      %p218 = scmp.lt.s32.totalorder %s17, 1
      %s219 = scalar_select %p218, %s17, 1
      %s220 = smul.addr %s219, 2
      %s221 = smul.addr %s220, 8
      %s222 = scalar_lea.vmem %s0, %s221
      %p223 = pneg %p38
      %p224 = pneg %p35
      %p225 = pneg %p59
      %p226 = pneg %p56
      %p227 = pneg %p80
      %p228 = pneg %p77
      %p229 = pneg %p101
      %p230 = pneg %p98
      %p231 = pneg %p122
      %p232 = pneg %p119
      %p233 = pneg %p143
      %p234 = pneg %p140
      %p235 = pneg %p169
      %p236 = pneg %p166
      %p237 = scmp.lt.s32.totalorder %s17, 1
      %s238 = scalar_select %p237, %s17, 1
      %s239 = scalar_lea.vmem %s6, %s238
      %p240 = scmp.lt.s32.totalorder %s17, 1
      %s241 = scalar_select %p240, %s17, 1
      %s242 = smul.addr %s241, 2
      %s243 = smul.addr %s242, 8
      %s244 = scalar_lea.vmem %s0, %s243
      %p245 = scmp.lt.s32.totalorder %s17, 1
      %s246 = scalar_select %p245, %s17, 1
      %s247 = scalar_lea.vmem %s6, %s246
      %v248 = vld [vmem:[%s244] sm:$0xff]
      %v249 = vld [vmem:[%s244 + $0x8] sm:$0xff]
      %vm250 = vcmask 261120
      %v251 = vsel %vm250, %v248, 0.0
      %252 = vadd.xlane.f32.xlu0 %v251
      %v253 = vpop.xlane.xlu0 %252
      %v254 = vsel %vm250, %v249, 0.0
      %255 = vadd.xlane.f32.xlu0 %v254
      %v256 = vpop.xlane.xlu0 %255
      %v257 = vrcp.pop 32.0
      %v258 = vmul.f32 %v253, %v257
      %v259 = vmul.f32 %v256, %v257
      %v260 = vsub.f32 %v248, %v258
      %v261 = vsub.f32 %v249, %v259
      %v262 = vmul.f32 %v260, %v260
      %v263 = vmul.f32 %v261, %v261
      %v264 = vsel %vm250, %v262, 0.0
      %265 = vadd.xlane.f32.xlu0 %v264
      %v266 = vpop.xlane.xlu0 %265
      %v267 = vsel %vm250, %v263, 0.0
      %268 = vadd.xlane.f32.xlu0 %v267
      %v269 = vpop.xlane.xlu0 %268
      %v270 = vrsqrt.pop %v266
      %v271 = vmul.f32 %v266, %v270
      %vm272 = vcmp.eq.f32.partialorder %v266, inf
      %v273 = vsel %vm272, %v266, %v271
      %vm274 = vcmp.eq.f32.partialorder %v266, 0.0
      %v275 = vand.u32 %v266, 2147483648
      %v276 = vsel %vm274, %v275, %v273
      %v277 = vrsqrt.pop %v269
      %v278 = vmul.f32 %v269, %v277
      %vm279 = vcmp.eq.f32.partialorder %v269, inf
      %v280 = vsel %vm279, %v269, %v278
      %vm281 = vcmp.eq.f32.partialorder %v269, 0.0
      %v282 = vand.u32 %v269, 2147483648
      %v283 = vsel %vm281, %v282, %v280
      %v284 = vadd.f32 %v276, 1e-06
      %v285 = vadd.f32 %v283, 1e-06
      %v286 = vrcp.pop %v284
      %v287 = vmul.f32 %v260, %v286
      %v288 = vrcp.pop %v285
      %v289 = vmul.f32 %v261, %v288
      %v291 = vsel %vm250, %v287, 0
      %v294 = vsel %vm250, %v289, 0
      %296 = vmatprep.subr.mxu0 0.0
      %297 = vmatpush1.xpose.msra.mxu0 %v291
      %298 = vmatprep.subr.mxu0 0.0
      %299 = vmatpush1.xpose.msra.mxu0 %v294
      %300 = vmatprep.subr.mxu0 0.0
      %301 = vmatpush1.xpose.msra.mxu0 0.0
      %302 = vmatprep.subr.mxu0 0.0
      %303 = vmatpush1.xpose.msra.mxu0 0.0
      %304 = vmatprep.subr.mxu0 0.0
      %305 = vmatpush1.xpose.msra.mxu0 0.0
      %306 = vmatprep.subr.mxu0 0.0
      %307 = vmatpush1.xpose.msra.mxu0 0.0
      %308 = vmatprep.subr.mxu0 0.0
      %309 = vmatpush1.xpose.msra.mxu0 0.0
      %310 = vmatprep.subr.mxu0 0.0
      %311 = vmatpush1.xpose.msra.mxu0 0.0
      %312 = vmatprep.subr.mxu0 0.0
      %313 = vmatpush1.xpose.msra.mxu0 0.0
      %314 = vmatprep.subr.mxu0 0.0
      %315 = vmatpush1.xpose.msra.mxu0 0.0
      %316 = vmatprep.subr.mxu0 0.0
      %317 = vmatpush1.xpose.msra.mxu0 0.0
      %318 = vmatprep.subr.mxu0 0.0
      %319 = vmatpush1.xpose.msra.mxu0 0.0
      %320 = vmatprep.subr.mxu0 0.0
      %321 = vmatpush1.xpose.msra.mxu0 0.0
      %322 = vmatprep.subr.mxu0 0.0
      %323 = vmatpush1.xpose.msra.mxu0 0.0
      %324 = vmatprep.subr.mxu0 0.0
      %325 = vmatpush1.xpose.msra.mxu0 0.0
      %326 = vmatprep.subr.mxu0 0.0
      %327 = vmatpush1.xpose.msra.mxu0 0.0
      %328 = vmatprep.subr.mxu0 0.0
      %329 = vmatpush1.xpose.msra.mxu0 0.0
      %330 = vmatprep.subr.mxu0 0.0
      %331 = vmatpush1.xpose.msra.mxu0 0.0
      %332 = vmatprep.subr.mxu0 0.0
      %333 = vmatpush1.xpose.msra.mxu0 0.0
      %334 = vmatprep.subr.mxu0 0.0
      %335 = vmatpush1.xpose.msra.mxu0 0.0
      %336 = vmatprep.subr.mxu0 0.0
      %337 = vmatpush1.xpose.msra.mxu0 0.0
      %338 = vmatprep.subr.mxu0 0.0
      %339 = vmatpush1.xpose.msra.mxu0 0.0
      %340 = vmatprep.subr.mxu0 0.0
      %341 = vmatpush1.xpose.msra.mxu0 0.0
      %342 = vmatprep.subr.mxu0 0.0
      %343 = vmatpush1.xpose.msra.mxu0 0.0
      %344 = vmatprep.subr.mxu0 0.0
      %345 = vmatpush1.xpose.msra.mxu0 0.0
      %346 = vmatprep.subr.mxu0 0.0
      %347 = vmatpush1.xpose.msra.mxu0 0.0
      %348 = vmatprep.subr.mxu0 0.0
      %349 = vmatpush1.xpose.msra.mxu0 0.0
      %350 = vmatprep.subr.mxu0 0.0
      %351 = vmatpush1.xpose.msra.mxu0 0.0
      %352 = vmatprep.subr.mxu0 0.0
      %353 = vmatpush1.xpose.msra.mxu0 0.0
      %354 = vmatprep.subr.mxu0 0.0
      %355 = vmatpush1.xpose.msra.mxu0 0.0
      %356 = vmatprep.subr.mxu0 0.0
      %357 = vmatpush1.xpose.msra.mxu0 0.0
      %358 = vmatprep.subr.mxu0 0.0
      %359 = vmatpush1.xpose.msra.mxu0 0.0
      %360 = vmatprep.mubr.f32.mxu0 0.0
      %361 = vmatmul.mubr.f32.gmra.mrb[0].mxu0 %v291
      %v362 = vpop.f32.mrb[0].mxu0
      %v363 = vadd.f32 1.0, %v362
      %v364 = vpop.f32.mrb[0].mxu0
      %365 = vmatprep.mubr.f32.mxu0 0.0
      %366 = vmatmul.mubr.f32.gmra.mrb[0].mxu0 %v294
      %v367 = vpop.f32.mrb[0].mxu0
      %v368 = vadd.f32 1.0, %v367
      %v369 = vpop.f32.mrb[0].mxu0
      %370 = vdwg.mxu0
      %v371 = vmul.f32 %v363, 0.5
      %v372 = vmul.f32 %v368, 0.5
      %v373 = vlaneseq
      %v374 = vshrl.u32 %v373, 7
      %v375 = vadd.s32 %v374, 8
      %v376 = vlaneseq
      %v377 = vand.u32 %v376, 127
      %vm378 = vcmp.eq.s32.totalorder %v374, %v377
      %vm379 = vcmp.eq.s32.totalorder %v375, %v377
      %v380 = vsel %vm378, 1, 0
      %v381 = vsel %vm379, 1, 0
      %v382 = vcvt.s32.f32 %v380
      %v383 = vcvt.s32.f32 %v381
      %vm384 = vcmask 130048
      %v385 = vsel %vm384, %v371, 0.0
      %386 = vadd.xlane.f32.xlu0 %v385
      %v387 = vpop.xlane.xlu0 %386
      %v388 = vsel %vm384, %v372, 0.0
      %389 = vadd.xlane.f32.xlu0 %v388
      %v390 = vpop.xlane.xlu0 %389
      %v391 = vmul.f32 %v382, %v387
      %v392 = vmul.f32 %v383, %v390
      %v393 = vsub.f32 %v391, %v371
      %v394 = vsub.f32 %v392, %v372
      %v395 = vmax.f32 %v387, %v390
      %v396 = vrot.slane %v395, 4
      %v397 = vmax.f32 %v395, %v396
      %v398 = vrot.slane %v397, 2
      %v399 = vmax.f32 %v397, %v398
      %v400 = vrot.slane %v399, 1
      %v401 = vmax.f32 %v399, %v400
      %v402 = vmul.f32 %v401, 2.0
      %v403 = vrcp.pop %v402
      %v404 = vmul.f32 %v393, %v403
      %v405 = vmul.f32 %v394, %v403
      %v407 = vsel %vm384, %v404, 0
      %v410 = vsel %vm384, %v405, 0
      %412 = vmatprep.subr.mxu0 0.0
      %413 = vmatpush1.msra.mxu0 %v404
      %414 = vmatprep.subr.mxu0 0.0
      %415 = vmatpush1.msra.mxu0 %v405
      %416 = vmatprep.subr.mxu0 0.0
      %417 = vmatpush1.msra.mxu0 0.0
      %418 = vmatprep.subr.mxu0 0.0
      %419 = vmatpush1.msra.mxu0 0.0
      %420 = vmatprep.subr.mxu0 0.0
      %421 = vmatpush1.msra.mxu0 0.0
      %422 = vmatprep.subr.mxu0 0.0
      %423 = vmatpush1.msra.mxu0 0.0
      %424 = vmatprep.subr.mxu0 0.0
      %425 = vmatpush1.msra.mxu0 0.0
      %426 = vmatprep.subr.mxu0 0.0
      %427 = vmatpush1.msra.mxu0 0.0
      %428 = vmatprep.subr.mxu0 0.0
      %429 = vmatpush1.msra.mxu0 0.0
      %430 = vmatprep.subr.mxu0 0.0
      %431 = vmatpush1.msra.mxu0 0.0
      %432 = vmatprep.subr.mxu0 0.0
      %433 = vmatpush1.msra.mxu0 0.0
      %434 = vmatprep.subr.mxu0 0.0
      %435 = vmatpush1.msra.mxu0 0.0
      %436 = vmatprep.subr.mxu0 0.0
      %437 = vmatpush1.msra.mxu0 0.0
      %438 = vmatprep.subr.mxu0 0.0
      %439 = vmatpush1.msra.mxu0 0.0
      %440 = vmatprep.subr.mxu0 0.0
      %441 = vmatpush1.msra.mxu0 0.0
      %442 = vmatprep.subr.mxu0 0.0
      %443 = vmatpush1.msra.mxu0 0.0
      %444 = vmatprep.subr.mxu0 0.0
      %445 = vmatpush1.msra.mxu0 0.0
      %446 = vmatprep.subr.mxu0 0.0
      %447 = vmatpush1.msra.mxu0 0.0
      %448 = vmatprep.subr.mxu0 0.0
      %449 = vmatpush1.msra.mxu0 0.0
      %450 = vmatprep.subr.mxu0 0.0
      %451 = vmatpush1.msra.mxu0 0.0
      %452 = vmatprep.subr.mxu0 0.0
      %453 = vmatpush1.msra.mxu0 0.0
      %454 = vmatprep.subr.mxu0 0.0
      %455 = vmatpush1.msra.mxu0 0.0
      %456 = vmatprep.subr.mxu0 0.0
      %457 = vmatpush1.msra.mxu0 0.0
      %458 = vmatprep.subr.mxu0 0.0
      %459 = vmatpush1.msra.mxu0 0.0
      %460 = vmatprep.subr.mxu0 0.0
      %461 = vmatpush1.msra.mxu0 0.0
      %462 = vmatprep.subr.mxu0 0.0
      %463 = vmatpush1.msra.mxu0 0.0
      %464 = vmatprep.subr.mxu0 0.0
      %465 = vmatpush1.msra.mxu0 0.0
      %466 = vmatprep.subr.mxu0 0.0
      %467 = vmatpush1.msra.mxu0 0.0
      %468 = vmatprep.subr.mxu0 0.0
      %469 = vmatpush1.msra.mxu0 0.0
      %470 = vmatprep.subr.mxu0 0.0
      %471 = vmatpush1.msra.mxu0 0.0
      %472 = vmatprep.subr.mxu0 0.0
      %473 = vmatpush1.msra.mxu0 0.0
      %474 = vmatprep.subr.mxu0 0.0
      %475 = vmatpush1.msra.mxu0 0.0
      %476 = vmatprep.mubr.f32.mxu0 0.0
      %477 = vmatmul.mubr.f32.gmra.mrb[0].mxu0 %v407
      %v478 = vpop.f32.mrb[0].mxu0
      %v479 = vadd.f32 0.0, %v478
      %v480 = vpop.f32.mrb[0].mxu0
      %481 = vmatprep.mubr.f32.mxu0 0.0
      %482 = vmatmul.mubr.f32.gmra.mrb[0].mxu0 %v410
      %v483 = vpop.f32.mrb[0].mxu0
      %v484 = vadd.f32 0.0, %v483
      %v485 = vpop.f32.mrb[0].mxu0
      %486 = vdwg.mxu0
      %v487 = vand.u32 2147483647, %v479
      %v488 = vand.u32 2147483647, %v484
      %v489 = vsel %vm384, %v487, -inf
      %490 = vmax.xlane.f32.xlu0 %v489
      %v491 = vpop.xlane.xlu0 %490
      %v492 = vsel %vm384, %v488, -inf
      %493 = vmax.xlane.f32.xlu0 %v492
      %v494 = vpop.xlane.xlu0 %493
      %v495 = vmax.f32 %v491, %v494
      %v496 = vrot.slane %v495, 4
      %v497 = vmax.f32 %v495, %v496
      %v498 = vrot.slane %v497, 2
      %v499 = vmax.f32 %v497, %v498
      %v500 = vrot.slane %v499, 1
      %v501 = vmax.f32 %v499, %v500
      %v502 = vadd.f32 %v501, 1e-30
      %v503 = vrcp.pop %v502
      %v504 = vmul.f32 %v479, %v503
      %v505 = vmul.f32 %v484, %v503
      %v507 = vsel %vm384, %v504, 0
      %v510 = vsel %vm384, %v505, 0
      %512 = vmatprep.subr.mxu0 0.0
      %513 = vmatpush1.msra.mxu0 %v504
      %514 = vmatprep.subr.mxu0 0.0
      %515 = vmatpush1.msra.mxu0 %v505
      %516 = vmatprep.subr.mxu0 0.0
      %517 = vmatpush1.msra.mxu0 0.0
      %518 = vmatprep.subr.mxu0 0.0
      %519 = vmatpush1.msra.mxu0 0.0
      %520 = vmatprep.subr.mxu0 0.0
      %521 = vmatpush1.msra.mxu0 0.0
      %522 = vmatprep.subr.mxu0 0.0
      %523 = vmatpush1.msra.mxu0 0.0
      %524 = vmatprep.subr.mxu0 0.0
      %525 = vmatpush1.msra.mxu0 0.0
      %526 = vmatprep.subr.mxu0 0.0
      %527 = vmatpush1.msra.mxu0 0.0
      %528 = vmatprep.subr.mxu0 0.0
      %529 = vmatpush1.msra.mxu0 0.0
      %530 = vmatprep.subr.mxu0 0.0
      %531 = vmatpush1.msra.mxu0 0.0
      %532 = vmatprep.subr.mxu0 0.0
      %533 = vmatpush1.msra.mxu0 0.0
      %534 = vmatprep.subr.mxu0 0.0
      %535 = vmatpush1.msra.mxu0 0.0
      %536 = vmatprep.subr.mxu0 0.0
      %537 = vmatpush1.msra.mxu0 0.0
      %538 = vmatprep.subr.mxu0 0.0
      %539 = vmatpush1.msra.mxu0 0.0
      %540 = vmatprep.subr.mxu0 0.0
      %541 = vmatpush1.msra.mxu0 0.0
      %542 = vmatprep.subr.mxu0 0.0
      %543 = vmatpush1.msra.mxu0 0.0
      %544 = vmatprep.subr.mxu0 0.0
      %545 = vmatpush1.msra.mxu0 0.0
      %546 = vmatprep.subr.mxu0 0.0
      %547 = vmatpush1.msra.mxu0 0.0
      %548 = vmatprep.subr.mxu0 0.0
      %549 = vmatpush1.msra.mxu0 0.0
      %550 = vmatprep.subr.mxu0 0.0
      %551 = vmatpush1.msra.mxu0 0.0
      %552 = vmatprep.subr.mxu0 0.0
      %553 = vmatpush1.msra.mxu0 0.0
      %554 = vmatprep.subr.mxu0 0.0
      %555 = vmatpush1.msra.mxu0 0.0
      %556 = vmatprep.subr.mxu0 0.0
      %557 = vmatpush1.msra.mxu0 0.0
      %558 = vmatprep.subr.mxu0 0.0
      %559 = vmatpush1.msra.mxu0 0.0
      %560 = vmatprep.subr.mxu0 0.0
      %561 = vmatpush1.msra.mxu0 0.0
      %562 = vmatprep.subr.mxu0 0.0
      %563 = vmatpush1.msra.mxu0 0.0
      %564 = vmatprep.subr.mxu0 0.0
      %565 = vmatpush1.msra.mxu0 0.0
      %566 = vmatprep.subr.mxu0 0.0
      %567 = vmatpush1.msra.mxu0 0.0
      %568 = vmatprep.subr.mxu0 0.0
      %569 = vmatpush1.msra.mxu0 0.0
      %570 = vmatprep.subr.mxu0 0.0
      %571 = vmatpush1.msra.mxu0 0.0
      %572 = vmatprep.subr.mxu0 0.0
      %573 = vmatpush1.msra.mxu0 0.0
      %574 = vmatprep.subr.mxu0 0.0
      %575 = vmatpush1.msra.mxu0 0.0
      %576 = vmatprep.mubr.f32.mxu0 0.0
      %577 = vmatmul.mubr.f32.gmra.mrb[0].mxu0 %v507
      %v578 = vpop.f32.mrb[0].mxu0
      %v579 = vadd.f32 0.0, %v578
      %v580 = vpop.f32.mrb[0].mxu0
      %581 = vmatprep.mubr.f32.mxu0 0.0
      %582 = vmatmul.mubr.f32.gmra.mrb[0].mxu0 %v510
      %v583 = vpop.f32.mrb[0].mxu0
      %v584 = vadd.f32 0.0, %v583
      %v585 = vpop.f32.mrb[0].mxu0
      %586 = vdwg.mxu0
      %v587 = vand.u32 2147483647, %v579
      %v588 = vand.u32 2147483647, %v584
      %v589 = vsel %vm384, %v587, -inf
      %590 = vmax.xlane.f32.xlu0 %v589
      %v591 = vpop.xlane.xlu0 %590
      %v592 = vsel %vm384, %v588, -inf
      %593 = vmax.xlane.f32.xlu0 %v592
      %v594 = vpop.xlane.xlu0 %593
      %v595 = vmax.f32 %v591, %v594
      %v596 = vrot.slane %v595, 4
      %v597 = vmax.f32 %v595, %v596
      %v598 = vrot.slane %v597, 2
      %v599 = vmax.f32 %v597, %v598
      %v600 = vrot.slane %v599, 1
      %v601 = vmax.f32 %v599, %v600
      %v602 = vadd.f32 %v601, 1e-30
      %v603 = vrcp.pop %v602
      %v604 = vmul.f32 %v579, %v603
      %v605 = vmul.f32 %v584, %v603
      %v607 = vsel %vm384, %v604, 0
      %v610 = vsel %vm384, %v605, 0
      %612 = vmatprep.subr.mxu0 0.0
      %613 = vmatpush1.msra.mxu0 %v604
      %614 = vmatprep.subr.mxu0 0.0
      %615 = vmatpush1.msra.mxu0 %v605
      %616 = vmatprep.subr.mxu0 0.0
      %617 = vmatpush1.msra.mxu0 0.0
      %618 = vmatprep.subr.mxu0 0.0
      %619 = vmatpush1.msra.mxu0 0.0
      %620 = vmatprep.subr.mxu0 0.0
      %621 = vmatpush1.msra.mxu0 0.0
      %622 = vmatprep.subr.mxu0 0.0
      %623 = vmatpush1.msra.mxu0 0.0
      %624 = vmatprep.subr.mxu0 0.0
      %625 = vmatpush1.msra.mxu0 0.0
      %626 = vmatprep.subr.mxu0 0.0
      %627 = vmatpush1.msra.mxu0 0.0
      %628 = vmatprep.subr.mxu0 0.0
      %629 = vmatpush1.msra.mxu0 0.0
      %630 = vmatprep.subr.mxu0 0.0
      %631 = vmatpush1.msra.mxu0 0.0
      %632 = vmatprep.subr.mxu0 0.0
      %633 = vmatpush1.msra.mxu0 0.0
      %634 = vmatprep.subr.mxu0 0.0
      %635 = vmatpush1.msra.mxu0 0.0
      %636 = vmatprep.subr.mxu0 0.0
      %637 = vmatpush1.msra.mxu0 0.0
      %638 = vmatprep.subr.mxu0 0.0
      %639 = vmatpush1.msra.mxu0 0.0
      %640 = vmatprep.subr.mxu0 0.0
      %641 = vmatpush1.msra.mxu0 0.0
      %642 = vmatprep.subr.mxu0 0.0
      %643 = vmatpush1.msra.mxu0 0.0
      %644 = vmatprep.subr.mxu0 0.0
      %645 = vmatpush1.msra.mxu0 0.0
      %646 = vmatprep.subr.mxu0 0.0
      %647 = vmatpush1.msra.mxu0 0.0
      %648 = vmatprep.subr.mxu0 0.0
      %649 = vmatpush1.msra.mxu0 0.0
      %650 = vmatprep.subr.mxu0 0.0
      %651 = vmatpush1.msra.mxu0 0.0
      %652 = vmatprep.subr.mxu0 0.0
      %653 = vmatpush1.msra.mxu0 0.0
      %654 = vmatprep.subr.mxu0 0.0
      %655 = vmatpush1.msra.mxu0 0.0
      %656 = vmatprep.subr.mxu0 0.0
      %657 = vmatpush1.msra.mxu0 0.0
      %658 = vmatprep.subr.mxu0 0.0
      %659 = vmatpush1.msra.mxu0 0.0
      %660 = vmatprep.subr.mxu0 0.0
      %661 = vmatpush1.msra.mxu0 0.0
      %662 = vmatprep.subr.mxu0 0.0
      %663 = vmatpush1.msra.mxu0 0.0
      %664 = vmatprep.subr.mxu0 0.0
      %665 = vmatpush1.msra.mxu0 0.0
      %666 = vmatprep.subr.mxu0 0.0
      %667 = vmatpush1.msra.mxu0 0.0
      %668 = vmatprep.subr.mxu0 0.0
      %669 = vmatpush1.msra.mxu0 0.0
      %670 = vmatprep.subr.mxu0 0.0
      %671 = vmatpush1.msra.mxu0 0.0
      %672 = vmatprep.subr.mxu0 0.0
      %673 = vmatpush1.msra.mxu0 0.0
      %674 = vmatprep.subr.mxu0 0.0
      %675 = vmatpush1.msra.mxu0 0.0
      %676 = vmatprep.mubr.f32.mxu0 0.0
      %677 = vmatmul.mubr.f32.gmra.mrb[0].mxu0 %v607
      %v678 = vpop.f32.mrb[0].mxu0
      %v679 = vadd.f32 0.0, %v678
      %v680 = vpop.f32.mrb[0].mxu0
      %681 = vmatprep.mubr.f32.mxu0 0.0
      %682 = vmatmul.mubr.f32.gmra.mrb[0].mxu0 %v610
      %v683 = vpop.f32.mrb[0].mxu0
      %v684 = vadd.f32 0.0, %v683
      %v685 = vpop.f32.mrb[0].mxu0
      %686 = vdwg.mxu0
      %v687 = vand.u32 2147483647, %v679
      %v688 = vand.u32 2147483647, %v684
      %v689 = vsel %vm384, %v687, -inf
      %690 = vmax.xlane.f32.xlu0 %v689
      %v691 = vpop.xlane.xlu0 %690
      %v692 = vsel %vm384, %v688, -inf
      %693 = vmax.xlane.f32.xlu0 %v692
      %v694 = vpop.xlane.xlu0 %693
      %v695 = vmax.f32 %v691, %v694
      %v696 = vrot.slane %v695, 4
      %v697 = vmax.f32 %v695, %v696
      %v698 = vrot.slane %v697, 2
      %v699 = vmax.f32 %v697, %v698
      %v700 = vrot.slane %v699, 1
      %v701 = vmax.f32 %v699, %v700
      %v702 = vadd.f32 %v701, 1e-30
      %v703 = vrcp.pop %v702
      %v704 = vmul.f32 %v679, %v703
      %v705 = vmul.f32 %v684, %v703
      %v707 = vsel %vm384, %v704, 0
      %v710 = vsel %vm384, %v705, 0
      %712 = vmatprep.subr.mxu0 0.0
      %713 = vmatpush1.msra.mxu0 %v704
      %714 = vmatprep.subr.mxu0 0.0
      %715 = vmatpush1.msra.mxu0 %v705
      %716 = vmatprep.subr.mxu0 0.0
      %717 = vmatpush1.msra.mxu0 0.0
      %718 = vmatprep.subr.mxu0 0.0
      %719 = vmatpush1.msra.mxu0 0.0
      %720 = vmatprep.subr.mxu0 0.0
      %721 = vmatpush1.msra.mxu0 0.0
      %722 = vmatprep.subr.mxu0 0.0
      %723 = vmatpush1.msra.mxu0 0.0
      %724 = vmatprep.subr.mxu0 0.0
      %725 = vmatpush1.msra.mxu0 0.0
      %726 = vmatprep.subr.mxu0 0.0
      %727 = vmatpush1.msra.mxu0 0.0
      %728 = vmatprep.subr.mxu0 0.0
      %729 = vmatpush1.msra.mxu0 0.0
      %730 = vmatprep.subr.mxu0 0.0
      %731 = vmatpush1.msra.mxu0 0.0
      %732 = vmatprep.subr.mxu0 0.0
      %733 = vmatpush1.msra.mxu0 0.0
      %734 = vmatprep.subr.mxu0 0.0
      %735 = vmatpush1.msra.mxu0 0.0
      %736 = vmatprep.subr.mxu0 0.0
      %737 = vmatpush1.msra.mxu0 0.0
      %738 = vmatprep.subr.mxu0 0.0
      %739 = vmatpush1.msra.mxu0 0.0
      %740 = vmatprep.subr.mxu0 0.0
      %741 = vmatpush1.msra.mxu0 0.0
      %742 = vmatprep.subr.mxu0 0.0
      %743 = vmatpush1.msra.mxu0 0.0
      %744 = vmatprep.subr.mxu0 0.0
      %745 = vmatpush1.msra.mxu0 0.0
      %746 = vmatprep.subr.mxu0 0.0
      %747 = vmatpush1.msra.mxu0 0.0
      %748 = vmatprep.subr.mxu0 0.0
      %749 = vmatpush1.msra.mxu0 0.0
      %750 = vmatprep.subr.mxu0 0.0
      %751 = vmatpush1.msra.mxu0 0.0
      %752 = vmatprep.subr.mxu0 0.0
      %753 = vmatpush1.msra.mxu0 0.0
      %754 = vmatprep.subr.mxu0 0.0
      %755 = vmatpush1.msra.mxu0 0.0
      %756 = vmatprep.subr.mxu0 0.0
      %757 = vmatpush1.msra.mxu0 0.0
      %758 = vmatprep.subr.mxu0 0.0
      %759 = vmatpush1.msra.mxu0 0.0
      %760 = vmatprep.subr.mxu0 0.0
      %761 = vmatpush1.msra.mxu0 0.0
      %762 = vmatprep.subr.mxu0 0.0
      %763 = vmatpush1.msra.mxu0 0.0
      %764 = vmatprep.subr.mxu0 0.0
      %765 = vmatpush1.msra.mxu0 0.0
      %766 = vmatprep.subr.mxu0 0.0
      %767 = vmatpush1.msra.mxu0 0.0
      %768 = vmatprep.subr.mxu0 0.0
      %769 = vmatpush1.msra.mxu0 0.0
      %770 = vmatprep.subr.mxu0 0.0
      %771 = vmatpush1.msra.mxu0 0.0
      %772 = vmatprep.subr.mxu0 0.0
      %773 = vmatpush1.msra.mxu0 0.0
      %774 = vmatprep.subr.mxu0 0.0
      %775 = vmatpush1.msra.mxu0 0.0
      %776 = vmatprep.mubr.f32.mxu0 0.0
      %777 = vmatmul.mubr.f32.gmra.mrb[0].mxu0 %v707
      %v778 = vpop.f32.mrb[0].mxu0
      %v779 = vadd.f32 0.0, %v778
      %v780 = vpop.f32.mrb[0].mxu0
      %781 = vmatprep.mubr.f32.mxu0 0.0
      %782 = vmatmul.mubr.f32.gmra.mrb[0].mxu0 %v710
      %v783 = vpop.f32.mrb[0].mxu0
      %v784 = vadd.f32 0.0, %v783
      %v785 = vpop.f32.mrb[0].mxu0
      %786 = vdwg.mxu0
      %v787 = vand.u32 2147483647, %v779
      %v788 = vand.u32 2147483647, %v784
      %v789 = vsel %vm384, %v787, -inf
      %790 = vmax.xlane.f32.xlu0 %v789
      %v791 = vpop.xlane.xlu0 %790
      %v792 = vsel %vm384, %v788, -inf
      %793 = vmax.xlane.f32.xlu0 %v792
      %v794 = vpop.xlane.xlu0 %793
      %v795 = vmax.f32 %v791, %v794
      %v796 = vrot.slane %v795, 4
      %v797 = vmax.f32 %v795, %v796
      %v798 = vrot.slane %v797, 2
      %v799 = vmax.f32 %v797, %v798
      %v800 = vrot.slane %v799, 1
      %v801 = vmax.f32 %v799, %v800
      %v802 = vadd.f32 %v801, 1e-30
      %v803 = vrcp.pop %v802
      %v804 = vmul.f32 %v779, %v803
      %v805 = vmul.f32 %v784, %v803
      %v807 = vsel %vm384, %v804, 0
      %v810 = vsel %vm384, %v805, 0
      %812 = vmatprep.subr.mxu0 0.0
      %813 = vmatpush1.msra.mxu0 %v804
      %814 = vmatprep.subr.mxu0 0.0
      %815 = vmatpush1.msra.mxu0 %v805
      %816 = vmatprep.subr.mxu0 0.0
      %817 = vmatpush1.msra.mxu0 0.0
      %818 = vmatprep.subr.mxu0 0.0
      %819 = vmatpush1.msra.mxu0 0.0
      %820 = vmatprep.subr.mxu0 0.0
      %821 = vmatpush1.msra.mxu0 0.0
      %822 = vmatprep.subr.mxu0 0.0
      %823 = vmatpush1.msra.mxu0 0.0
      %824 = vmatprep.subr.mxu0 0.0
      %825 = vmatpush1.msra.mxu0 0.0
      %826 = vmatprep.subr.mxu0 0.0
      %827 = vmatpush1.msra.mxu0 0.0
      %828 = vmatprep.subr.mxu0 0.0
      %829 = vmatpush1.msra.mxu0 0.0
      %830 = vmatprep.subr.mxu0 0.0
      %831 = vmatpush1.msra.mxu0 0.0
      %832 = vmatprep.subr.mxu0 0.0
      %833 = vmatpush1.msra.mxu0 0.0
      %834 = vmatprep.subr.mxu0 0.0
      %835 = vmatpush1.msra.mxu0 0.0
      %836 = vmatprep.subr.mxu0 0.0
      %837 = vmatpush1.msra.mxu0 0.0
      %838 = vmatprep.subr.mxu0 0.0
      %839 = vmatpush1.msra.mxu0 0.0
      %840 = vmatprep.subr.mxu0 0.0
      %841 = vmatpush1.msra.mxu0 0.0
      %842 = vmatprep.subr.mxu0 0.0
      %843 = vmatpush1.msra.mxu0 0.0
      %844 = vmatprep.subr.mxu0 0.0
      %845 = vmatpush1.msra.mxu0 0.0
      %846 = vmatprep.subr.mxu0 0.0
      %847 = vmatpush1.msra.mxu0 0.0
      %848 = vmatprep.subr.mxu0 0.0
      %849 = vmatpush1.msra.mxu0 0.0
      %850 = vmatprep.subr.mxu0 0.0
      %851 = vmatpush1.msra.mxu0 0.0
      %852 = vmatprep.subr.mxu0 0.0
      %853 = vmatpush1.msra.mxu0 0.0
      %854 = vmatprep.subr.mxu0 0.0
      %855 = vmatpush1.msra.mxu0 0.0
      %856 = vmatprep.subr.mxu0 0.0
      %857 = vmatpush1.msra.mxu0 0.0
      %858 = vmatprep.subr.mxu0 0.0
      %859 = vmatpush1.msra.mxu0 0.0
      %860 = vmatprep.subr.mxu0 0.0
      %861 = vmatpush1.msra.mxu0 0.0
      %862 = vmatprep.subr.mxu0 0.0
      %863 = vmatpush1.msra.mxu0 0.0
      %864 = vmatprep.subr.mxu0 0.0
      %865 = vmatpush1.msra.mxu0 0.0
      %866 = vmatprep.subr.mxu0 0.0
      %867 = vmatpush1.msra.mxu0 0.0
      %868 = vmatprep.subr.mxu0 0.0
      %869 = vmatpush1.msra.mxu0 0.0
      %870 = vmatprep.subr.mxu0 0.0
      %871 = vmatpush1.msra.mxu0 0.0
      %872 = vmatprep.subr.mxu0 0.0
      %873 = vmatpush1.msra.mxu0 0.0
      %874 = vmatprep.subr.mxu0 0.0
      %875 = vmatpush1.msra.mxu0 0.0
      %876 = vmatprep.mubr.f32.mxu0 0.0
      %877 = vmatmul.mubr.f32.gmra.mrb[0].mxu0 %v807
      %v878 = vpop.f32.mrb[0].mxu0
      %v879 = vadd.f32 0.0, %v878
      %v880 = vpop.f32.mrb[0].mxu0
      %881 = vmatprep.mubr.f32.mxu0 0.0
      %882 = vmatmul.mubr.f32.gmra.mrb[0].mxu0 %v810
      %v883 = vpop.f32.mrb[0].mxu0
      %v884 = vadd.f32 0.0, %v883
      %v885 = vpop.f32.mrb[0].mxu0
      %886 = vdwg.mxu0
      %v887 = vand.u32 2147483647, %v879
      %v888 = vand.u32 2147483647, %v884
      %v889 = vsel %vm384, %v887, -inf
      %890 = vmax.xlane.f32.xlu0 %v889
      %v891 = vpop.xlane.xlu0 %890
      %v892 = vsel %vm384, %v888, -inf
      %893 = vmax.xlane.f32.xlu0 %v892
      %v894 = vpop.xlane.xlu0 %893
      %v895 = vmax.f32 %v891, %v894
      %v896 = vrot.slane %v895, 4
      %v897 = vmax.f32 %v895, %v896
      %v898 = vrot.slane %v897, 2
      %v899 = vmax.f32 %v897, %v898
      %v900 = vrot.slane %v899, 1
      %v901 = vmax.f32 %v899, %v900
      %v902 = vadd.f32 %v901, 1e-30
      %v903 = vrcp.pop %v902
      %v904 = vmul.f32 %v879, %v903
      %v905 = vmul.f32 %v884, %v903
      %v907 = vsel %vm384, %v904, 0
      %v910 = vsel %vm384, %v905, 0
      %912 = vmatprep.subr.mxu0 0.0
      %913 = vmatpush1.msra.mxu0 %v904
      %914 = vmatprep.subr.mxu0 0.0
      %915 = vmatpush1.msra.mxu0 %v905
      %916 = vmatprep.subr.mxu0 0.0
      %917 = vmatpush1.msra.mxu0 0.0
      %918 = vmatprep.subr.mxu0 0.0
      %919 = vmatpush1.msra.mxu0 0.0
      %920 = vmatprep.subr.mxu0 0.0
      %921 = vmatpush1.msra.mxu0 0.0
      %922 = vmatprep.subr.mxu0 0.0
      %923 = vmatpush1.msra.mxu0 0.0
      %924 = vmatprep.subr.mxu0 0.0
      %925 = vmatpush1.msra.mxu0 0.0
      %926 = vmatprep.subr.mxu0 0.0
      %927 = vmatpush1.msra.mxu0 0.0
      %928 = vmatprep.subr.mxu0 0.0
      %929 = vmatpush1.msra.mxu0 0.0
      %930 = vmatprep.subr.mxu0 0.0
      %931 = vmatpush1.msra.mxu0 0.0
      %932 = vmatprep.subr.mxu0 0.0
      %933 = vmatpush1.msra.mxu0 0.0
      %934 = vmatprep.subr.mxu0 0.0
      %935 = vmatpush1.msra.mxu0 0.0
      %936 = vmatprep.subr.mxu0 0.0
      %937 = vmatpush1.msra.mxu0 0.0
      %938 = vmatprep.subr.mxu0 0.0
      %939 = vmatpush1.msra.mxu0 0.0
      %940 = vmatprep.subr.mxu0 0.0
      %941 = vmatpush1.msra.mxu0 0.0
      %942 = vmatprep.subr.mxu0 0.0
      %943 = vmatpush1.msra.mxu0 0.0
      %944 = vmatprep.subr.mxu0 0.0
      %945 = vmatpush1.msra.mxu0 0.0
      %946 = vmatprep.subr.mxu0 0.0
      %947 = vmatpush1.msra.mxu0 0.0
      %948 = vmatprep.subr.mxu0 0.0
      %949 = vmatpush1.msra.mxu0 0.0
      %950 = vmatprep.subr.mxu0 0.0
      %951 = vmatpush1.msra.mxu0 0.0
      %952 = vmatprep.subr.mxu0 0.0
      %953 = vmatpush1.msra.mxu0 0.0
      %954 = vmatprep.subr.mxu0 0.0
      %955 = vmatpush1.msra.mxu0 0.0
      %956 = vmatprep.subr.mxu0 0.0
      %957 = vmatpush1.msra.mxu0 0.0
      %958 = vmatprep.subr.mxu0 0.0
      %959 = vmatpush1.msra.mxu0 0.0
      %960 = vmatprep.subr.mxu0 0.0
      %961 = vmatpush1.msra.mxu0 0.0
      %962 = vmatprep.subr.mxu0 0.0
      %963 = vmatpush1.msra.mxu0 0.0
      %964 = vmatprep.subr.mxu0 0.0
      %965 = vmatpush1.msra.mxu0 0.0
      %966 = vmatprep.subr.mxu0 0.0
      %967 = vmatpush1.msra.mxu0 0.0
      %968 = vmatprep.subr.mxu0 0.0
      %969 = vmatpush1.msra.mxu0 0.0
      %970 = vmatprep.subr.mxu0 0.0
      %971 = vmatpush1.msra.mxu0 0.0
      %972 = vmatprep.subr.mxu0 0.0
      %973 = vmatpush1.msra.mxu0 0.0
      %974 = vmatprep.subr.mxu0 0.0
      %975 = vmatpush1.msra.mxu0 0.0
      %976 = vmatprep.mubr.f32.mxu0 0.0
      %977 = vmatmul.mubr.f32.gmra.mrb[0].mxu0 %v907
      %v978 = vpop.f32.mrb[0].mxu0
      %v979 = vadd.f32 0.0, %v978
      %v980 = vpop.f32.mrb[0].mxu0
      %981 = vmatprep.mubr.f32.mxu0 0.0
      %982 = vmatmul.mubr.f32.gmra.mrb[0].mxu0 %v910
      %v983 = vpop.f32.mrb[0].mxu0
      %v984 = vadd.f32 0.0, %v983
      %v985 = vpop.f32.mrb[0].mxu0
      %986 = vdwg.mxu0
      %v987 = vand.u32 2147483647, %v979
      %v988 = vand.u32 2147483647, %v984
      %v989 = vsel %vm384, %v987, -inf
      %990 = vmax.xlane.f32.xlu0 %v989
      %v991 = vpop.xlane.xlu0 %990
      %v992 = vsel %vm384, %v988, -inf
      %993 = vmax.xlane.f32.xlu0 %v992
      %v994 = vpop.xlane.xlu0 %993
      %v995 = vmax.f32 %v991, %v994
      %v996 = vrot.slane %v995, 4
      %v997 = vmax.f32 %v995, %v996
      %v998 = vrot.slane %v997, 2
      %v999 = vmax.f32 %v997, %v998
      %v1000 = vrot.slane %v999, 1
      %v1001 = vmax.f32 %v999, %v1000
      %v1002 = vadd.f32 %v1001, 1e-30
      %v1003 = vrcp.pop %v1002
      %v1004 = vmul.f32 %v979, %v1003
      %v1005 = vmul.f32 %v984, %v1003
      %v1006 = vadd.s32 %v377, 1
      %v1007 = vcvt.s32.f32 %v1006
      %v1009 = vsel %vm384, %v1007, 0
      %1011 = vmatprep.subr.mxu0 0.0
      %1012 = vmatpush1.msra.mxu0 %v1004
      %1013 = vmatprep.subr.mxu0 0.0
      %1014 = vmatpush1.msra.mxu0 %v1005
      %1015 = vmatprep.subr.mxu0 0.0
      %1016 = vmatpush1.msra.mxu0 0.0
      %1017 = vmatprep.subr.mxu0 0.0
      %1018 = vmatpush1.msra.mxu0 0.0
      %1019 = vmatprep.subr.mxu0 0.0
      %1020 = vmatpush1.msra.mxu0 0.0
      %1021 = vmatprep.subr.mxu0 0.0
      %1022 = vmatpush1.msra.mxu0 0.0
      %1023 = vmatprep.subr.mxu0 0.0
      %1024 = vmatpush1.msra.mxu0 0.0
      %1025 = vmatprep.subr.mxu0 0.0
      %1026 = vmatpush1.msra.mxu0 0.0
      %1027 = vmatprep.subr.mxu0 0.0
      %1028 = vmatpush1.msra.mxu0 0.0
      %1029 = vmatprep.subr.mxu0 0.0
      %1030 = vmatpush1.msra.mxu0 0.0
      %1031 = vmatprep.subr.mxu0 0.0
      %1032 = vmatpush1.msra.mxu0 0.0
      %1033 = vmatprep.subr.mxu0 0.0
      %1034 = vmatpush1.msra.mxu0 0.0
      %1035 = vmatprep.subr.mxu0 0.0
      %1036 = vmatpush1.msra.mxu0 0.0
      %1037 = vmatprep.subr.mxu0 0.0
      %1038 = vmatpush1.msra.mxu0 0.0
      %1039 = vmatprep.subr.mxu0 0.0
      %1040 = vmatpush1.msra.mxu0 0.0
      %1041 = vmatprep.subr.mxu0 0.0
      %1042 = vmatpush1.msra.mxu0 0.0
      %1043 = vmatprep.subr.mxu0 0.0
      %1044 = vmatpush1.msra.mxu0 0.0
      %1045 = vmatprep.subr.mxu0 0.0
      %1046 = vmatpush1.msra.mxu0 0.0
      %1047 = vmatprep.subr.mxu0 0.0
      %1048 = vmatpush1.msra.mxu0 0.0
      %1049 = vmatprep.subr.mxu0 0.0
      %1050 = vmatpush1.msra.mxu0 0.0
      %1051 = vmatprep.subr.mxu0 0.0
      %1052 = vmatpush1.msra.mxu0 0.0
      %1053 = vmatprep.subr.mxu0 0.0
      %1054 = vmatpush1.msra.mxu0 0.0
      %1055 = vmatprep.subr.mxu0 0.0
      %1056 = vmatpush1.msra.mxu0 0.0
      %1057 = vmatprep.subr.mxu0 0.0
      %1058 = vmatpush1.msra.mxu0 0.0
      %1059 = vmatprep.subr.mxu0 0.0
      %1060 = vmatpush1.msra.mxu0 0.0
      %1061 = vmatprep.subr.mxu0 0.0
      %1062 = vmatpush1.msra.mxu0 0.0
      %1063 = vmatprep.subr.mxu0 0.0
      %1064 = vmatpush1.msra.mxu0 0.0
      %1065 = vmatprep.subr.mxu0 0.0
      %1066 = vmatpush1.msra.mxu0 0.0
      %1067 = vmatprep.subr.mxu0 0.0
      %1068 = vmatpush1.msra.mxu0 0.0
      %1069 = vmatprep.subr.mxu0 0.0
      %1070 = vmatpush1.msra.mxu0 0.0
      %1071 = vmatprep.subr.mxu0 0.0
      %1072 = vmatpush1.msra.mxu0 0.0
      %1073 = vmatprep.subr.mxu0 0.0
      %1074 = vmatpush1.msra.mxu0 0.0
      %1075 = vmatprep.mubr.f32.mxu0 0.0
      %1076 = vmatmul.mubr.f32.gmra.mrb[0].mxu0 %v1009
      %v1077 = vpop.f32.mrb[0].mxu0
      %v1078 = vadd.f32 0.0, %v1077
      %v1079 = vpop.f32.mrb[0].mxu0
      %1080 = vdwg.mxu0
      %v1082 = vsel %vm384, %v1078, 0
      %1084 = vmatprep.subr.mxu0 0.0
      %1085 = vmatpush1.msra.mxu0 %v404
      %1086 = vmatprep.subr.mxu0 0.0
      %1087 = vmatpush1.msra.mxu0 %v405
      %1088 = vmatprep.subr.mxu0 0.0
      %1089 = vmatpush1.msra.mxu0 0.0
      %1090 = vmatprep.subr.mxu0 0.0
      %1091 = vmatpush1.msra.mxu0 0.0
      %1092 = vmatprep.subr.mxu0 0.0
      %1093 = vmatpush1.msra.mxu0 0.0
      %1094 = vmatprep.subr.mxu0 0.0
      %1095 = vmatpush1.msra.mxu0 0.0
      %1096 = vmatprep.subr.mxu0 0.0
      %1097 = vmatpush1.msra.mxu0 0.0
      %1098 = vmatprep.subr.mxu0 0.0
      %1099 = vmatpush1.msra.mxu0 0.0
      %1100 = vmatprep.subr.mxu0 0.0
      %1101 = vmatpush1.msra.mxu0 0.0
      %1102 = vmatprep.subr.mxu0 0.0
      %1103 = vmatpush1.msra.mxu0 0.0
      %1104 = vmatprep.subr.mxu0 0.0
      %1105 = vmatpush1.msra.mxu0 0.0
      %1106 = vmatprep.subr.mxu0 0.0
      %1107 = vmatpush1.msra.mxu0 0.0
      %1108 = vmatprep.subr.mxu0 0.0
      %1109 = vmatpush1.msra.mxu0 0.0
      %1110 = vmatprep.subr.mxu0 0.0
      %1111 = vmatpush1.msra.mxu0 0.0
      %1112 = vmatprep.subr.mxu0 0.0
      %1113 = vmatpush1.msra.mxu0 0.0
      %1114 = vmatprep.subr.mxu0 0.0
      %1115 = vmatpush1.msra.mxu0 0.0
      %1116 = vmatprep.subr.mxu0 0.0
      %1117 = vmatpush1.msra.mxu0 0.0
      %1118 = vmatprep.subr.mxu0 0.0
      %1119 = vmatpush1.msra.mxu0 0.0
      %1120 = vmatprep.subr.mxu0 0.0
      %1121 = vmatpush1.msra.mxu0 0.0
      %1122 = vmatprep.subr.mxu0 0.0
      %1123 = vmatpush1.msra.mxu0 0.0
      %1124 = vmatprep.subr.mxu0 0.0
      %1125 = vmatpush1.msra.mxu0 0.0
      %1126 = vmatprep.subr.mxu0 0.0
      %1127 = vmatpush1.msra.mxu0 0.0
      %1128 = vmatprep.subr.mxu0 0.0
      %1129 = vmatpush1.msra.mxu0 0.0
      %1130 = vmatprep.subr.mxu0 0.0
      %1131 = vmatpush1.msra.mxu0 0.0
      %1132 = vmatprep.subr.mxu0 0.0
      %1133 = vmatpush1.msra.mxu0 0.0
      %1134 = vmatprep.subr.mxu0 0.0
      %1135 = vmatpush1.msra.mxu0 0.0
      %1136 = vmatprep.subr.mxu0 0.0
      %1137 = vmatpush1.msra.mxu0 0.0
      %1138 = vmatprep.subr.mxu0 0.0
      %1139 = vmatpush1.msra.mxu0 0.0
      %1140 = vmatprep.subr.mxu0 0.0
      %1141 = vmatpush1.msra.mxu0 0.0
      %1142 = vmatprep.subr.mxu0 0.0
      %1143 = vmatpush1.msra.mxu0 0.0
      %1144 = vmatprep.subr.mxu0 0.0
      %1145 = vmatpush1.msra.mxu0 0.0
      %1146 = vmatprep.subr.mxu0 0.0
      %1147 = vmatpush1.msra.mxu0 0.0
      %1148 = vmatprep.mubr.f32.mxu0 0.0
      %1149 = vmatmul.mubr.f32.gmra.mrb[0].mxu0 %v1082
      %v1150 = vpop.f32.mrb[0].mxu0
      %v1151 = vadd.f32 0.0, %v1150
      %v1152 = vpop.f32.mrb[0].mxu0
      %1153 = vdwg.mxu0
      %v1154 = vmul.f32 %v1078, %v1078
      %vm1155 = vcmask 122880
      %v1156 = vsel %vm1155, %v1154, 0.0
      %1157 = vadd.xlane.f32.xlu0 %v1156
      %v1158 = vpop.xlane.xlu0 %1157
      %v1159 = vmul.f32 %v1151, %v1151
      %v1160 = vsel %vm1155, %v1159, 0.0
      %1161 = vadd.xlane.f32.xlu0 %v1160
      %v1162 = vpop.xlane.xlu0 %1161
      %v1163 = vadd.f32 %v1158, 1e-30
      %v1164 = vrcp.pop %v1163
      %v1165 = vmul.f32 %v1162, %v1164
      %v1166 = vrsqrt.pop %v1165
      %v1167 = vmul.f32 %v1165, %v1166
      %vm1168 = vcmp.eq.f32.partialorder %v1165, inf
      %v1169 = vsel %vm1168, %v1165, %v1167
      %vm1170 = vcmp.eq.f32.partialorder %v1165, 0.0
      %v1171 = vand.u32 %v1165, 2147483648
      %v1172 = vsel %vm1170, %v1171, %v1169
      %v1173 = vmul.f32 %v402, %v1172
      %v1174 = vmax.f32 %v1173, 1e-06
      %v1175 = vrcp.pop %v1174
      %v1176 = vmul.f32 2.0, %v1175
      %v1177 = vlaneseq
      %v1178 = vshrl.u32 %v1177, 7
      %v1179 = vsub.s32 0, %v1178
      %v1180 = vrot.slane %v1176, %v1179
      %v1181 = vmul.f32 %v393, %v1180
      %v1182 = vmul.f32 %v394, %v1180
      %v1183 = vsub.f32 %v1181, %v382
      %v1184 = vsub.f32 %v1182, %v383
      %v1185 = vmul.f32 %v1183, 2.0
      %v1186 = vmul.f32 %v1184, 2.0
      %v1187 = vmul.f32 %v1185, %v1183
      %v1188 = vmul.f32 %v1186, %v1184
      %v1189 = vsub.f32 %v1187, %v382
      %v1190 = vsub.f32 %v1188, %v383
      %v1192 = vsel %vm384, %v1183, 0
      %v1195 = vsel %vm384, %v1184, 0
      %1197 = vmatprep.subr.mxu0 0.0
      %1198 = vmatpush1.msra.mxu0 %v248
      %1199 = vmatprep.subr.mxu0 0.0
      %1200 = vmatpush1.msra.mxu0 %v249
      %1201 = vmatprep.subr.mxu0 0.0
      %1202 = vmatpush1.msra.mxu0 0.0
      %1203 = vmatprep.subr.mxu0 0.0
      %1204 = vmatpush1.msra.mxu0 0.0
      %1205 = vmatprep.subr.mxu0 0.0
      %1206 = vmatpush1.msra.mxu0 0.0
      %1207 = vmatprep.subr.mxu0 0.0
      %1208 = vmatpush1.msra.mxu0 0.0
      %1209 = vmatprep.subr.mxu0 0.0
      %1210 = vmatpush1.msra.mxu0 0.0
      %1211 = vmatprep.subr.mxu0 0.0
      %1212 = vmatpush1.msra.mxu0 0.0
      %1213 = vmatprep.subr.mxu0 0.0
      %1214 = vmatpush1.msra.mxu0 0.0
      %1215 = vmatprep.subr.mxu0 0.0
      %1216 = vmatpush1.msra.mxu0 0.0
      %1217 = vmatprep.subr.mxu0 0.0
      %1218 = vmatpush1.msra.mxu0 0.0
      %1219 = vmatprep.subr.mxu0 0.0
      %1220 = vmatpush1.msra.mxu0 0.0
      %1221 = vmatprep.subr.mxu0 0.0
      %1222 = vmatpush1.msra.mxu0 0.0
      %1223 = vmatprep.subr.mxu0 0.0
      %1224 = vmatpush1.msra.mxu0 0.0
      %1225 = vmatprep.subr.mxu0 0.0
      %1226 = vmatpush1.msra.mxu0 0.0
      %1227 = vmatprep.subr.mxu0 0.0
      %1228 = vmatpush1.msra.mxu0 0.0
      %1229 = vmatprep.subr.mxu0 0.0
      %1230 = vmatpush1.msra.mxu0 0.0
      %1231 = vmatprep.subr.mxu0 0.0
      %1232 = vmatpush1.msra.mxu0 0.0
      %1233 = vmatprep.subr.mxu0 0.0
      %1234 = vmatpush1.msra.mxu0 0.0
      %1235 = vmatprep.subr.mxu0 0.0
      %1236 = vmatpush1.msra.mxu0 0.0
      %1237 = vmatprep.subr.mxu0 0.0
      %1238 = vmatpush1.msra.mxu0 0.0
      %1239 = vmatprep.subr.mxu0 0.0
      %1240 = vmatpush1.msra.mxu0 0.0
      %1241 = vmatprep.subr.mxu0 0.0
      %1242 = vmatpush1.msra.mxu0 0.0
      %1243 = vmatprep.subr.mxu0 0.0
      %1244 = vmatpush1.msra.mxu0 0.0
      %1245 = vmatprep.subr.mxu0 0.0
      %1246 = vmatpush1.msra.mxu0 0.0
      %1247 = vmatprep.subr.mxu0 0.0
      %1248 = vmatpush1.msra.mxu0 0.0
      %1249 = vmatprep.subr.mxu0 0.0
      %1250 = vmatpush1.msra.mxu0 0.0
      %1251 = vmatprep.subr.mxu0 0.0
      %1252 = vmatpush1.msra.mxu0 0.0
      %1253 = vmatprep.subr.mxu0 0.0
      %1254 = vmatpush1.msra.mxu0 0.0
      %1255 = vmatprep.subr.mxu0 0.0
      %1256 = vmatpush1.msra.mxu0 0.0
      %1257 = vmatprep.subr.mxu0 0.0
      %1258 = vmatpush1.msra.mxu0 0.0
      %1259 = vmatprep.subr.mxu0 0.0
      %1260 = vmatpush1.msra.mxu0 0.0
      %1261 = vmatprep.mubr.f32.mxu0 0.0
      %1262 = vmatmul.mubr.f32.gmra.mrb[0].mxu0 %v1192
      %v1263 = vpop.f32.mrb[0].mxu0
      %v1264 = vadd.f32 0.0, %v1263
      %v1265 = vpop.f32.mrb[0].mxu0
      %1266 = vmatprep.mubr.f32.mxu0 0.0
      %1267 = vmatmul.mubr.f32.gmra.mrb[0].mxu0 %v1195
      %v1268 = vpop.f32.mrb[0].mxu0
      %v1269 = vadd.f32 0.0, %v1268
      %v1270 = vpop.f32.mrb[0].mxu0
      %1271 = vdwg.mxu0
      %v1273 = vsel %vm384, %v1189, 0
      %v1276 = vsel %vm384, %v1190, 0
      %1278 = vmatprep.subr.mxu0 0.0
      %1279 = vmatpush1.msra.mxu0 %v248
      %1280 = vmatprep.subr.mxu0 0.0
      %1281 = vmatpush1.msra.mxu0 %v249
      %1282 = vmatprep.subr.mxu0 0.0
      %1283 = vmatpush1.msra.mxu0 0.0
      %1284 = vmatprep.subr.mxu0 0.0
      %1285 = vmatpush1.msra.mxu0 0.0
      %1286 = vmatprep.subr.mxu0 0.0
      %1287 = vmatpush1.msra.mxu0 0.0
      %1288 = vmatprep.subr.mxu0 0.0
      %1289 = vmatpush1.msra.mxu0 0.0
      %1290 = vmatprep.subr.mxu0 0.0
      %1291 = vmatpush1.msra.mxu0 0.0
      %1292 = vmatprep.subr.mxu0 0.0
      %1293 = vmatpush1.msra.mxu0 0.0
      %1294 = vmatprep.subr.mxu0 0.0
      %1295 = vmatpush1.msra.mxu0 0.0
      %1296 = vmatprep.subr.mxu0 0.0
      %1297 = vmatpush1.msra.mxu0 0.0
      %1298 = vmatprep.subr.mxu0 0.0
      %1299 = vmatpush1.msra.mxu0 0.0
      %1300 = vmatprep.subr.mxu0 0.0
      %1301 = vmatpush1.msra.mxu0 0.0
      %1302 = vmatprep.subr.mxu0 0.0
      %1303 = vmatpush1.msra.mxu0 0.0
      %1304 = vmatprep.subr.mxu0 0.0
      %1305 = vmatpush1.msra.mxu0 0.0
      %1306 = vmatprep.subr.mxu0 0.0
      %1307 = vmatpush1.msra.mxu0 0.0
      %1308 = vmatprep.subr.mxu0 0.0
      %1309 = vmatpush1.msra.mxu0 0.0
      %1310 = vmatprep.subr.mxu0 0.0
      %1311 = vmatpush1.msra.mxu0 0.0
      %1312 = vmatprep.subr.mxu0 0.0
      %1313 = vmatpush1.msra.mxu0 0.0
      %1314 = vmatprep.subr.mxu0 0.0
      %1315 = vmatpush1.msra.mxu0 0.0
      %1316 = vmatprep.subr.mxu0 0.0
      %1317 = vmatpush1.msra.mxu0 0.0
      %1318 = vmatprep.subr.mxu0 0.0
      %1319 = vmatpush1.msra.mxu0 0.0
      %1320 = vmatprep.subr.mxu0 0.0
      %1321 = vmatpush1.msra.mxu0 0.0
      %1322 = vmatprep.subr.mxu0 0.0
      %1323 = vmatpush1.msra.mxu0 0.0
      %1324 = vmatprep.subr.mxu0 0.0
      %1325 = vmatpush1.msra.mxu0 0.0
      %1326 = vmatprep.subr.mxu0 0.0
      %1327 = vmatpush1.msra.mxu0 0.0
      %1328 = vmatprep.subr.mxu0 0.0
      %1329 = vmatpush1.msra.mxu0 0.0
      %1330 = vmatprep.subr.mxu0 0.0
      %1331 = vmatpush1.msra.mxu0 0.0
      %1332 = vmatprep.subr.mxu0 0.0
      %1333 = vmatpush1.msra.mxu0 0.0
      %1334 = vmatprep.subr.mxu0 0.0
      %1335 = vmatpush1.msra.mxu0 0.0
      %1336 = vmatprep.subr.mxu0 0.0
      %1337 = vmatpush1.msra.mxu0 0.0
      %1338 = vmatprep.subr.mxu0 0.0
      %1339 = vmatpush1.msra.mxu0 0.0
      %1340 = vmatprep.subr.mxu0 0.0
      %1341 = vmatpush1.msra.mxu0 0.0
      %1342 = vmatprep.mubr.f32.mxu0 0.0
      %1343 = vmatmul.mubr.f32.gmra.mrb[0].mxu0 %v1273
      %v1344 = vpop.f32.mrb[0].mxu0
      %v1345 = vadd.f32 0.0, %v1344
      %v1346 = vpop.f32.mrb[0].mxu0
      %1347 = vmatprep.mubr.f32.mxu0 0.0
      %1348 = vmatmul.mubr.f32.gmra.mrb[0].mxu0 %v1276
      %v1349 = vpop.f32.mrb[0].mxu0
      %v1350 = vadd.f32 0.0, %v1349
      %v1351 = vpop.f32.mrb[0].mxu0
      %1352 = vdwg.mxu0
      %v1353 = vld [vmem:[%s1] sm:$0xff]
      %v1354 = vld [vmem:[%s1 + $0x8] sm:$0xff]
      %v1355 = vld [vmem:[%s1 + $0x10] sm:$0xff]
      %v1356 = vld [vmem:[%s1 + $0x18] sm:$0xff]
      %s1357 = scalar_lea.vmem %s1, 32
      %v1358 = vld [vmem:[%s1357] sm:$0xff]
      %v1359 = vld [vmem:[%s1357 + $0x8] sm:$0xff]
      %v1360 = vld [vmem:[%s1357 + $0x10] sm:$0xff]
      %v1361 = vld [vmem:[%s1357 + $0x18] sm:$0xff]
      %v1363 = vsel %vm250, %v1264, 0
      %v1366 = vsel %vm250, %v1269, 0
      %1368 = vmatprep.subr.mxu0 0.0
      %1369 = vmatpush1.msra.mxu0 %v1358
      %1370 = vmatprep.subr.mxu0 0.0
      %1371 = vmatpush1.msra.mxu0 %v1359
      %1372 = vmatprep.subr.mxu0 0.0
      %1373 = vmatpush1.msra.mxu0 %v1360
      %1374 = vmatprep.subr.mxu0 0.0
      %1375 = vmatpush1.msra.mxu0 %v1361
      %1376 = vmatprep.subr.mxu0 0.0
      %1377 = vmatpush1.msra.mxu0 0.0
      %1378 = vmatprep.subr.mxu0 0.0
      %1379 = vmatpush1.msra.mxu0 0.0
      %1380 = vmatprep.subr.mxu0 0.0
      %1381 = vmatpush1.msra.mxu0 0.0
      %1382 = vmatprep.subr.mxu0 0.0
      %1383 = vmatpush1.msra.mxu0 0.0
      %1384 = vmatprep.subr.mxu0 0.0
      %1385 = vmatpush1.msra.mxu0 0.0
      %1386 = vmatprep.subr.mxu0 0.0
      %1387 = vmatpush1.msra.mxu0 0.0
      %1388 = vmatprep.subr.mxu0 0.0
      %1389 = vmatpush1.msra.mxu0 0.0
      %1390 = vmatprep.subr.mxu0 0.0
      %1391 = vmatpush1.msra.mxu0 0.0
      %1392 = vmatprep.subr.mxu0 0.0
      %1393 = vmatpush1.msra.mxu0 0.0
      %1394 = vmatprep.subr.mxu0 0.0
      %1395 = vmatpush1.msra.mxu0 0.0
      %1396 = vmatprep.subr.mxu0 0.0
      %1397 = vmatpush1.msra.mxu0 0.0
      %1398 = vmatprep.subr.mxu0 0.0
      %1399 = vmatpush1.msra.mxu0 0.0
      %1400 = vmatprep.subr.mxu0 0.0
      %1401 = vmatpush1.msra.mxu0 0.0
      %1402 = vmatprep.subr.mxu0 0.0
      %1403 = vmatpush1.msra.mxu0 0.0
      %1404 = vmatprep.subr.mxu0 0.0
      %1405 = vmatpush1.msra.mxu0 0.0
      %1406 = vmatprep.subr.mxu0 0.0
      %1407 = vmatpush1.msra.mxu0 0.0
      %1408 = vmatprep.subr.mxu0 0.0
      %1409 = vmatpush1.msra.mxu0 0.0
      %1410 = vmatprep.subr.mxu0 0.0
      %1411 = vmatpush1.msra.mxu0 0.0
      %1412 = vmatprep.subr.mxu0 0.0
      %1413 = vmatpush1.msra.mxu0 0.0
      %1414 = vmatprep.subr.mxu0 0.0
      %1415 = vmatpush1.msra.mxu0 0.0
      %1416 = vmatprep.subr.mxu0 0.0
      %1417 = vmatpush1.msra.mxu0 0.0
      %1418 = vmatprep.subr.mxu0 0.0
      %1419 = vmatpush1.msra.mxu0 0.0
      %1420 = vmatprep.subr.mxu0 0.0
      %1421 = vmatpush1.msra.mxu0 0.0
      %1422 = vmatprep.subr.mxu0 0.0
      %1423 = vmatpush1.msra.mxu0 0.0
      %1424 = vmatprep.subr.mxu0 0.0
      %1425 = vmatpush1.msra.mxu0 0.0
      %1426 = vmatprep.subr.mxu0 0.0
      %1427 = vmatpush1.msra.mxu0 0.0
      %1428 = vmatprep.subr.mxu0 0.0
      %1429 = vmatpush1.msra.mxu0 0.0
      %1430 = vmatprep.subr.mxu0 0.0
      %1431 = vmatpush1.msra.mxu0 0.0
      %1432 = vmatprep.mubr.f32.mxu0 0.0
      %1433 = vmatmul.mubr.f32.gmra.mrb[0].mxu0 %v1363
      %v1434 = vpop.f32.mrb[0].mxu0
      %v1435 = vadd.f32 0.0, %v1434
      %v1436 = vpop.f32.mrb[0].mxu0
      %1437 = vmatprep.mubr.f32.mxu0 0.0
      %1438 = vmatmul.mubr.f32.gmra.mrb[0].mxu0 %v1366
      %v1439 = vpop.f32.mrb[0].mxu0
      %v1440 = vadd.f32 0.0, %v1439
      %v1441 = vpop.f32.mrb[0].mxu0
      %1442 = vdwg.mxu0
      %v1444 = vsel %vm250, %v248, 0
      %v1447 = vsel %vm250, %v249, 0
      %1449 = vmatprep.subr.mxu0 0.0
      %1450 = vmatpush1.msra.mxu0 %v1353
      %1451 = vmatprep.subr.mxu0 0.0
      %1452 = vmatpush1.msra.mxu0 %v1354
      %1453 = vmatprep.subr.mxu0 0.0
      %1454 = vmatpush1.msra.mxu0 %v1355
      %1455 = vmatprep.subr.mxu0 0.0
      %1456 = vmatpush1.msra.mxu0 %v1356
      %1457 = vmatprep.subr.mxu0 0.0
      %1458 = vmatpush1.msra.mxu0 0.0
      %1459 = vmatprep.subr.mxu0 0.0
      %1460 = vmatpush1.msra.mxu0 0.0
      %1461 = vmatprep.subr.mxu0 0.0
      %1462 = vmatpush1.msra.mxu0 0.0
      %1463 = vmatprep.subr.mxu0 0.0
      %1464 = vmatpush1.msra.mxu0 0.0
      %1465 = vmatprep.subr.mxu0 0.0
      %1466 = vmatpush1.msra.mxu0 0.0
      %1467 = vmatprep.subr.mxu0 0.0
      %1468 = vmatpush1.msra.mxu0 0.0
      %1469 = vmatprep.subr.mxu0 0.0
      %1470 = vmatpush1.msra.mxu0 0.0
      %1471 = vmatprep.subr.mxu0 0.0
      %1472 = vmatpush1.msra.mxu0 0.0
      %1473 = vmatprep.subr.mxu0 0.0
      %1474 = vmatpush1.msra.mxu0 0.0
      %1475 = vmatprep.subr.mxu0 0.0
      %1476 = vmatpush1.msra.mxu0 0.0
      %1477 = vmatprep.subr.mxu0 0.0
      %1478 = vmatpush1.msra.mxu0 0.0
      %1479 = vmatprep.subr.mxu0 0.0
      %1480 = vmatpush1.msra.mxu0 0.0
      %1481 = vmatprep.subr.mxu0 0.0
      %1482 = vmatpush1.msra.mxu0 0.0
      %1483 = vmatprep.subr.mxu0 0.0
      %1484 = vmatpush1.msra.mxu0 0.0
      %1485 = vmatprep.subr.mxu0 0.0
      %1486 = vmatpush1.msra.mxu0 0.0
      %1487 = vmatprep.subr.mxu0 0.0
      %1488 = vmatpush1.msra.mxu0 0.0
      %1489 = vmatprep.subr.mxu0 0.0
      %1490 = vmatpush1.msra.mxu0 0.0
      %1491 = vmatprep.subr.mxu0 0.0
      %1492 = vmatpush1.msra.mxu0 0.0
      %1493 = vmatprep.subr.mxu0 0.0
      %1494 = vmatpush1.msra.mxu0 0.0
      %1495 = vmatprep.subr.mxu0 0.0
      %1496 = vmatpush1.msra.mxu0 0.0
      %1497 = vmatprep.subr.mxu0 0.0
      %1498 = vmatpush1.msra.mxu0 0.0
      %1499 = vmatprep.subr.mxu0 0.0
      %1500 = vmatpush1.msra.mxu0 0.0
      %1501 = vmatprep.subr.mxu0 0.0
      %1502 = vmatpush1.msra.mxu0 0.0
      %1503 = vmatprep.subr.mxu0 0.0
      %1504 = vmatpush1.msra.mxu0 0.0
      %1505 = vmatprep.subr.mxu0 0.0
      %1506 = vmatpush1.msra.mxu0 0.0
      %1507 = vmatprep.subr.mxu0 0.0
      %1508 = vmatpush1.msra.mxu0 0.0
      %1509 = vmatprep.subr.mxu0 0.0
      %1510 = vmatpush1.msra.mxu0 0.0
      %1511 = vmatprep.subr.mxu0 0.0
      %1512 = vmatpush1.msra.mxu0 0.0
      %1513 = vmatprep.mubr.f32.mxu0 0.0
      %1514 = vmatmul.mubr.f32.gmra.mrb[0].mxu0 %v1444
      %v1515 = vpop.f32.mrb[0].mxu0
      %v1516 = vadd.f32 %v1435, %v1515
      %v1517 = vpop.f32.mrb[0].mxu0
      %1518 = vmatprep.mubr.f32.mxu0 0.0
      %1519 = vmatmul.mubr.f32.gmra.mrb[0].mxu0 %v1447
      %v1520 = vpop.f32.mrb[0].mxu0
      %v1521 = vadd.f32 %v1440, %v1520
      %v1522 = vpop.f32.mrb[0].mxu0
      %1523 = vdwg.mxu0
      %s1524 = scalar_lea.vmem %s1, 64
      %v1525 = vld [vmem:[%s1524] sm:$0xff]
      %v1526 = vld [vmem:[%s1524 + $0x8] sm:$0xff]
      %v1527 = vld [vmem:[%s1524 + $0x10] sm:$0xff]
      %v1528 = vld [vmem:[%s1524 + $0x18] sm:$0xff]
      %v1530 = vsel %vm250, %v1345, 0
      %v1533 = vsel %vm250, %v1350, 0
      %1535 = vmatprep.subr.mxu0 0.0
      %1536 = vmatpush1.msra.mxu0 %v1525
      %1537 = vmatprep.subr.mxu0 0.0
      %1538 = vmatpush1.msra.mxu0 %v1526
      %1539 = vmatprep.subr.mxu0 0.0
      %1540 = vmatpush1.msra.mxu0 %v1527
      %1541 = vmatprep.subr.mxu0 0.0
      %1542 = vmatpush1.msra.mxu0 %v1528
      %1543 = vmatprep.subr.mxu0 0.0
      %1544 = vmatpush1.msra.mxu0 0.0
      %1545 = vmatprep.subr.mxu0 0.0
      %1546 = vmatpush1.msra.mxu0 0.0
      %1547 = vmatprep.subr.mxu0 0.0
      %1548 = vmatpush1.msra.mxu0 0.0
      %1549 = vmatprep.subr.mxu0 0.0
      %1550 = vmatpush1.msra.mxu0 0.0
      %1551 = vmatprep.subr.mxu0 0.0
      %1552 = vmatpush1.msra.mxu0 0.0
      %1553 = vmatprep.subr.mxu0 0.0
      %1554 = vmatpush1.msra.mxu0 0.0
      %1555 = vmatprep.subr.mxu0 0.0
      %1556 = vmatpush1.msra.mxu0 0.0
      %1557 = vmatprep.subr.mxu0 0.0
      %1558 = vmatpush1.msra.mxu0 0.0
      %1559 = vmatprep.subr.mxu0 0.0
      %1560 = vmatpush1.msra.mxu0 0.0
      %1561 = vmatprep.subr.mxu0 0.0
      %1562 = vmatpush1.msra.mxu0 0.0
      %1563 = vmatprep.subr.mxu0 0.0
      %1564 = vmatpush1.msra.mxu0 0.0
      %1565 = vmatprep.subr.mxu0 0.0
      %1566 = vmatpush1.msra.mxu0 0.0
      %1567 = vmatprep.subr.mxu0 0.0
      %1568 = vmatpush1.msra.mxu0 0.0
      %1569 = vmatprep.subr.mxu0 0.0
      %1570 = vmatpush1.msra.mxu0 0.0
      %1571 = vmatprep.subr.mxu0 0.0
      %1572 = vmatpush1.msra.mxu0 0.0
      %1573 = vmatprep.subr.mxu0 0.0
      %1574 = vmatpush1.msra.mxu0 0.0
      %1575 = vmatprep.subr.mxu0 0.0
      %1576 = vmatpush1.msra.mxu0 0.0
      %1577 = vmatprep.subr.mxu0 0.0
      %1578 = vmatpush1.msra.mxu0 0.0
      %1579 = vmatprep.subr.mxu0 0.0
      %1580 = vmatpush1.msra.mxu0 0.0
      %1581 = vmatprep.subr.mxu0 0.0
      %1582 = vmatpush1.msra.mxu0 0.0
      %1583 = vmatprep.subr.mxu0 0.0
      %1584 = vmatpush1.msra.mxu0 0.0
      %1585 = vmatprep.subr.mxu0 0.0
      %1586 = vmatpush1.msra.mxu0 0.0
      %1587 = vmatprep.subr.mxu0 0.0
      %1588 = vmatpush1.msra.mxu0 0.0
      %1589 = vmatprep.subr.mxu0 0.0
      %1590 = vmatpush1.msra.mxu0 0.0
      %1591 = vmatprep.subr.mxu0 0.0
      %1592 = vmatpush1.msra.mxu0 0.0
      %1593 = vmatprep.subr.mxu0 0.0
      %1594 = vmatpush1.msra.mxu0 0.0
      %1595 = vmatprep.subr.mxu0 0.0
      %1596 = vmatpush1.msra.mxu0 0.0
      %1597 = vmatprep.subr.mxu0 0.0
      %1598 = vmatpush1.msra.mxu0 0.0
      %1599 = vmatprep.mubr.f32.mxu0 0.0
      %1600 = vmatmul.mubr.f32.gmra.mrb[0].mxu0 %v1530
      %v1601 = vpop.f32.mrb[0].mxu0
      %v1602 = vadd.f32 0.0, %v1601
      %v1603 = vpop.f32.mrb[0].mxu0
      %1604 = vmatprep.mubr.f32.mxu0 0.0
      %1605 = vmatmul.mubr.f32.gmra.mrb[0].mxu0 %v1533
      %v1606 = vpop.f32.mrb[0].mxu0
      %v1607 = vadd.f32 0.0, %v1606
      %v1608 = vpop.f32.mrb[0].mxu0
      %1609 = vdwg.mxu0
      %v1610 = vadd.f32 %v1516, %v1602
      %v1611 = vadd.f32 %v1521, %v1607
      %v1612 = vmax.f32 %v1610, 0.0
      %v1613 = vmax.f32 %v1611, 0.0
      %v1614 = vld [vmem:[%s3] sm:$0x1]
      %v1615 = vld [vmem:[%s2] sm:$0xff]
      %v1616 = vld [vmem:[%s2 + $0x8] sm:$0xf]
      %vm1617 = vcmask 97280
      %v1619 = vsel %vm1617, %v1612, 0
      %vm1621 = vcmask 1043456
      %v1623 = vsel %vm1621, %v1616, 0
      %1625 = vmatprep.subr.mxu0 0.0
      %1626 = vmatpush1.msra.mxu0 %v1615
      %1627 = vmatprep.subr.mxu0 0.0
      %1628 = vmatpush1.msra.mxu0 %v1623
      %1629 = vmatprep.subr.mxu0 0.0
      %1630 = vmatpush1.msra.mxu0 0.0
      %1631 = vmatprep.subr.mxu0 0.0
      %1632 = vmatpush1.msra.mxu0 0.0
      %1633 = vmatprep.subr.mxu0 0.0
      %1634 = vmatpush1.msra.mxu0 0.0
      %1635 = vmatprep.subr.mxu0 0.0
      %1636 = vmatpush1.msra.mxu0 0.0
      %1637 = vmatprep.subr.mxu0 0.0
      %1638 = vmatpush1.msra.mxu0 0.0
      %1639 = vmatprep.subr.mxu0 0.0
      %1640 = vmatpush1.msra.mxu0 0.0
      %1641 = vmatprep.subr.mxu0 0.0
      %1642 = vmatpush1.msra.mxu0 0.0
      %1643 = vmatprep.subr.mxu0 0.0
      %1644 = vmatpush1.msra.mxu0 0.0
      %1645 = vmatprep.subr.mxu0 0.0
      %1646 = vmatpush1.msra.mxu0 0.0
      %1647 = vmatprep.subr.mxu0 0.0
      %1648 = vmatpush1.msra.mxu0 0.0
      %1649 = vmatprep.subr.mxu0 0.0
      %1650 = vmatpush1.msra.mxu0 0.0
      %1651 = vmatprep.subr.mxu0 0.0
      %1652 = vmatpush1.msra.mxu0 0.0
      %1653 = vmatprep.subr.mxu0 0.0
      %1654 = vmatpush1.msra.mxu0 0.0
      %1655 = vmatprep.subr.mxu0 0.0
      %1656 = vmatpush1.msra.mxu0 0.0
      %1657 = vmatprep.subr.mxu0 0.0
      %1658 = vmatpush1.msra.mxu0 0.0
      %1659 = vmatprep.subr.mxu0 0.0
      %1660 = vmatpush1.msra.mxu0 0.0
      %1661 = vmatprep.subr.mxu0 0.0
      %1662 = vmatpush1.msra.mxu0 0.0
      %1663 = vmatprep.subr.mxu0 0.0
      %1664 = vmatpush1.msra.mxu0 0.0
      %1665 = vmatprep.subr.mxu0 0.0
      %1666 = vmatpush1.msra.mxu0 0.0
      %1667 = vmatprep.subr.mxu0 0.0
      %1668 = vmatpush1.msra.mxu0 0.0
      %1669 = vmatprep.subr.mxu0 0.0
      %1670 = vmatpush1.msra.mxu0 0.0
      %1671 = vmatprep.subr.mxu0 0.0
      %1672 = vmatpush1.msra.mxu0 0.0
      %1673 = vmatprep.subr.mxu0 0.0
      %1674 = vmatpush1.msra.mxu0 0.0
      %1675 = vmatprep.subr.mxu0 0.0
      %1676 = vmatpush1.msra.mxu0 0.0
      %1677 = vmatprep.subr.mxu0 0.0
      %1678 = vmatpush1.msra.mxu0 0.0
      %1679 = vmatprep.subr.mxu0 0.0
      %1680 = vmatpush1.msra.mxu0 0.0
      %1681 = vmatprep.subr.mxu0 0.0
      %1682 = vmatpush1.msra.mxu0 0.0
      %1683 = vmatprep.subr.mxu0 0.0
      %1684 = vmatpush1.msra.mxu0 0.0
      %1685 = vmatprep.subr.mxu0 0.0
      %1686 = vmatpush1.msra.mxu0 0.0
      %1687 = vmatprep.subr.mxu0 0.0
      %1688 = vmatpush1.msra.mxu0 0.0
      %1689 = vmatprep.mubr.f32.mxu0 0.0
      %1690 = vmatmul.mubr.f32.gmra.mrb[0].mxu0 %v1619
      %v1691 = vpop.f32.mrb[0].mxu0
      %v1692 = vadd.f32 0.0, %v1691
      %v1693 = vpop.f32.mrb[0].mxu0
      %1694 = vdwg.mxu0
      %v1695 = vadd.f32 %v1614, %v1692
      %s1696 = scalar_lea.vmem %s2, 16
      %v1697 = vld [vmem:[%s1696] sm:$0xff]
      %v1698 = vld [vmem:[%s1696 + $0x8] sm:$0xf]
      %v1699 = vrot.slane %v1612, 1
      %v1700 = vsel %vm1617, %v1699, 0
      %v1703 = vsel %vm1621, %v1698, 0
      %1705 = vmatprep.subr.mxu0 0.0
      %1706 = vmatpush1.msra.mxu0 %v1697
      %1707 = vmatprep.subr.mxu0 0.0
      %1708 = vmatpush1.msra.mxu0 %v1703
      %1709 = vmatprep.subr.mxu0 0.0
      %1710 = vmatpush1.msra.mxu0 0.0
      %1711 = vmatprep.subr.mxu0 0.0
      %1712 = vmatpush1.msra.mxu0 0.0
      %1713 = vmatprep.subr.mxu0 0.0
      %1714 = vmatpush1.msra.mxu0 0.0
      %1715 = vmatprep.subr.mxu0 0.0
      %1716 = vmatpush1.msra.mxu0 0.0
      %1717 = vmatprep.subr.mxu0 0.0
      %1718 = vmatpush1.msra.mxu0 0.0
      %1719 = vmatprep.subr.mxu0 0.0
      %1720 = vmatpush1.msra.mxu0 0.0
      %1721 = vmatprep.subr.mxu0 0.0
      %1722 = vmatpush1.msra.mxu0 0.0
      %1723 = vmatprep.subr.mxu0 0.0
      %1724 = vmatpush1.msra.mxu0 0.0
      %1725 = vmatprep.subr.mxu0 0.0
      %1726 = vmatpush1.msra.mxu0 0.0
      %1727 = vmatprep.subr.mxu0 0.0
      %1728 = vmatpush1.msra.mxu0 0.0
      %1729 = vmatprep.subr.mxu0 0.0
      %1730 = vmatpush1.msra.mxu0 0.0
      %1731 = vmatprep.subr.mxu0 0.0
      %1732 = vmatpush1.msra.mxu0 0.0
      %1733 = vmatprep.subr.mxu0 0.0
      %1734 = vmatpush1.msra.mxu0 0.0
      %1735 = vmatprep.subr.mxu0 0.0
      %1736 = vmatpush1.msra.mxu0 0.0
      %1737 = vmatprep.subr.mxu0 0.0
      %1738 = vmatpush1.msra.mxu0 0.0
      %1739 = vmatprep.subr.mxu0 0.0
      %1740 = vmatpush1.msra.mxu0 0.0
      %1741 = vmatprep.subr.mxu0 0.0
      %1742 = vmatpush1.msra.mxu0 0.0
      %1743 = vmatprep.subr.mxu0 0.0
      %1744 = vmatpush1.msra.mxu0 0.0
      %1745 = vmatprep.subr.mxu0 0.0
      %1746 = vmatpush1.msra.mxu0 0.0
      %1747 = vmatprep.subr.mxu0 0.0
      %1748 = vmatpush1.msra.mxu0 0.0
      %1749 = vmatprep.subr.mxu0 0.0
      %1750 = vmatpush1.msra.mxu0 0.0
      %1751 = vmatprep.subr.mxu0 0.0
      %1752 = vmatpush1.msra.mxu0 0.0
      %1753 = vmatprep.subr.mxu0 0.0
      %1754 = vmatpush1.msra.mxu0 0.0
      %1755 = vmatprep.subr.mxu0 0.0
      %1756 = vmatpush1.msra.mxu0 0.0
      %1757 = vmatprep.subr.mxu0 0.0
      %1758 = vmatpush1.msra.mxu0 0.0
      %1759 = vmatprep.subr.mxu0 0.0
      %1760 = vmatpush1.msra.mxu0 0.0
      %1761 = vmatprep.subr.mxu0 0.0
      %1762 = vmatpush1.msra.mxu0 0.0
      %1763 = vmatprep.subr.mxu0 0.0
      %1764 = vmatpush1.msra.mxu0 0.0
      %1765 = vmatprep.subr.mxu0 0.0
      %1766 = vmatpush1.msra.mxu0 0.0
      %1767 = vmatprep.subr.mxu0 0.0
      %1768 = vmatpush1.msra.mxu0 0.0
      %1769 = vmatprep.mubr.f32.mxu0 0.0
      %1770 = vmatmul.mubr.f32.gmra.mrb[0].mxu0 %v1700
      %v1771 = vpop.f32.mrb[0].mxu0
      %v1772 = vadd.f32 0.0, %v1771
      %v1773 = vpop.f32.mrb[0].mxu0
      %1774 = vdwg.mxu0
      %v1775 = vadd.f32 %v1695, %v1772
      %s1776 = scalar_lea.vmem %s2, 32
      %v1777 = vld [vmem:[%s1776] sm:$0xff]
      %v1778 = vld [vmem:[%s1776 + $0x8] sm:$0xf]
      %v1779 = vrot.slane %v1612, 2
      %v1780 = vsel %vm1617, %v1779, 0
      %v1783 = vsel %vm1621, %v1778, 0
      %1785 = vmatprep.subr.mxu0 0.0
      %1786 = vmatpush1.msra.mxu0 %v1777
      %1787 = vmatprep.subr.mxu0 0.0
      %1788 = vmatpush1.msra.mxu0 %v1783
      %1789 = vmatprep.subr.mxu0 0.0
      %1790 = vmatpush1.msra.mxu0 0.0
      %1791 = vmatprep.subr.mxu0 0.0
      %1792 = vmatpush1.msra.mxu0 0.0
      %1793 = vmatprep.subr.mxu0 0.0
      %1794 = vmatpush1.msra.mxu0 0.0
      %1795 = vmatprep.subr.mxu0 0.0
      %1796 = vmatpush1.msra.mxu0 0.0
      %1797 = vmatprep.subr.mxu0 0.0
      %1798 = vmatpush1.msra.mxu0 0.0
      %1799 = vmatprep.subr.mxu0 0.0
      %1800 = vmatpush1.msra.mxu0 0.0
      %1801 = vmatprep.subr.mxu0 0.0
      %1802 = vmatpush1.msra.mxu0 0.0
      %1803 = vmatprep.subr.mxu0 0.0
      %1804 = vmatpush1.msra.mxu0 0.0
      %1805 = vmatprep.subr.mxu0 0.0
      %1806 = vmatpush1.msra.mxu0 0.0
      %1807 = vmatprep.subr.mxu0 0.0
      %1808 = vmatpush1.msra.mxu0 0.0
      %1809 = vmatprep.subr.mxu0 0.0
      %1810 = vmatpush1.msra.mxu0 0.0
      %1811 = vmatprep.subr.mxu0 0.0
      %1812 = vmatpush1.msra.mxu0 0.0
      %1813 = vmatprep.subr.mxu0 0.0
      %1814 = vmatpush1.msra.mxu0 0.0
      %1815 = vmatprep.subr.mxu0 0.0
      %1816 = vmatpush1.msra.mxu0 0.0
      %1817 = vmatprep.subr.mxu0 0.0
      %1818 = vmatpush1.msra.mxu0 0.0
      %1819 = vmatprep.subr.mxu0 0.0
      %1820 = vmatpush1.msra.mxu0 0.0
      %1821 = vmatprep.subr.mxu0 0.0
      %1822 = vmatpush1.msra.mxu0 0.0
      %1823 = vmatprep.subr.mxu0 0.0
      %1824 = vmatpush1.msra.mxu0 0.0
      %1825 = vmatprep.subr.mxu0 0.0
      %1826 = vmatpush1.msra.mxu0 0.0
      %1827 = vmatprep.subr.mxu0 0.0
      %1828 = vmatpush1.msra.mxu0 0.0
      %1829 = vmatprep.subr.mxu0 0.0
      %1830 = vmatpush1.msra.mxu0 0.0
      %1831 = vmatprep.subr.mxu0 0.0
      %1832 = vmatpush1.msra.mxu0 0.0
      %1833 = vmatprep.subr.mxu0 0.0
      %1834 = vmatpush1.msra.mxu0 0.0
      %1835 = vmatprep.subr.mxu0 0.0
      %1836 = vmatpush1.msra.mxu0 0.0
      %1837 = vmatprep.subr.mxu0 0.0
      %1838 = vmatpush1.msra.mxu0 0.0
      %1839 = vmatprep.subr.mxu0 0.0
      %1840 = vmatpush1.msra.mxu0 0.0
      %1841 = vmatprep.subr.mxu0 0.0
      %1842 = vmatpush1.msra.mxu0 0.0
      %1843 = vmatprep.subr.mxu0 0.0
      %1844 = vmatpush1.msra.mxu0 0.0
      %1845 = vmatprep.subr.mxu0 0.0
      %1846 = vmatpush1.msra.mxu0 0.0
      %1847 = vmatprep.subr.mxu0 0.0
      %1848 = vmatpush1.msra.mxu0 0.0
      %1849 = vmatprep.mubr.f32.mxu0 0.0
      %1850 = vmatmul.mubr.f32.gmra.mrb[0].mxu0 %v1780
      %v1851 = vpop.f32.mrb[0].mxu0
      %v1852 = vadd.f32 0.0, %v1851
      %v1853 = vpop.f32.mrb[0].mxu0
      %1854 = vdwg.mxu0
      %v1855 = vadd.f32 %v1775, %v1852
      %s1856 = scalar_lea.vmem %s2, 48
      %v1857 = vld [vmem:[%s1856] sm:$0xff]
      %v1858 = vld [vmem:[%s1856 + $0x8] sm:$0xf]
      %v1859 = vrot.slane %v1612, 3
      %v1860 = vsel %vm1617, %v1859, 0
      %v1863 = vsel %vm1621, %v1858, 0
      %1865 = vmatprep.subr.mxu0 0.0
      %1866 = vmatpush1.msra.mxu0 %v1857
      %1867 = vmatprep.subr.mxu0 0.0
      %1868 = vmatpush1.msra.mxu0 %v1863
      %1869 = vmatprep.subr.mxu0 0.0
      %1870 = vmatpush1.msra.mxu0 0.0
      %1871 = vmatprep.subr.mxu0 0.0
      %1872 = vmatpush1.msra.mxu0 0.0
      %1873 = vmatprep.subr.mxu0 0.0
      %1874 = vmatpush1.msra.mxu0 0.0
      %1875 = vmatprep.subr.mxu0 0.0
      %1876 = vmatpush1.msra.mxu0 0.0
      %1877 = vmatprep.subr.mxu0 0.0
      %1878 = vmatpush1.msra.mxu0 0.0
      %1879 = vmatprep.subr.mxu0 0.0
      %1880 = vmatpush1.msra.mxu0 0.0
      %1881 = vmatprep.subr.mxu0 0.0
      %1882 = vmatpush1.msra.mxu0 0.0
      %1883 = vmatprep.subr.mxu0 0.0
      %1884 = vmatpush1.msra.mxu0 0.0
      %1885 = vmatprep.subr.mxu0 0.0
      %1886 = vmatpush1.msra.mxu0 0.0
      %1887 = vmatprep.subr.mxu0 0.0
      %1888 = vmatpush1.msra.mxu0 0.0
      %1889 = vmatprep.subr.mxu0 0.0
      %1890 = vmatpush1.msra.mxu0 0.0
      %1891 = vmatprep.subr.mxu0 0.0
      %1892 = vmatpush1.msra.mxu0 0.0
      %1893 = vmatprep.subr.mxu0 0.0
      %1894 = vmatpush1.msra.mxu0 0.0
      %1895 = vmatprep.subr.mxu0 0.0
      %1896 = vmatpush1.msra.mxu0 0.0
      %1897 = vmatprep.subr.mxu0 0.0
      %1898 = vmatpush1.msra.mxu0 0.0
      %1899 = vmatprep.subr.mxu0 0.0
      %1900 = vmatpush1.msra.mxu0 0.0
      %1901 = vmatprep.subr.mxu0 0.0
      %1902 = vmatpush1.msra.mxu0 0.0
      %1903 = vmatprep.subr.mxu0 0.0
      %1904 = vmatpush1.msra.mxu0 0.0
      %1905 = vmatprep.subr.mxu0 0.0
      %1906 = vmatpush1.msra.mxu0 0.0
      %1907 = vmatprep.subr.mxu0 0.0
      %1908 = vmatpush1.msra.mxu0 0.0
      %1909 = vmatprep.subr.mxu0 0.0
      %1910 = vmatpush1.msra.mxu0 0.0
      %1911 = vmatprep.subr.mxu0 0.0
      %1912 = vmatpush1.msra.mxu0 0.0
      %1913 = vmatprep.subr.mxu0 0.0
      %1914 = vmatpush1.msra.mxu0 0.0
      %1915 = vmatprep.subr.mxu0 0.0
      %1916 = vmatpush1.msra.mxu0 0.0
      %1917 = vmatprep.subr.mxu0 0.0
      %1918 = vmatpush1.msra.mxu0 0.0
      %1919 = vmatprep.subr.mxu0 0.0
      %1920 = vmatpush1.msra.mxu0 0.0
      %1921 = vmatprep.subr.mxu0 0.0
      %1922 = vmatpush1.msra.mxu0 0.0
      %1923 = vmatprep.subr.mxu0 0.0
      %1924 = vmatpush1.msra.mxu0 0.0
      %1925 = vmatprep.subr.mxu0 0.0
      %1926 = vmatpush1.msra.mxu0 0.0
      %1927 = vmatprep.subr.mxu0 0.0
      %1928 = vmatpush1.msra.mxu0 0.0
      %1929 = vmatprep.mubr.f32.mxu0 0.0
      %1930 = vmatmul.mubr.f32.gmra.mrb[0].mxu0 %v1860
      %v1931 = vpop.f32.mrb[0].mxu0
      %v1932 = vadd.f32 0.0, %v1931
      %v1933 = vpop.f32.mrb[0].mxu0
      %1934 = vdwg.mxu0
      %v1935 = vadd.f32 %v1855, %v1932
      %s1936 = scalar_lea.vmem %s2, 64
      %v1937 = vld [vmem:[%s1936] sm:$0xff]
      %v1938 = vld [vmem:[%s1936 + $0x8] sm:$0xf]
      %v1939 = vrot.slane %v1612, 4
      %v1940 = vsel %vm1617, %v1939, 0
      %v1943 = vsel %vm1621, %v1938, 0
      %1945 = vmatprep.subr.mxu0 0.0
      %1946 = vmatpush1.msra.mxu0 %v1937
      %1947 = vmatprep.subr.mxu0 0.0
      %1948 = vmatpush1.msra.mxu0 %v1943
      %1949 = vmatprep.subr.mxu0 0.0
      %1950 = vmatpush1.msra.mxu0 0.0
      %1951 = vmatprep.subr.mxu0 0.0
      %1952 = vmatpush1.msra.mxu0 0.0
      %1953 = vmatprep.subr.mxu0 0.0
      %1954 = vmatpush1.msra.mxu0 0.0
      %1955 = vmatprep.subr.mxu0 0.0
      %1956 = vmatpush1.msra.mxu0 0.0
      %1957 = vmatprep.subr.mxu0 0.0
      %1958 = vmatpush1.msra.mxu0 0.0
      %1959 = vmatprep.subr.mxu0 0.0
      %1960 = vmatpush1.msra.mxu0 0.0
      %1961 = vmatprep.subr.mxu0 0.0
      %1962 = vmatpush1.msra.mxu0 0.0
      %1963 = vmatprep.subr.mxu0 0.0
      %1964 = vmatpush1.msra.mxu0 0.0
      %1965 = vmatprep.subr.mxu0 0.0
      %1966 = vmatpush1.msra.mxu0 0.0
      %1967 = vmatprep.subr.mxu0 0.0
      %1968 = vmatpush1.msra.mxu0 0.0
      %1969 = vmatprep.subr.mxu0 0.0
      %1970 = vmatpush1.msra.mxu0 0.0
      %1971 = vmatprep.subr.mxu0 0.0
      %1972 = vmatpush1.msra.mxu0 0.0
      %1973 = vmatprep.subr.mxu0 0.0
      %1974 = vmatpush1.msra.mxu0 0.0
      %1975 = vmatprep.subr.mxu0 0.0
      %1976 = vmatpush1.msra.mxu0 0.0
      %1977 = vmatprep.subr.mxu0 0.0
      %1978 = vmatpush1.msra.mxu0 0.0
      %1979 = vmatprep.subr.mxu0 0.0
      %1980 = vmatpush1.msra.mxu0 0.0
      %1981 = vmatprep.subr.mxu0 0.0
      %1982 = vmatpush1.msra.mxu0 0.0
      %1983 = vmatprep.subr.mxu0 0.0
      %1984 = vmatpush1.msra.mxu0 0.0
      %1985 = vmatprep.subr.mxu0 0.0
      %1986 = vmatpush1.msra.mxu0 0.0
      %1987 = vmatprep.subr.mxu0 0.0
      %1988 = vmatpush1.msra.mxu0 0.0
      %1989 = vmatprep.subr.mxu0 0.0
      %1990 = vmatpush1.msra.mxu0 0.0
      %1991 = vmatprep.subr.mxu0 0.0
      %1992 = vmatpush1.msra.mxu0 0.0
      %1993 = vmatprep.subr.mxu0 0.0
      %1994 = vmatpush1.msra.mxu0 0.0
      %1995 = vmatprep.subr.mxu0 0.0
      %1996 = vmatpush1.msra.mxu0 0.0
      %1997 = vmatprep.subr.mxu0 0.0
      %1998 = vmatpush1.msra.mxu0 0.0
      %1999 = vmatprep.subr.mxu0 0.0
      %2000 = vmatpush1.msra.mxu0 0.0
      %2001 = vmatprep.subr.mxu0 0.0
      %2002 = vmatpush1.msra.mxu0 0.0
      %2003 = vmatprep.subr.mxu0 0.0
      %2004 = vmatpush1.msra.mxu0 0.0
      %2005 = vmatprep.subr.mxu0 0.0
      %2006 = vmatpush1.msra.mxu0 0.0
      %2007 = vmatprep.subr.mxu0 0.0
      %2008 = vmatpush1.msra.mxu0 0.0
      %2009 = vmatprep.mubr.f32.mxu0 0.0
      %2010 = vmatmul.mubr.f32.gmra.mrb[0].mxu0 %v1940
      %v2011 = vpop.f32.mrb[0].mxu0
      %v2012 = vadd.f32 0.0, %v2011
      %v2013 = vpop.f32.mrb[0].mxu0
      %2014 = vdwg.mxu0
      %v2015 = vadd.f32 %v1935, %v2012
      %s2016 = scalar_lea.vmem %s2, 80
      %v2017 = vld [vmem:[%s2016] sm:$0xff]
      %v2018 = vld [vmem:[%s2016 + $0x8] sm:$0xf]
      %v2019 = vrot.slane %v1612, 5
      %v2020 = vsel %vm1617, %v2019, 0
      %v2023 = vsel %vm1621, %v2018, 0
      %2025 = vmatprep.subr.mxu0 0.0
      %2026 = vmatpush1.msra.mxu0 %v2017
      %2027 = vmatprep.subr.mxu0 0.0
      %2028 = vmatpush1.msra.mxu0 %v2023
      %2029 = vmatprep.subr.mxu0 0.0
      %2030 = vmatpush1.msra.mxu0 0.0
      %2031 = vmatprep.subr.mxu0 0.0
      %2032 = vmatpush1.msra.mxu0 0.0
      %2033 = vmatprep.subr.mxu0 0.0
      %2034 = vmatpush1.msra.mxu0 0.0
      %2035 = vmatprep.subr.mxu0 0.0
      %2036 = vmatpush1.msra.mxu0 0.0
      %2037 = vmatprep.subr.mxu0 0.0
      %2038 = vmatpush1.msra.mxu0 0.0
      %2039 = vmatprep.subr.mxu0 0.0
      %2040 = vmatpush1.msra.mxu0 0.0
      %2041 = vmatprep.subr.mxu0 0.0
      %2042 = vmatpush1.msra.mxu0 0.0
      %2043 = vmatprep.subr.mxu0 0.0
      %2044 = vmatpush1.msra.mxu0 0.0
      %2045 = vmatprep.subr.mxu0 0.0
      %2046 = vmatpush1.msra.mxu0 0.0
      %2047 = vmatprep.subr.mxu0 0.0
      %2048 = vmatpush1.msra.mxu0 0.0
      %2049 = vmatprep.subr.mxu0 0.0
      %2050 = vmatpush1.msra.mxu0 0.0
      %2051 = vmatprep.subr.mxu0 0.0
      %2052 = vmatpush1.msra.mxu0 0.0
      %2053 = vmatprep.subr.mxu0 0.0
      %2054 = vmatpush1.msra.mxu0 0.0
      %2055 = vmatprep.subr.mxu0 0.0
      %2056 = vmatpush1.msra.mxu0 0.0
      %2057 = vmatprep.subr.mxu0 0.0
      %2058 = vmatpush1.msra.mxu0 0.0
      %2059 = vmatprep.subr.mxu0 0.0
      %2060 = vmatpush1.msra.mxu0 0.0
      %2061 = vmatprep.subr.mxu0 0.0
      %2062 = vmatpush1.msra.mxu0 0.0
      %2063 = vmatprep.subr.mxu0 0.0
      %2064 = vmatpush1.msra.mxu0 0.0
      %2065 = vmatprep.subr.mxu0 0.0
      %2066 = vmatpush1.msra.mxu0 0.0
      %2067 = vmatprep.subr.mxu0 0.0
      %2068 = vmatpush1.msra.mxu0 0.0
      %2069 = vmatprep.subr.mxu0 0.0
      %2070 = vmatpush1.msra.mxu0 0.0
      %2071 = vmatprep.subr.mxu0 0.0
      %2072 = vmatpush1.msra.mxu0 0.0
      %2073 = vmatprep.subr.mxu0 0.0
      %2074 = vmatpush1.msra.mxu0 0.0
      %2075 = vmatprep.subr.mxu0 0.0
      %2076 = vmatpush1.msra.mxu0 0.0
      %2077 = vmatprep.subr.mxu0 0.0
      %2078 = vmatpush1.msra.mxu0 0.0
      %2079 = vmatprep.subr.mxu0 0.0
      %2080 = vmatpush1.msra.mxu0 0.0
      %2081 = vmatprep.subr.mxu0 0.0
      %2082 = vmatpush1.msra.mxu0 0.0
      %2083 = vmatprep.subr.mxu0 0.0
      %2084 = vmatpush1.msra.mxu0 0.0
      %2085 = vmatprep.subr.mxu0 0.0
      %2086 = vmatpush1.msra.mxu0 0.0
      %2087 = vmatprep.subr.mxu0 0.0
      %2088 = vmatpush1.msra.mxu0 0.0
      %2089 = vmatprep.mubr.f32.mxu0 0.0
      %2090 = vmatmul.mubr.f32.gmra.mrb[0].mxu0 %v2020
      %v2091 = vpop.f32.mrb[0].mxu0
      %v2092 = vadd.f32 0.0, %v2091
      %v2093 = vpop.f32.mrb[0].mxu0
      %2094 = vdwg.mxu0
      %v2095 = vadd.f32 %v2015, %v2092
      %s2096 = scalar_lea.vmem %s2, 96
      %v2097 = vld [vmem:[%s2096] sm:$0xff]
      %v2098 = vld [vmem:[%s2096 + $0x8] sm:$0xf]
      %v2099 = vrot.slane %v1612, 6
      %v2100 = vsel %vm1617, %v2099, 0
      %v2103 = vsel %vm1621, %v2098, 0
      %2105 = vmatprep.subr.mxu0 0.0
      %2106 = vmatpush1.msra.mxu0 %v2097
      %2107 = vmatprep.subr.mxu0 0.0
      %2108 = vmatpush1.msra.mxu0 %v2103
      %2109 = vmatprep.subr.mxu0 0.0
      %2110 = vmatpush1.msra.mxu0 0.0
      %2111 = vmatprep.subr.mxu0 0.0
      %2112 = vmatpush1.msra.mxu0 0.0
      %2113 = vmatprep.subr.mxu0 0.0
      %2114 = vmatpush1.msra.mxu0 0.0
      %2115 = vmatprep.subr.mxu0 0.0
      %2116 = vmatpush1.msra.mxu0 0.0
      %2117 = vmatprep.subr.mxu0 0.0
      %2118 = vmatpush1.msra.mxu0 0.0
      %2119 = vmatprep.subr.mxu0 0.0
      %2120 = vmatpush1.msra.mxu0 0.0
      %2121 = vmatprep.subr.mxu0 0.0
      %2122 = vmatpush1.msra.mxu0 0.0
      %2123 = vmatprep.subr.mxu0 0.0
      %2124 = vmatpush1.msra.mxu0 0.0
      %2125 = vmatprep.subr.mxu0 0.0
      %2126 = vmatpush1.msra.mxu0 0.0
      %2127 = vmatprep.subr.mxu0 0.0
      %2128 = vmatpush1.msra.mxu0 0.0
      %2129 = vmatprep.subr.mxu0 0.0
      %2130 = vmatpush1.msra.mxu0 0.0
      %2131 = vmatprep.subr.mxu0 0.0
      %2132 = vmatpush1.msra.mxu0 0.0
      %2133 = vmatprep.subr.mxu0 0.0
      %2134 = vmatpush1.msra.mxu0 0.0
      %2135 = vmatprep.subr.mxu0 0.0
      %2136 = vmatpush1.msra.mxu0 0.0
      %2137 = vmatprep.subr.mxu0 0.0
      %2138 = vmatpush1.msra.mxu0 0.0
      %2139 = vmatprep.subr.mxu0 0.0
      %2140 = vmatpush1.msra.mxu0 0.0
      %2141 = vmatprep.subr.mxu0 0.0
      %2142 = vmatpush1.msra.mxu0 0.0
      %2143 = vmatprep.subr.mxu0 0.0
      %2144 = vmatpush1.msra.mxu0 0.0
      %2145 = vmatprep.subr.mxu0 0.0
      %2146 = vmatpush1.msra.mxu0 0.0
      %2147 = vmatprep.subr.mxu0 0.0
      %2148 = vmatpush1.msra.mxu0 0.0
      %2149 = vmatprep.subr.mxu0 0.0
      %2150 = vmatpush1.msra.mxu0 0.0
      %2151 = vmatprep.subr.mxu0 0.0
      %2152 = vmatpush1.msra.mxu0 0.0
      %2153 = vmatprep.subr.mxu0 0.0
      %2154 = vmatpush1.msra.mxu0 0.0
      %2155 = vmatprep.subr.mxu0 0.0
      %2156 = vmatpush1.msra.mxu0 0.0
      %2157 = vmatprep.subr.mxu0 0.0
      %2158 = vmatpush1.msra.mxu0 0.0
      %2159 = vmatprep.subr.mxu0 0.0
      %2160 = vmatpush1.msra.mxu0 0.0
      %2161 = vmatprep.subr.mxu0 0.0
      %2162 = vmatpush1.msra.mxu0 0.0
      %2163 = vmatprep.subr.mxu0 0.0
      %2164 = vmatpush1.msra.mxu0 0.0
      %2165 = vmatprep.subr.mxu0 0.0
      %2166 = vmatpush1.msra.mxu0 0.0
      %2167 = vmatprep.subr.mxu0 0.0
      %2168 = vmatpush1.msra.mxu0 0.0
      %2169 = vmatprep.mubr.f32.mxu0 0.0
      %2170 = vmatmul.mubr.f32.gmra.mrb[0].mxu0 %v2100
      %v2171 = vpop.f32.mrb[0].mxu0
      %v2172 = vadd.f32 0.0, %v2171
      %v2173 = vpop.f32.mrb[0].mxu0
      %2174 = vdwg.mxu0
      %v2175 = vadd.f32 %v2095, %v2172
      %s2176 = scalar_lea.vmem %s2, 112
      %v2177 = vld [vmem:[%s2176] sm:$0xff]
      %v2178 = vld [vmem:[%s2176 + $0x8] sm:$0xf]
      %v2179 = vrot.slane %v1612, 7
      %v2180 = vsel %vm1617, %v2179, 0
      %v2183 = vsel %vm1621, %v2178, 0
      %2185 = vmatprep.subr.mxu0 0.0
      %2186 = vmatpush1.msra.mxu0 %v2177
      %2187 = vmatprep.subr.mxu0 0.0
      %2188 = vmatpush1.msra.mxu0 %v2183
      %2189 = vmatprep.subr.mxu0 0.0
      %2190 = vmatpush1.msra.mxu0 0.0
      %2191 = vmatprep.subr.mxu0 0.0
      %2192 = vmatpush1.msra.mxu0 0.0
      %2193 = vmatprep.subr.mxu0 0.0
      %2194 = vmatpush1.msra.mxu0 0.0
      %2195 = vmatprep.subr.mxu0 0.0
      %2196 = vmatpush1.msra.mxu0 0.0
      %2197 = vmatprep.subr.mxu0 0.0
      %2198 = vmatpush1.msra.mxu0 0.0
      %2199 = vmatprep.subr.mxu0 0.0
      %2200 = vmatpush1.msra.mxu0 0.0
      %2201 = vmatprep.subr.mxu0 0.0
      %2202 = vmatpush1.msra.mxu0 0.0
      %2203 = vmatprep.subr.mxu0 0.0
      %2204 = vmatpush1.msra.mxu0 0.0
      %2205 = vmatprep.subr.mxu0 0.0
      %2206 = vmatpush1.msra.mxu0 0.0
      %2207 = vmatprep.subr.mxu0 0.0
      %2208 = vmatpush1.msra.mxu0 0.0
      %2209 = vmatprep.subr.mxu0 0.0
      %2210 = vmatpush1.msra.mxu0 0.0
      %2211 = vmatprep.subr.mxu0 0.0
      %2212 = vmatpush1.msra.mxu0 0.0
      %2213 = vmatprep.subr.mxu0 0.0
      %2214 = vmatpush1.msra.mxu0 0.0
      %2215 = vmatprep.subr.mxu0 0.0
      %2216 = vmatpush1.msra.mxu0 0.0
      %2217 = vmatprep.subr.mxu0 0.0
      %2218 = vmatpush1.msra.mxu0 0.0
      %2219 = vmatprep.subr.mxu0 0.0
      %2220 = vmatpush1.msra.mxu0 0.0
      %2221 = vmatprep.subr.mxu0 0.0
      %2222 = vmatpush1.msra.mxu0 0.0
      %2223 = vmatprep.subr.mxu0 0.0
      %2224 = vmatpush1.msra.mxu0 0.0
      %2225 = vmatprep.subr.mxu0 0.0
      %2226 = vmatpush1.msra.mxu0 0.0
      %2227 = vmatprep.subr.mxu0 0.0
      %2228 = vmatpush1.msra.mxu0 0.0
      %2229 = vmatprep.subr.mxu0 0.0
      %2230 = vmatpush1.msra.mxu0 0.0
      %2231 = vmatprep.subr.mxu0 0.0
      %2232 = vmatpush1.msra.mxu0 0.0
      %2233 = vmatprep.subr.mxu0 0.0
      %2234 = vmatpush1.msra.mxu0 0.0
      %2235 = vmatprep.subr.mxu0 0.0
      %2236 = vmatpush1.msra.mxu0 0.0
      %2237 = vmatprep.subr.mxu0 0.0
      %2238 = vmatpush1.msra.mxu0 0.0
      %2239 = vmatprep.subr.mxu0 0.0
      %2240 = vmatpush1.msra.mxu0 0.0
      %2241 = vmatprep.subr.mxu0 0.0
      %2242 = vmatpush1.msra.mxu0 0.0
      %2243 = vmatprep.subr.mxu0 0.0
      %2244 = vmatpush1.msra.mxu0 0.0
      %2245 = vmatprep.subr.mxu0 0.0
      %2246 = vmatpush1.msra.mxu0 0.0
      %2247 = vmatprep.subr.mxu0 0.0
      %2248 = vmatpush1.msra.mxu0 0.0
      %2249 = vmatprep.mubr.f32.mxu0 0.0
      %2250 = vmatmul.mubr.f32.gmra.mrb[0].mxu0 %v2180
      %v2251 = vpop.f32.mrb[0].mxu0
      %v2252 = vadd.f32 0.0, %v2251
      %v2253 = vpop.f32.mrb[0].mxu0
      %2254 = vdwg.mxu0
      %v2255 = vadd.f32 %v2175, %v2252
      %s2256 = scalar_lea.vmem %s2, 128
      %v2257 = vld [vmem:[%s2256] sm:$0xff]
      %v2258 = vld [vmem:[%s2256 + $0x8] sm:$0xf]
      %v2260 = vsel %vm1617, %v1613, 0
      %v2263 = vsel %vm1621, %v2258, 0
      %2265 = vmatprep.subr.mxu0 0.0
      %2266 = vmatpush1.msra.mxu0 %v2257
      %2267 = vmatprep.subr.mxu0 0.0
      %2268 = vmatpush1.msra.mxu0 %v2263
      %2269 = vmatprep.subr.mxu0 0.0
      %2270 = vmatpush1.msra.mxu0 0.0
      %2271 = vmatprep.subr.mxu0 0.0
      %2272 = vmatpush1.msra.mxu0 0.0
      %2273 = vmatprep.subr.mxu0 0.0
      %2274 = vmatpush1.msra.mxu0 0.0
      %2275 = vmatprep.subr.mxu0 0.0
      %2276 = vmatpush1.msra.mxu0 0.0
      %2277 = vmatprep.subr.mxu0 0.0
      %2278 = vmatpush1.msra.mxu0 0.0
      %2279 = vmatprep.subr.mxu0 0.0
      %2280 = vmatpush1.msra.mxu0 0.0
      %2281 = vmatprep.subr.mxu0 0.0
      %2282 = vmatpush1.msra.mxu0 0.0
      %2283 = vmatprep.subr.mxu0 0.0
      %2284 = vmatpush1.msra.mxu0 0.0
      %2285 = vmatprep.subr.mxu0 0.0
      %2286 = vmatpush1.msra.mxu0 0.0
      %2287 = vmatprep.subr.mxu0 0.0
      %2288 = vmatpush1.msra.mxu0 0.0
      %2289 = vmatprep.subr.mxu0 0.0
      %2290 = vmatpush1.msra.mxu0 0.0
      %2291 = vmatprep.subr.mxu0 0.0
      %2292 = vmatpush1.msra.mxu0 0.0
      %2293 = vmatprep.subr.mxu0 0.0
      %2294 = vmatpush1.msra.mxu0 0.0
      %2295 = vmatprep.subr.mxu0 0.0
      %2296 = vmatpush1.msra.mxu0 0.0
      %2297 = vmatprep.subr.mxu0 0.0
      %2298 = vmatpush1.msra.mxu0 0.0
      %2299 = vmatprep.subr.mxu0 0.0
      %2300 = vmatpush1.msra.mxu0 0.0
      %2301 = vmatprep.subr.mxu0 0.0
      %2302 = vmatpush1.msra.mxu0 0.0
      %2303 = vmatprep.subr.mxu0 0.0
      %2304 = vmatpush1.msra.mxu0 0.0
      %2305 = vmatprep.subr.mxu0 0.0
      %2306 = vmatpush1.msra.mxu0 0.0
      %2307 = vmatprep.subr.mxu0 0.0
      %2308 = vmatpush1.msra.mxu0 0.0
      %2309 = vmatprep.subr.mxu0 0.0
      %2310 = vmatpush1.msra.mxu0 0.0
      %2311 = vmatprep.subr.mxu0 0.0
      %2312 = vmatpush1.msra.mxu0 0.0
      %2313 = vmatprep.subr.mxu0 0.0
      %2314 = vmatpush1.msra.mxu0 0.0
      %2315 = vmatprep.subr.mxu0 0.0
      %2316 = vmatpush1.msra.mxu0 0.0
      %2317 = vmatprep.subr.mxu0 0.0
      %2318 = vmatpush1.msra.mxu0 0.0
      %2319 = vmatprep.subr.mxu0 0.0
      %2320 = vmatpush1.msra.mxu0 0.0
      %2321 = vmatprep.subr.mxu0 0.0
      %2322 = vmatpush1.msra.mxu0 0.0
      %2323 = vmatprep.subr.mxu0 0.0
      %2324 = vmatpush1.msra.mxu0 0.0
      %2325 = vmatprep.subr.mxu0 0.0
      %2326 = vmatpush1.msra.mxu0 0.0
      %2327 = vmatprep.subr.mxu0 0.0
      %2328 = vmatpush1.msra.mxu0 0.0
      %2329 = vmatprep.mubr.f32.mxu0 0.0
      %2330 = vmatmul.mubr.f32.gmra.mrb[0].mxu0 %v2260
      %v2331 = vpop.f32.mrb[0].mxu0
      %v2332 = vadd.f32 0.0, %v2331
      %v2333 = vpop.f32.mrb[0].mxu0
      %2334 = vdwg.mxu0
      %v2335 = vadd.f32 %v2255, %v2332
      %s2336 = scalar_lea.vmem %s2, 144
      %v2337 = vld [vmem:[%s2336] sm:$0xff]
      %v2338 = vld [vmem:[%s2336 + $0x8] sm:$0xf]
      %v2339 = vrot.slane %v1613, 1
      %v2340 = vsel %vm1617, %v2339, 0
      %v2343 = vsel %vm1621, %v2338, 0
      %2345 = vmatprep.subr.mxu0 0.0
      %2346 = vmatpush1.msra.mxu0 %v2337
      %2347 = vmatprep.subr.mxu0 0.0
      %2348 = vmatpush1.msra.mxu0 %v2343
      %2349 = vmatprep.subr.mxu0 0.0
      %2350 = vmatpush1.msra.mxu0 0.0
      %2351 = vmatprep.subr.mxu0 0.0
      %2352 = vmatpush1.msra.mxu0 0.0
      %2353 = vmatprep.subr.mxu0 0.0
      %2354 = vmatpush1.msra.mxu0 0.0
      %2355 = vmatprep.subr.mxu0 0.0
      %2356 = vmatpush1.msra.mxu0 0.0
      %2357 = vmatprep.subr.mxu0 0.0
      %2358 = vmatpush1.msra.mxu0 0.0
      %2359 = vmatprep.subr.mxu0 0.0
      %2360 = vmatpush1.msra.mxu0 0.0
      %2361 = vmatprep.subr.mxu0 0.0
      %2362 = vmatpush1.msra.mxu0 0.0
      %2363 = vmatprep.subr.mxu0 0.0
      %2364 = vmatpush1.msra.mxu0 0.0
      %2365 = vmatprep.subr.mxu0 0.0
      %2366 = vmatpush1.msra.mxu0 0.0
      %2367 = vmatprep.subr.mxu0 0.0
      %2368 = vmatpush1.msra.mxu0 0.0
      %2369 = vmatprep.subr.mxu0 0.0
      %2370 = vmatpush1.msra.mxu0 0.0
      %2371 = vmatprep.subr.mxu0 0.0
      %2372 = vmatpush1.msra.mxu0 0.0
      %2373 = vmatprep.subr.mxu0 0.0
      %2374 = vmatpush1.msra.mxu0 0.0
      %2375 = vmatprep.subr.mxu0 0.0
      %2376 = vmatpush1.msra.mxu0 0.0
      %2377 = vmatprep.subr.mxu0 0.0
      %2378 = vmatpush1.msra.mxu0 0.0
      %2379 = vmatprep.subr.mxu0 0.0
      %2380 = vmatpush1.msra.mxu0 0.0
      %2381 = vmatprep.subr.mxu0 0.0
      %2382 = vmatpush1.msra.mxu0 0.0
      %2383 = vmatprep.subr.mxu0 0.0
      %2384 = vmatpush1.msra.mxu0 0.0
      %2385 = vmatprep.subr.mxu0 0.0
      %2386 = vmatpush1.msra.mxu0 0.0
      %2387 = vmatprep.subr.mxu0 0.0
      %2388 = vmatpush1.msra.mxu0 0.0
      %2389 = vmatprep.subr.mxu0 0.0
      %2390 = vmatpush1.msra.mxu0 0.0
      %2391 = vmatprep.subr.mxu0 0.0
      %2392 = vmatpush1.msra.mxu0 0.0
      %2393 = vmatprep.subr.mxu0 0.0
      %2394 = vmatpush1.msra.mxu0 0.0
      %2395 = vmatprep.subr.mxu0 0.0
      %2396 = vmatpush1.msra.mxu0 0.0
      %2397 = vmatprep.subr.mxu0 0.0
      %2398 = vmatpush1.msra.mxu0 0.0
      %2399 = vmatprep.subr.mxu0 0.0
      %2400 = vmatpush1.msra.mxu0 0.0
      %2401 = vmatprep.subr.mxu0 0.0
      %2402 = vmatpush1.msra.mxu0 0.0
      %2403 = vmatprep.subr.mxu0 0.0
      %2404 = vmatpush1.msra.mxu0 0.0
      %2405 = vmatprep.subr.mxu0 0.0
      %2406 = vmatpush1.msra.mxu0 0.0
      %2407 = vmatprep.subr.mxu0 0.0
      %2408 = vmatpush1.msra.mxu0 0.0
      %2409 = vmatprep.mubr.f32.mxu0 0.0
      %2410 = vmatmul.mubr.f32.gmra.mrb[0].mxu0 %v2340
      %v2411 = vpop.f32.mrb[0].mxu0
      %v2412 = vadd.f32 0.0, %v2411
      %v2413 = vpop.f32.mrb[0].mxu0
      %2414 = vdwg.mxu0
      %v2415 = vadd.f32 %v2335, %v2412
      %s2416 = scalar_lea.vmem %s2, 160
      %v2417 = vld [vmem:[%s2416] sm:$0xff]
      %v2418 = vld [vmem:[%s2416 + $0x8] sm:$0xf]
      %v2419 = vrot.slane %v1613, 2
      %v2420 = vsel %vm1617, %v2419, 0
      %v2423 = vsel %vm1621, %v2418, 0
      %2425 = vmatprep.subr.mxu0 0.0
      %2426 = vmatpush1.msra.mxu0 %v2417
      %2427 = vmatprep.subr.mxu0 0.0
      %2428 = vmatpush1.msra.mxu0 %v2423
      %2429 = vmatprep.subr.mxu0 0.0
      %2430 = vmatpush1.msra.mxu0 0.0
      %2431 = vmatprep.subr.mxu0 0.0
      %2432 = vmatpush1.msra.mxu0 0.0
      %2433 = vmatprep.subr.mxu0 0.0
      %2434 = vmatpush1.msra.mxu0 0.0
      %2435 = vmatprep.subr.mxu0 0.0
      %2436 = vmatpush1.msra.mxu0 0.0
      %2437 = vmatprep.subr.mxu0 0.0
      %2438 = vmatpush1.msra.mxu0 0.0
      %2439 = vmatprep.subr.mxu0 0.0
      %2440 = vmatpush1.msra.mxu0 0.0
      %2441 = vmatprep.subr.mxu0 0.0
      %2442 = vmatpush1.msra.mxu0 0.0
      %2443 = vmatprep.subr.mxu0 0.0
      %2444 = vmatpush1.msra.mxu0 0.0
      %2445 = vmatprep.subr.mxu0 0.0
      %2446 = vmatpush1.msra.mxu0 0.0
      %2447 = vmatprep.subr.mxu0 0.0
      %2448 = vmatpush1.msra.mxu0 0.0
      %2449 = vmatprep.subr.mxu0 0.0
      %2450 = vmatpush1.msra.mxu0 0.0
      %2451 = vmatprep.subr.mxu0 0.0
      %2452 = vmatpush1.msra.mxu0 0.0
      %2453 = vmatprep.subr.mxu0 0.0
      %2454 = vmatpush1.msra.mxu0 0.0
      %2455 = vmatprep.subr.mxu0 0.0
      %2456 = vmatpush1.msra.mxu0 0.0
      %2457 = vmatprep.subr.mxu0 0.0
      %2458 = vmatpush1.msra.mxu0 0.0
      %2459 = vmatprep.subr.mxu0 0.0
      %2460 = vmatpush1.msra.mxu0 0.0
      %2461 = vmatprep.subr.mxu0 0.0
      %2462 = vmatpush1.msra.mxu0 0.0
      %2463 = vmatprep.subr.mxu0 0.0
      %2464 = vmatpush1.msra.mxu0 0.0
      %2465 = vmatprep.subr.mxu0 0.0
      %2466 = vmatpush1.msra.mxu0 0.0
      %2467 = vmatprep.subr.mxu0 0.0
      %2468 = vmatpush1.msra.mxu0 0.0
      %2469 = vmatprep.subr.mxu0 0.0
      %2470 = vmatpush1.msra.mxu0 0.0
      %2471 = vmatprep.subr.mxu0 0.0
      %2472 = vmatpush1.msra.mxu0 0.0
      %2473 = vmatprep.subr.mxu0 0.0
      %2474 = vmatpush1.msra.mxu0 0.0
      %2475 = vmatprep.subr.mxu0 0.0
      %2476 = vmatpush1.msra.mxu0 0.0
      %2477 = vmatprep.subr.mxu0 0.0
      %2478 = vmatpush1.msra.mxu0 0.0
      %2479 = vmatprep.subr.mxu0 0.0
      %2480 = vmatpush1.msra.mxu0 0.0
      %2481 = vmatprep.subr.mxu0 0.0
      %2482 = vmatpush1.msra.mxu0 0.0
      %2483 = vmatprep.subr.mxu0 0.0
      %2484 = vmatpush1.msra.mxu0 0.0
      %2485 = vmatprep.subr.mxu0 0.0
      %2486 = vmatpush1.msra.mxu0 0.0
      %2487 = vmatprep.subr.mxu0 0.0
      %2488 = vmatpush1.msra.mxu0 0.0
      %2489 = vmatprep.mubr.f32.mxu0 0.0
      %2490 = vmatmul.mubr.f32.gmra.mrb[0].mxu0 %v2420
      %v2491 = vpop.f32.mrb[0].mxu0
      %v2492 = vadd.f32 0.0, %v2491
      %v2493 = vpop.f32.mrb[0].mxu0
      %2494 = vdwg.mxu0
      %v2495 = vadd.f32 %v2415, %v2492
      %s2496 = scalar_lea.vmem %s2, 176
      %v2497 = vld [vmem:[%s2496] sm:$0xff]
      %v2498 = vld [vmem:[%s2496 + $0x8] sm:$0xf]
      %v2499 = vrot.slane %v1613, 3
      %v2500 = vsel %vm1617, %v2499, 0
      %v2503 = vsel %vm1621, %v2498, 0
      %2505 = vmatprep.subr.mxu0 0.0
      %2506 = vmatpush1.msra.mxu0 %v2497
      %2507 = vmatprep.subr.mxu0 0.0
      %2508 = vmatpush1.msra.mxu0 %v2503
      %2509 = vmatprep.subr.mxu0 0.0
      %2510 = vmatpush1.msra.mxu0 0.0
      %2511 = vmatprep.subr.mxu0 0.0
      %2512 = vmatpush1.msra.mxu0 0.0
      %2513 = vmatprep.subr.mxu0 0.0
      %2514 = vmatpush1.msra.mxu0 0.0
      %2515 = vmatprep.subr.mxu0 0.0
      %2516 = vmatpush1.msra.mxu0 0.0
      %2517 = vmatprep.subr.mxu0 0.0
      %2518 = vmatpush1.msra.mxu0 0.0
      %2519 = vmatprep.subr.mxu0 0.0
      %2520 = vmatpush1.msra.mxu0 0.0
      %2521 = vmatprep.subr.mxu0 0.0
      %2522 = vmatpush1.msra.mxu0 0.0
      %2523 = vmatprep.subr.mxu0 0.0
      %2524 = vmatpush1.msra.mxu0 0.0
      %2525 = vmatprep.subr.mxu0 0.0
      %2526 = vmatpush1.msra.mxu0 0.0
      %2527 = vmatprep.subr.mxu0 0.0
      %2528 = vmatpush1.msra.mxu0 0.0
      %2529 = vmatprep.subr.mxu0 0.0
      %2530 = vmatpush1.msra.mxu0 0.0
      %2531 = vmatprep.subr.mxu0 0.0
      %2532 = vmatpush1.msra.mxu0 0.0
      %2533 = vmatprep.subr.mxu0 0.0
      %2534 = vmatpush1.msra.mxu0 0.0
      %2535 = vmatprep.subr.mxu0 0.0
      %2536 = vmatpush1.msra.mxu0 0.0
      %2537 = vmatprep.subr.mxu0 0.0
      %2538 = vmatpush1.msra.mxu0 0.0
      %2539 = vmatprep.subr.mxu0 0.0
      %2540 = vmatpush1.msra.mxu0 0.0
      %2541 = vmatprep.subr.mxu0 0.0
      %2542 = vmatpush1.msra.mxu0 0.0
      %2543 = vmatprep.subr.mxu0 0.0
      %2544 = vmatpush1.msra.mxu0 0.0
      %2545 = vmatprep.subr.mxu0 0.0
      %2546 = vmatpush1.msra.mxu0 0.0
      %2547 = vmatprep.subr.mxu0 0.0
      %2548 = vmatpush1.msra.mxu0 0.0
      %2549 = vmatprep.subr.mxu0 0.0
      %2550 = vmatpush1.msra.mxu0 0.0
      %2551 = vmatprep.subr.mxu0 0.0
      %2552 = vmatpush1.msra.mxu0 0.0
      %2553 = vmatprep.subr.mxu0 0.0
      %2554 = vmatpush1.msra.mxu0 0.0
      %2555 = vmatprep.subr.mxu0 0.0
      %2556 = vmatpush1.msra.mxu0 0.0
      %2557 = vmatprep.subr.mxu0 0.0
      %2558 = vmatpush1.msra.mxu0 0.0
      %2559 = vmatprep.subr.mxu0 0.0
      %2560 = vmatpush1.msra.mxu0 0.0
      %2561 = vmatprep.subr.mxu0 0.0
      %2562 = vmatpush1.msra.mxu0 0.0
      %2563 = vmatprep.subr.mxu0 0.0
      %2564 = vmatpush1.msra.mxu0 0.0
      %2565 = vmatprep.subr.mxu0 0.0
      %2566 = vmatpush1.msra.mxu0 0.0
      %2567 = vmatprep.subr.mxu0 0.0
      %2568 = vmatpush1.msra.mxu0 0.0
      %2569 = vmatprep.mubr.f32.mxu0 0.0
      %2570 = vmatmul.mubr.f32.gmra.mrb[0].mxu0 %v2500
      %v2571 = vpop.f32.mrb[0].mxu0
      %v2572 = vadd.f32 0.0, %v2571
      %v2573 = vpop.f32.mrb[0].mxu0
      %2574 = vdwg.mxu0
      %v2575 = vadd.f32 %v2495, %v2572
      %s2576 = scalar_lea.vmem %s2, 192
      %v2577 = vld [vmem:[%s2576] sm:$0xff]
      %v2578 = vld [vmem:[%s2576 + $0x8] sm:$0xf]
      %v2579 = vrot.slane %v1613, 4
      %v2580 = vsel %vm1617, %v2579, 0
      %v2583 = vsel %vm1621, %v2578, 0
      %2585 = vmatprep.subr.mxu0 0.0
      %2586 = vmatpush1.msra.mxu0 %v2577
      %2587 = vmatprep.subr.mxu0 0.0
      %2588 = vmatpush1.msra.mxu0 %v2583
      %2589 = vmatprep.subr.mxu0 0.0
      %2590 = vmatpush1.msra.mxu0 0.0
      %2591 = vmatprep.subr.mxu0 0.0
      %2592 = vmatpush1.msra.mxu0 0.0
      %2593 = vmatprep.subr.mxu0 0.0
      %2594 = vmatpush1.msra.mxu0 0.0
      %2595 = vmatprep.subr.mxu0 0.0
      %2596 = vmatpush1.msra.mxu0 0.0
      %2597 = vmatprep.subr.mxu0 0.0
      %2598 = vmatpush1.msra.mxu0 0.0
      %2599 = vmatprep.subr.mxu0 0.0
      %2600 = vmatpush1.msra.mxu0 0.0
      %2601 = vmatprep.subr.mxu0 0.0
      %2602 = vmatpush1.msra.mxu0 0.0
      %2603 = vmatprep.subr.mxu0 0.0
      %2604 = vmatpush1.msra.mxu0 0.0
      %2605 = vmatprep.subr.mxu0 0.0
      %2606 = vmatpush1.msra.mxu0 0.0
      %2607 = vmatprep.subr.mxu0 0.0
      %2608 = vmatpush1.msra.mxu0 0.0
      %2609 = vmatprep.subr.mxu0 0.0
      %2610 = vmatpush1.msra.mxu0 0.0
      %2611 = vmatprep.subr.mxu0 0.0
      %2612 = vmatpush1.msra.mxu0 0.0
      %2613 = vmatprep.subr.mxu0 0.0
      %2614 = vmatpush1.msra.mxu0 0.0
      %2615 = vmatprep.subr.mxu0 0.0
      %2616 = vmatpush1.msra.mxu0 0.0
      %2617 = vmatprep.subr.mxu0 0.0
      %2618 = vmatpush1.msra.mxu0 0.0
      %2619 = vmatprep.subr.mxu0 0.0
      %2620 = vmatpush1.msra.mxu0 0.0
      %2621 = vmatprep.subr.mxu0 0.0
      %2622 = vmatpush1.msra.mxu0 0.0
      %2623 = vmatprep.subr.mxu0 0.0
      %2624 = vmatpush1.msra.mxu0 0.0
      %2625 = vmatprep.subr.mxu0 0.0
      %2626 = vmatpush1.msra.mxu0 0.0
      %2627 = vmatprep.subr.mxu0 0.0
      %2628 = vmatpush1.msra.mxu0 0.0
      %2629 = vmatprep.subr.mxu0 0.0
      %2630 = vmatpush1.msra.mxu0 0.0
      %2631 = vmatprep.subr.mxu0 0.0
      %2632 = vmatpush1.msra.mxu0 0.0
      %2633 = vmatprep.subr.mxu0 0.0
      %2634 = vmatpush1.msra.mxu0 0.0
      %2635 = vmatprep.subr.mxu0 0.0
      %2636 = vmatpush1.msra.mxu0 0.0
      %2637 = vmatprep.subr.mxu0 0.0
      %2638 = vmatpush1.msra.mxu0 0.0
      %2639 = vmatprep.subr.mxu0 0.0
      %2640 = vmatpush1.msra.mxu0 0.0
      %2641 = vmatprep.subr.mxu0 0.0
      %2642 = vmatpush1.msra.mxu0 0.0
      %2643 = vmatprep.subr.mxu0 0.0
      %2644 = vmatpush1.msra.mxu0 0.0
      %2645 = vmatprep.subr.mxu0 0.0
      %2646 = vmatpush1.msra.mxu0 0.0
      %2647 = vmatprep.subr.mxu0 0.0
      %2648 = vmatpush1.msra.mxu0 0.0
      %2649 = vmatprep.mubr.f32.mxu0 0.0
      %2650 = vmatmul.mubr.f32.gmra.mrb[0].mxu0 %v2580
      %v2651 = vpop.f32.mrb[0].mxu0
      %v2652 = vadd.f32 0.0, %v2651
      %v2653 = vpop.f32.mrb[0].mxu0
      %2654 = vdwg.mxu0
      %v2655 = vadd.f32 %v2575, %v2652
      %s2656 = scalar_lea.vmem %s2, 208
      %v2657 = vld [vmem:[%s2656] sm:$0xff]
      %v2658 = vld [vmem:[%s2656 + $0x8] sm:$0xf]
      %v2659 = vrot.slane %v1613, 5
      %v2660 = vsel %vm1617, %v2659, 0
      %v2663 = vsel %vm1621, %v2658, 0
      %2665 = vmatprep.subr.mxu0 0.0
      %2666 = vmatpush1.msra.mxu0 %v2657
      %2667 = vmatprep.subr.mxu0 0.0
      %2668 = vmatpush1.msra.mxu0 %v2663
      %2669 = vmatprep.subr.mxu0 0.0
      %2670 = vmatpush1.msra.mxu0 0.0
      %2671 = vmatprep.subr.mxu0 0.0
      %2672 = vmatpush1.msra.mxu0 0.0
      %2673 = vmatprep.subr.mxu0 0.0
      %2674 = vmatpush1.msra.mxu0 0.0
      %2675 = vmatprep.subr.mxu0 0.0
      %2676 = vmatpush1.msra.mxu0 0.0
      %2677 = vmatprep.subr.mxu0 0.0
      %2678 = vmatpush1.msra.mxu0 0.0
      %2679 = vmatprep.subr.mxu0 0.0
      %2680 = vmatpush1.msra.mxu0 0.0
      %2681 = vmatprep.subr.mxu0 0.0
      %2682 = vmatpush1.msra.mxu0 0.0
      %2683 = vmatprep.subr.mxu0 0.0
      %2684 = vmatpush1.msra.mxu0 0.0
      %2685 = vmatprep.subr.mxu0 0.0
      %2686 = vmatpush1.msra.mxu0 0.0
      %2687 = vmatprep.subr.mxu0 0.0
      %2688 = vmatpush1.msra.mxu0 0.0
      %2689 = vmatprep.subr.mxu0 0.0
      %2690 = vmatpush1.msra.mxu0 0.0
      %2691 = vmatprep.subr.mxu0 0.0
      %2692 = vmatpush1.msra.mxu0 0.0
      %2693 = vmatprep.subr.mxu0 0.0
      %2694 = vmatpush1.msra.mxu0 0.0
      %2695 = vmatprep.subr.mxu0 0.0
      %2696 = vmatpush1.msra.mxu0 0.0
      %2697 = vmatprep.subr.mxu0 0.0
      %2698 = vmatpush1.msra.mxu0 0.0
      %2699 = vmatprep.subr.mxu0 0.0
      %2700 = vmatpush1.msra.mxu0 0.0
      %2701 = vmatprep.subr.mxu0 0.0
      %2702 = vmatpush1.msra.mxu0 0.0
      %2703 = vmatprep.subr.mxu0 0.0
      %2704 = vmatpush1.msra.mxu0 0.0
      %2705 = vmatprep.subr.mxu0 0.0
      %2706 = vmatpush1.msra.mxu0 0.0
      %2707 = vmatprep.subr.mxu0 0.0
      %2708 = vmatpush1.msra.mxu0 0.0
      %2709 = vmatprep.subr.mxu0 0.0
      %2710 = vmatpush1.msra.mxu0 0.0
      %2711 = vmatprep.subr.mxu0 0.0
      %2712 = vmatpush1.msra.mxu0 0.0
      %2713 = vmatprep.subr.mxu0 0.0
      %2714 = vmatpush1.msra.mxu0 0.0
      %2715 = vmatprep.subr.mxu0 0.0
      %2716 = vmatpush1.msra.mxu0 0.0
      %2717 = vmatprep.subr.mxu0 0.0
      %2718 = vmatpush1.msra.mxu0 0.0
      %2719 = vmatprep.subr.mxu0 0.0
      %2720 = vmatpush1.msra.mxu0 0.0
      %2721 = vmatprep.subr.mxu0 0.0
      %2722 = vmatpush1.msra.mxu0 0.0
      %2723 = vmatprep.subr.mxu0 0.0
      %2724 = vmatpush1.msra.mxu0 0.0
      %2725 = vmatprep.subr.mxu0 0.0
      %2726 = vmatpush1.msra.mxu0 0.0
      %2727 = vmatprep.subr.mxu0 0.0
      %2728 = vmatpush1.msra.mxu0 0.0
      %2729 = vmatprep.mubr.f32.mxu0 0.0
      %2730 = vmatmul.mubr.f32.gmra.mrb[0].mxu0 %v2660
      %v2731 = vpop.f32.mrb[0].mxu0
      %v2732 = vadd.f32 0.0, %v2731
      %v2733 = vpop.f32.mrb[0].mxu0
      %2734 = vdwg.mxu0
      %v2735 = vadd.f32 %v2655, %v2732
      %s2736 = scalar_lea.vmem %s2, 224
      %v2737 = vld [vmem:[%s2736] sm:$0xff]
      %v2738 = vld [vmem:[%s2736 + $0x8] sm:$0xf]
      %v2739 = vrot.slane %v1613, 6
      %v2740 = vsel %vm1617, %v2739, 0
      %v2743 = vsel %vm1621, %v2738, 0
      %2745 = vmatprep.subr.mxu0 0.0
      %2746 = vmatpush1.msra.mxu0 %v2737
      %2747 = vmatprep.subr.mxu0 0.0
      %2748 = vmatpush1.msra.mxu0 %v2743
      %2749 = vmatprep.subr.mxu0 0.0
      %2750 = vmatpush1.msra.mxu0 0.0
      %2751 = vmatprep.subr.mxu0 0.0
      %2752 = vmatpush1.msra.mxu0 0.0
      %2753 = vmatprep.subr.mxu0 0.0
      %2754 = vmatpush1.msra.mxu0 0.0
      %2755 = vmatprep.subr.mxu0 0.0
      %2756 = vmatpush1.msra.mxu0 0.0
      %2757 = vmatprep.subr.mxu0 0.0
      %2758 = vmatpush1.msra.mxu0 0.0
      %2759 = vmatprep.subr.mxu0 0.0
      %2760 = vmatpush1.msra.mxu0 0.0
      %2761 = vmatprep.subr.mxu0 0.0
      %2762 = vmatpush1.msra.mxu0 0.0
      %2763 = vmatprep.subr.mxu0 0.0
      %2764 = vmatpush1.msra.mxu0 0.0
      %2765 = vmatprep.subr.mxu0 0.0
      %2766 = vmatpush1.msra.mxu0 0.0
      %2767 = vmatprep.subr.mxu0 0.0
      %2768 = vmatpush1.msra.mxu0 0.0
      %2769 = vmatprep.subr.mxu0 0.0
      %2770 = vmatpush1.msra.mxu0 0.0
      %2771 = vmatprep.subr.mxu0 0.0
      %2772 = vmatpush1.msra.mxu0 0.0
      %2773 = vmatprep.subr.mxu0 0.0
      %2774 = vmatpush1.msra.mxu0 0.0
      %2775 = vmatprep.subr.mxu0 0.0
      %2776 = vmatpush1.msra.mxu0 0.0
      %2777 = vmatprep.subr.mxu0 0.0
      %2778 = vmatpush1.msra.mxu0 0.0
      %2779 = vmatprep.subr.mxu0 0.0
      %2780 = vmatpush1.msra.mxu0 0.0
      %2781 = vmatprep.subr.mxu0 0.0
      %2782 = vmatpush1.msra.mxu0 0.0
      %2783 = vmatprep.subr.mxu0 0.0
      %2784 = vmatpush1.msra.mxu0 0.0
      %2785 = vmatprep.subr.mxu0 0.0
      %2786 = vmatpush1.msra.mxu0 0.0
      %2787 = vmatprep.subr.mxu0 0.0
      %2788 = vmatpush1.msra.mxu0 0.0
      %2789 = vmatprep.subr.mxu0 0.0
      %2790 = vmatpush1.msra.mxu0 0.0
      %2791 = vmatprep.subr.mxu0 0.0
      %2792 = vmatpush1.msra.mxu0 0.0
      %2793 = vmatprep.subr.mxu0 0.0
      %2794 = vmatpush1.msra.mxu0 0.0
      %2795 = vmatprep.subr.mxu0 0.0
      %2796 = vmatpush1.msra.mxu0 0.0
      %2797 = vmatprep.subr.mxu0 0.0
      %2798 = vmatpush1.msra.mxu0 0.0
      %2799 = vmatprep.subr.mxu0 0.0
      %2800 = vmatpush1.msra.mxu0 0.0
      %2801 = vmatprep.subr.mxu0 0.0
      %2802 = vmatpush1.msra.mxu0 0.0
      %2803 = vmatprep.subr.mxu0 0.0
      %2804 = vmatpush1.msra.mxu0 0.0
      %2805 = vmatprep.subr.mxu0 0.0
      %2806 = vmatpush1.msra.mxu0 0.0
      %2807 = vmatprep.subr.mxu0 0.0
      %2808 = vmatpush1.msra.mxu0 0.0
      %2809 = vmatprep.mubr.f32.mxu0 0.0
      %2810 = vmatmul.mubr.f32.gmra.mrb[0].mxu0 %v2740
      %v2811 = vpop.f32.mrb[0].mxu0
      %v2812 = vadd.f32 0.0, %v2811
      %v2813 = vpop.f32.mrb[0].mxu0
      %2814 = vdwg.mxu0
      %v2815 = vadd.f32 %v2735, %v2812
      %s2816 = scalar_lea.vmem %s2, 240
      %v2817 = vld [vmem:[%s2816] sm:$0xff]
      %v2818 = vld [vmem:[%s2816 + $0x8] sm:$0xf]
      %v2819 = vrot.slane %v1613, 7
      %v2820 = vsel %vm1617, %v2819, 0
      %v2823 = vsel %vm1621, %v2818, 0
      %2825 = vmatprep.subr.mxu0 0.0
      %2826 = vmatpush1.msra.mxu0 %v2817
      %2827 = vmatprep.subr.mxu0 0.0
      %2828 = vmatpush1.msra.mxu0 %v2823
      %2829 = vmatprep.subr.mxu0 0.0
      %2830 = vmatpush1.msra.mxu0 0.0
      %2831 = vmatprep.subr.mxu0 0.0
      %2832 = vmatpush1.msra.mxu0 0.0
      %2833 = vmatprep.subr.mxu0 0.0
      %2834 = vmatpush1.msra.mxu0 0.0
      %2835 = vmatprep.subr.mxu0 0.0
      %2836 = vmatpush1.msra.mxu0 0.0
      %2837 = vmatprep.subr.mxu0 0.0
      %2838 = vmatpush1.msra.mxu0 0.0
      %2839 = vmatprep.subr.mxu0 0.0
      %2840 = vmatpush1.msra.mxu0 0.0
      %2841 = vmatprep.subr.mxu0 0.0
      %2842 = vmatpush1.msra.mxu0 0.0
      %2843 = vmatprep.subr.mxu0 0.0
      %2844 = vmatpush1.msra.mxu0 0.0
      %2845 = vmatprep.subr.mxu0 0.0
      %2846 = vmatpush1.msra.mxu0 0.0
      %2847 = vmatprep.subr.mxu0 0.0
      %2848 = vmatpush1.msra.mxu0 0.0
      %2849 = vmatprep.subr.mxu0 0.0
      %2850 = vmatpush1.msra.mxu0 0.0
      %2851 = vmatprep.subr.mxu0 0.0
      %2852 = vmatpush1.msra.mxu0 0.0
      %2853 = vmatprep.subr.mxu0 0.0
      %2854 = vmatpush1.msra.mxu0 0.0
      %2855 = vmatprep.subr.mxu0 0.0
      %2856 = vmatpush1.msra.mxu0 0.0
      %2857 = vmatprep.subr.mxu0 0.0
      %2858 = vmatpush1.msra.mxu0 0.0
      %2859 = vmatprep.subr.mxu0 0.0
      %2860 = vmatpush1.msra.mxu0 0.0
      %2861 = vmatprep.subr.mxu0 0.0
      %2862 = vmatpush1.msra.mxu0 0.0
      %2863 = vmatprep.subr.mxu0 0.0
      %2864 = vmatpush1.msra.mxu0 0.0
      %2865 = vmatprep.subr.mxu0 0.0
      %2866 = vmatpush1.msra.mxu0 0.0
      %2867 = vmatprep.subr.mxu0 0.0
      %2868 = vmatpush1.msra.mxu0 0.0
      %2869 = vmatprep.subr.mxu0 0.0
      %2870 = vmatpush1.msra.mxu0 0.0
      %2871 = vmatprep.subr.mxu0 0.0
      %2872 = vmatpush1.msra.mxu0 0.0
      %2873 = vmatprep.subr.mxu0 0.0
      %2874 = vmatpush1.msra.mxu0 0.0
      %2875 = vmatprep.subr.mxu0 0.0
      %2876 = vmatpush1.msra.mxu0 0.0
      %2877 = vmatprep.subr.mxu0 0.0
      %2878 = vmatpush1.msra.mxu0 0.0
      %2879 = vmatprep.subr.mxu0 0.0
      %2880 = vmatpush1.msra.mxu0 0.0
      %2881 = vmatprep.subr.mxu0 0.0
      %2882 = vmatpush1.msra.mxu0 0.0
      %2883 = vmatprep.subr.mxu0 0.0
      %2884 = vmatpush1.msra.mxu0 0.0
      %2885 = vmatprep.subr.mxu0 0.0
      %2886 = vmatpush1.msra.mxu0 0.0
      %2887 = vmatprep.subr.mxu0 0.0
      %2888 = vmatpush1.msra.mxu0 0.0
      %2889 = vmatprep.mubr.f32.mxu0 0.0
      %2890 = vmatmul.mubr.f32.gmra.mrb[0].mxu0 %v2820
      %v2891 = vpop.f32.mrb[0].mxu0
      %v2892 = vadd.f32 0.0, %v2891
      %v2893 = vpop.f32.mrb[0].mxu0
      %2894 = vdwg.mxu0
      %v2895 = vadd.f32 %v2815, %v2892
      %v2896 = vld [vmem:[%s4] sm:$0xff]
      %v2897 = vld [vmem:[%s4 + $0x8] sm:$0xff]
      %v2898 = vld [vmem:[%s4 + $0x10] sm:$0xff]
      %v2899 = vld [vmem:[%s4 + $0x18] sm:$0xff]
      %v2900 = vld [vmem:[%s5] sm:$0x1]
      %v2902 = vsel %vm250, %v2895, 0
      %2904 = vmatprep.subr.mxu0 0.0
      %2905 = vmatpush1.msra.mxu0 %v2896
      %2906 = vmatprep.subr.mxu0 0.0
      %2907 = vmatpush1.msra.mxu0 %v2897
      %2908 = vmatprep.subr.mxu0 0.0
      %2909 = vmatpush1.msra.mxu0 %v2898
      %2910 = vmatprep.subr.mxu0 0.0
      %2911 = vmatpush1.msra.mxu0 %v2899
      %2912 = vmatprep.subr.mxu0 0.0
      %2913 = vmatpush1.msra.mxu0 0.0
      %2914 = vmatprep.subr.mxu0 0.0
      %2915 = vmatpush1.msra.mxu0 0.0
      %2916 = vmatprep.subr.mxu0 0.0
      %2917 = vmatpush1.msra.mxu0 0.0
      %2918 = vmatprep.subr.mxu0 0.0
      %2919 = vmatpush1.msra.mxu0 0.0
      %2920 = vmatprep.subr.mxu0 0.0
      %2921 = vmatpush1.msra.mxu0 0.0
      %2922 = vmatprep.subr.mxu0 0.0
      %2923 = vmatpush1.msra.mxu0 0.0
      %2924 = vmatprep.subr.mxu0 0.0
      %2925 = vmatpush1.msra.mxu0 0.0
      %2926 = vmatprep.subr.mxu0 0.0
      %2927 = vmatpush1.msra.mxu0 0.0
      %2928 = vmatprep.subr.mxu0 0.0
      %2929 = vmatpush1.msra.mxu0 0.0
      %2930 = vmatprep.subr.mxu0 0.0
      %2931 = vmatpush1.msra.mxu0 0.0
      %2932 = vmatprep.subr.mxu0 0.0
      %2933 = vmatpush1.msra.mxu0 0.0
      %2934 = vmatprep.subr.mxu0 0.0
      %2935 = vmatpush1.msra.mxu0 0.0
      %2936 = vmatprep.subr.mxu0 0.0
      %2937 = vmatpush1.msra.mxu0 0.0
      %2938 = vmatprep.subr.mxu0 0.0
      %2939 = vmatpush1.msra.mxu0 0.0
      %2940 = vmatprep.subr.mxu0 0.0
      %2941 = vmatpush1.msra.mxu0 0.0
      %2942 = vmatprep.subr.mxu0 0.0
      %2943 = vmatpush1.msra.mxu0 0.0
      %2944 = vmatprep.subr.mxu0 0.0
      %2945 = vmatpush1.msra.mxu0 0.0
      %2946 = vmatprep.subr.mxu0 0.0
      %2947 = vmatpush1.msra.mxu0 0.0
      %2948 = vmatprep.subr.mxu0 0.0
      %2949 = vmatpush1.msra.mxu0 0.0
      %2950 = vmatprep.subr.mxu0 0.0
      %2951 = vmatpush1.msra.mxu0 0.0
      %2952 = vmatprep.subr.mxu0 0.0
      %2953 = vmatpush1.msra.mxu0 0.0
      %2954 = vmatprep.subr.mxu0 0.0
      %2955 = vmatpush1.msra.mxu0 0.0
      %2956 = vmatprep.subr.mxu0 0.0
      %2957 = vmatpush1.msra.mxu0 0.0
      %2958 = vmatprep.subr.mxu0 0.0
      %2959 = vmatpush1.msra.mxu0 0.0
      %2960 = vmatprep.subr.mxu0 0.0
      %2961 = vmatpush1.msra.mxu0 0.0
      %2962 = vmatprep.subr.mxu0 0.0
      %2963 = vmatpush1.msra.mxu0 0.0
      %2964 = vmatprep.subr.mxu0 0.0
      %2965 = vmatpush1.msra.mxu0 0.0
      %2966 = vmatprep.subr.mxu0 0.0
      %2967 = vmatpush1.msra.mxu0 0.0
      %2968 = vmatprep.mubr.f32.mxu0 0.0
      %2969 = vmatmul.mubr.f32.gmra.mrb[0].mxu0 %v2902
      %v2970 = vpop.f32.mrb[0].mxu0
      %v2971 = vadd.f32 %v2900, %v2970
      %v2972 = vpop.f32.mrb[0].mxu0
      %2973 = vdwg.mxu0
      %vm2974 = vcmask 8192
      %v2975 = vsel %vm2974, %v2971, -inf
      %2976 = vmax.xlane.f32.xlu0 %v2975
      %v2977 = vpop.xlane.xlu0 %2976
      %v2978 = vsub.f32 %v2971, %v2977
      %v2979 = vmul.f32 %v2978, 1.442695
      %v2980 = vpow.pop %v2979
      %v2981 = vsel %vm2974, %v2980, 0.0
      %2982 = vadd.xlane.f32.xlu0 %v2981
      %v2983 = vpop.xlane.xlu0 %2982
      %v2984 = vrcp.pop %v2983
      %v2985 = vmul.f32 %v2980, %v2984
      %v2986 = vlaneseq
      %v2987 = vshrl.u32 %v2986, 7
      %v2988 = vsub.s32 0, %v2987
      %v2989 = vrot.slane %v2895, %v2988
      %2990 = vrot.lane.b32.xlu0 %v2989, 2
      %v2991 = vpop.permute.xlu0 %2990
      %vm2993 = vcmask 15360
      %v2994 = vsel %vm2993, %v2985, %v2991
      %vm2995 = vcmask 277504
      %v2996 = vsel %vm2995, %v2994, 0.0
      %2997 = vst [vmem:[%s247] sm:$0x1] %v2996
      %p2998 = scmp.lt.s32.totalorder %s17, 1
      %s2999 = scalar_select %p2998, %s17, 1
      %s3000 = scalar_lea.vmem %s6, %s2999
      // Predicated region
      $region45: #{forward.1} parent=43 // pred_check
        %p3001 = pneg %p166
      $region46: #{forward.1} parent=43 // pred_check_branch
        %3003 = sbr.rel (%p3001) target = $region48
      $region47: #{forward.1} parent=43 // pred_region
        _
      $region48: #{forward.1} parent=43 // pred_fallthru
        _
    $region44: #{forward.1} parent=5 // pred_fallthru
      _
    %p3004 = scmp.le.s32.totalorder 2, %s12
    // Predicated region
    $region49: #{forward.1} parent=5 // pred_check
      %p3005 = pneg %p3004
    $region50: #{forward.1} parent=5 // pred_check_branch
      %3007 = sbr.rel (%p3005) target = $region52
    $region51: #{forward.1} parent=5 // pred_region
      %s3008 = ssub.s32 %s12, 2
      // Predicated region
      $region53: #{forward.1} parent=51 // pred_check
        %p3009 = pneg %p172
      $region54: #{forward.1} parent=51 // pred_check_branch
        %3011 = sbr.rel (%p3009) target = $region56
      $region55: #{forward.1} parent=51 // pred_region
        %p3012 = scmp.lt.s32.totalorder %s18, 1
        %s3013 = scalar_select %p3012, %s18, 1
        %s3014 = scalar_lea.vmem %s6, %s3013
      $region56: #{forward.1} parent=51 // pred_fallthru
        _
    $region52: #{forward.1} parent=5 // pred_fallthru
      _
  $region6: #{forward.1} parent=0 // loop_footer
    %s16 = sadd.s32 1, %s12
  $region7: #{forward.1} parent=0 // loop_footer_branch
    %11 = sbr.rel target = $region3
  $region8: #{forward.1} parent=0 // loop_exit
    _

</llo_original>
